<compile_context>
chip_gen: v7x
topology: tpu7x:2x2x1
jax: 0.10.0
libtpu: 0.0.40
codegen_flags: <defaults>
</compile_context>

<pallas_src>
import functools

import jax
import jax.numpy as jnp
from jax.experimental import pallas as pl
from jax.experimental.pallas import tpu as pltpu

# Matmul operand dtype (accumulation is always f32). bf16 hits MXU peak on
# v5e/v6e/v7x and halves operand DMA bytes; use jnp.float32 for f32 parity.
COMPUTE_DTYPE = jnp.bfloat16

_SQRT_HALF = 0.7071067811865476  # 1/sqrt(2) for exact-erf GELU
_LN_EPS = 1e-5                   # PyTorch nn.LayerNorm default


def _round_up(x, m):
    return ((x + m - 1) // m) * m


def _const_spec(shape):
    """BlockSpec covering the full array, same block for every grid step."""
    zeros = (0,) * len(shape)
    return pl.BlockSpec(shape, lambda b: zeros)


# ----------------------------------------------------------------------------
# Generic tiled linear kernel: y = x @ w + b   (used for patch embedding)
# ----------------------------------------------------------------------------
def _linear_kernel(x_ref, w_ref, b_ref, o_ref, acc_ref):
    k = pl.program_id(2)

    @pl.when(k == 0)
    def _():
        acc_ref[...] = jnp.zeros_like(acc_ref)

    acc_ref[...] += jnp.dot(
        x_ref[...].astype(COMPUTE_DTYPE),
        w_ref[...].astype(COMPUTE_DTYPE),
        preferred_element_type=jnp.float32,
    )

    @pl.when(k == pl.num_programs(2) - 1)
    def _():
        o_ref[...] = (acc_ref[...] + b_ref[...]).astype(o_ref.dtype)


def linear(x, w, b, *, tm=512, tn=512, tk=1024):
    """x: (M, K) f32, w: (K, N) COMPUTE_DTYPE, b: (N,) f32 -> (M, N) f32.

    Small dims use full (unpadded) blocks via the full-dim escape of the
    (8,128) tiling rule, so at small shapes there is no pad/slice glue."""
    M, K = x.shape
    N = w.shape[1]

    Mp, tm_e = (M, M) if M <= tm else (_round_up(M, tm), tm)
    Np, tn_e = (N, N) if N <= tn else (_round_up(N, tn), tn)
    Kp, tk_e = (K, K) if K <= tk else (_round_up(K, tk), tk)

    xp = x if (Mp == M and Kp == K) else jnp.pad(x, ((0, Mp - M), (0, Kp - K)))
    wp = w if (Kp == K and Np == N) else jnp.pad(w, ((0, Kp - K), (0, Np - N)))
    bp = b.reshape(1, N)
    if Np != N:
        bp = jnp.pad(bp, ((0, 0), (0, Np - N)))

    out = pl.pallas_call(
        _linear_kernel,
        out_shape=jax.ShapeDtypeStruct((Mp, Np), jnp.float32),
        grid=(Mp // tm_e, Np // tn_e, Kp // tk_e),
        in_specs=[
            pl.BlockSpec((tm_e, tk_e), lambda i, j, k: (i, k)),
            pl.BlockSpec((tk_e, tn_e), lambda i, j, k: (k, j)),
            pl.BlockSpec((1, tn_e), lambda i, j, k: (0, j)),
        ],
        out_specs=pl.BlockSpec((tm_e, tn_e), lambda i, j, k: (i, j)),
        scratch_shapes=[pltpu.VMEM((tm_e, tn_e), jnp.float32)],
        compiler_params=pltpu.CompilerParams(
            dimension_semantics=("parallel", "parallel", "arbitrary"),
            # <= 48 MiB: safe on v7x (64 MiB physical), plenty on v5e/v6e.
            vmem_limit_bytes=48 * 1024 * 1024,
        ),
    )(xp, wp, bp)
    if Mp == M and Np == N:
        return out
    return out[:M, :N]


# ----------------------------------------------------------------------------
# Fused encoder layer: one batch element per grid step, everything in VMEM.
# ----------------------------------------------------------------------------
def _encoder_layer_kernel(x_ref, wqkv_ref, bqkv_ref, wo_ref, bo_ref,
                          ln1g_ref, ln1b_ref, w1_ref, b1_ref,
                          w2_ref, b2_ref, ln2g_ref, ln2b_ref,
                          o_ref, *, n_heads, eps):
    cd = COMPUTE_DTYPE
    x = x_ref[0]                                    # (S, D) f32
    S, D = x.shape
    Dh = D // n_heads
    scale = 1.0 / float(Dh) ** 0.5
    x_c = x.astype(cd)

    # --- multi-head self-attention: per-head QKV proj + SDPA, out-proj
    #     accumulated directly (equivalent to concat-heads @ Wo). Residual and
    #     out-proj bias start the accumulator.
    y = x + bo_ref[...]                             # (S, D) f32
    for h in range(n_heads):
        q = jnp.dot(x_c, wqkv_ref[0, h].astype(cd),
                    preferred_element_type=jnp.float32) + bqkv_ref[0, h]
        k = jnp.dot(x_c, wqkv_ref[1, h].astype(cd),
                    preferred_element_type=jnp.float32) + bqkv_ref[1, h]
        v = jnp.dot(x_c, wqkv_ref[2, h].astype(cd),
                    preferred_element_type=jnp.float32) + bqkv_ref[2, h]
        q = q * scale                               # fold 1/sqrt(Dh) into q

        s = jax.lax.dot_general(                    # (S, S) f32
            q.astype(cd), k.astype(cd),
            (((1,), (1,)), ((), ())),
            preferred_element_type=jnp.float32)
        s = s - jnp.max(s, axis=-1, keepdims=True)
        p = jnp.exp(s)
        p = p / jnp.sum(p, axis=-1, keepdims=True)  # exact softmax (f32)

        o_h = jnp.dot(p.astype(cd), v.astype(cd),
                      preferred_element_type=jnp.float32)     # (S, Dh)
        y = y + jnp.dot(o_h.astype(cd), wo_ref[h].astype(cd),
                        preferred_element_type=jnp.float32)   # (S, D)

    # --- LayerNorm 1 (f32, biased variance, PyTorch eps)
    mu = jnp.mean(y, axis=-1, keepdims=True)
    var = jnp.mean((y - mu) * (y - mu), axis=-1, keepdims=True)
    y = (y - mu) * jax.lax.rsqrt(var + eps) * ln1g_ref[...] + ln1b_ref[...]

    # --- MLP: fc1 + exact-erf GELU, fc2 + residual
    h1 = jnp.dot(y.astype(cd), w1_ref[...].astype(cd),
                 preferred_element_type=jnp.float32) + b1_ref[...]
    h1 = 0.5 * h1 * (1.0 + jax.lax.erf(h1 * _SQRT_HALF))
    z = jnp.dot(h1.astype(cd), w2_ref[...].astype(cd),
                preferred_element_type=jnp.float32) + b2_ref[...] + y

    # --- LayerNorm 2
    mu = jnp.mean(z, axis=-1, keepdims=True)
    var = jnp.mean((z - mu) * (z - mu), axis=-1, keepdims=True)
    o_ref[0] = ((z - mu) * jax.lax.rsqrt(var + eps)
                * ln2g_ref[...] + ln2b_ref[...]).astype(o_ref.dtype)


def encoder_layer(x, p, *, n_heads, eps=_LN_EPS):
    B, S, D = x.shape
    args = (x, p["wqkv"], p["bqkv"], p["wo"], p["bo"],
            p["ln1_g"], p["ln1_b"], p["w1"], p["b1"],
            p["w2"], p["b2"], p["ln2_g"], p["ln2_b"])
    in_specs = [pl.BlockSpec((1, S, D), lambda b: (b, 0, 0))]
    in_specs += [_const_spec(a.shape) for a in args[1:]]
    return pl.pallas_call(
        functools.partial(_encoder_layer_kernel, n_heads=n_heads, eps=eps),
        out_shape=jax.ShapeDtypeStruct((B, S, D), jnp.float32),
        grid=(B,),
        in_specs=in_specs,
        out_specs=pl.BlockSpec((1, S, D), lambda b: (b, 0, 0)),
        compiler_params=pltpu.CompilerParams(
            dimension_semantics=("parallel",)),
    )(*args)


# ----------------------------------------------------------------------------
# Fused head: final LayerNorm + mean over sequence + classifier.
# ----------------------------------------------------------------------------
def _head_kernel(x_ref, g_ref, b_ref, w_ref, fb_ref, o_ref, *, eps):
    cd = COMPUTE_DTYPE
    x = x_ref[0]                                    # (S, D) f32
    mu = jnp.mean(x, axis=-1, keepdims=True)
    var = jnp.mean((x - mu) * (x - mu), axis=-1, keepdims=True)
    xn = (x - mu) * jax.lax.rsqrt(var + eps) * g_ref[...] + b_ref[...]
    proj = jnp.dot(xn.astype(cd), w_ref[...].astype(cd),
                   preferred_element_type=jnp.float32)        # (S, C)
    # mean-pool then bias (mean commutes with the linear map).
    o_ref[0] = (jnp.mean(proj, axis=0, keepdims=True)
                + fb_ref[...]).astype(o_ref.dtype)


def classifier_head(x, ln_g, ln_b, fc_w, fc_b, *, eps=_LN_EPS):
    B, S, D = x.shape
    NC = fc_w.shape[1]
    out = pl.pallas_call(
        functools.partial(_head_kernel, eps=eps),
        out_shape=jax.ShapeDtypeStruct((B, 1, NC), jnp.float32),
        grid=(B,),
        in_specs=[
            pl.BlockSpec((1, S, D), lambda b: (b, 0, 0)),
            _const_spec(ln_g.shape), _const_spec(ln_b.shape),
            _const_spec(fc_w.shape), _const_spec(fc_b.shape),
        ],
        out_specs=pl.BlockSpec((1, 1, NC), lambda b: (b, 0, 0)),
        compiler_params=pltpu.CompilerParams(
            dimension_semantics=("parallel",)),
    )(x, ln_g, ln_b, fc_w, fc_b)
    return out.reshape(B, NC)


# ----------------------------------------------------------------------------
# Parameter init (deterministic, synthetic). Matmul weights stored in
# COMPUTE_DTYPE; Q/K/V and out-proj weights stored head-major so the fused
# layer kernel never slices lanes.
# ----------------------------------------------------------------------------
def init_params(key, d_model, n_heads, n_layers, num_classes, hidden_dim,
                patch_size, in_chans=3):
    Dh = d_model // n_heads
    keys = iter(jax.random.split(key, 2 + 4 * n_layers))

    def w(shape):
        return (0.02 * jax.random.normal(next(keys), shape,
                                         jnp.float32)).astype(COMPUTE_DTYPE)

    params = {
        "patch_w": w((in_chans * patch_size * patch_size, d_model)),
        "patch_b": jnp.zeros((d_model,), jnp.float32),
        "ln_g": jnp.ones((1, d_model), jnp.float32),
        "ln_b": jnp.zeros((1, d_model), jnp.float32),
        "fc_w": w((d_model, num_classes)),
        "fc_b": jnp.zeros((1, num_classes), jnp.float32),
        "layers": [],
    }
    for _ in range(n_layers):
        params["layers"].append({
            "wqkv": w((3, n_heads, d_model, Dh)),        # head-major q/k/v
            "bqkv": jnp.zeros((3, n_heads, 1, Dh), jnp.float32),
            "wo": w((n_heads, Dh, d_model)),             # == Wo.reshape(H,Dh,D)
            "bo": jnp.zeros((1, d_model), jnp.float32),
            "w1": w((d_model, hidden_dim)),
            "b1": jnp.zeros((1, hidden_dim), jnp.float32),
            "w2": w((hidden_dim, d_model)),
            "b2": jnp.zeros((1, d_model), jnp.float32),
            "ln1_g": jnp.ones((1, d_model), jnp.float32),
            "ln1_b": jnp.zeros((1, d_model), jnp.float32),
            "ln2_g": jnp.ones((1, d_model), jnp.float32),
            "ln2_b": jnp.zeros((1, d_model), jnp.float32),
        })
    return params


# ----------------------------------------------------------------------------
# Forward pass (mirrors Transformer.forward, eval mode / dropout = identity).
# ----------------------------------------------------------------------------
def transformer_forward(params, x, *, n_heads, patch_size):
    B, C, H_img, W_img = x.shape
    P = patch_size
    nh, nw = H_img // P, W_img // P
    S = nh * nw
    D = params["patch_w"].shape[1]

    # PatchEmbedding: Conv2d(3, D, k=P, stride=P) == patch-flatten + matmul.
    patches = (
        x.reshape(B, C, nh, P, nw, P)
        .transpose(0, 2, 4, 1, 3, 5)                 # (B, nh, nw, C, P, P)
        .reshape(B * S, C * P * P)
    )
    h = linear(patches, params["patch_w"], params["patch_b"])   # (B*S, D)
    h = h.reshape(B, S, D)                                      # free reshape

    for layer in params["layers"]:
        h = encoder_layer(h, layer, n_heads=n_heads)            # fused layer

    # Final LN + mean over sequence + classifier, fused per batch element.
    return classifier_head(h, params["ln_g"], params["ln_b"],
                           params["fc_w"], params["fc_b"])      # (B, classes)


# ----------------------------------------------------------------------------
if __name__ == "__main__":
    d_model, n_heads, n_layers, num_classes = 32, 4, 2, 10
    hidden_dim, patch_size = 64, 16

    key = jax.random.PRNGKey(0)
    kp, kx = jax.random.split(key)
    params = init_params(kp, d_model, n_heads, n_layers, num_classes,
                         hidden_dim, patch_size)

    # Input like PyTorch NCHW: (B=2, C=3, H=32, W=32) -> seq_len = 4 patches.
    x = jax.random.normal(kx, (2, 3, 32, 32), jnp.float32)

    fwd = jax.jit(functools.partial(transformer_forward,
                                    n_heads=n_heads, patch_size=patch_size))
    out = jax.block_until_ready(fwd(params, x))
    assert out.shape == (2, num_classes), out.shape
    assert bool(jnp.all(jnp.isfinite(out)))
    print("KERNEL_OK")
</pallas_src>

<mosaic_0001>
module attributes {stable_mosaic.version = 11 : i64} {
  func.func @_linear_kernel(%arg0: i32, %arg1: i32, %arg2: i32, %arg3: memref<8x768xf32, #tpu.memory_space<vmem>>, %arg4: memref<768x32xbf16, #tpu.memory_space<vmem>>, %arg5: memref<1x32xf32, #tpu.memory_space<vmem>>, %arg6: memref<8x32xf32, #tpu.memory_space<vmem>>, %arg7: memref<8x32xf32, #tpu.memory_space<vmem>>) attributes {dimension_semantics = [#tpu.dimension_semantics<parallel>, #tpu.dimension_semantics<parallel>, #tpu.dimension_semantics<arbitrary>], iteration_bounds = array<i64: 1, 1, 1>, scalar_prefetch = 0 : i64, scratch_operands = 1 : i64, tpu.core_type = #tpu.core_type<tc>, window_params = [{transform_indices = @transform_0, window_bounds = array<i64: 8, 768>}, {transform_indices = @transform_1, window_bounds = array<i64: 768, 32>}, {transform_indices = @transform_2, window_bounds = array<i64: 1, 32>}, {transform_indices = @transform_3, window_bounds = array<i64: 8, 32>}]} {
    %c0_i32 = arith.constant 0 : i32
    %0 = arith.cmpi eq, %arg2, %c0_i32 : i32
    %1 = arith.extui %0 : i1 to i32
    %c0_i32_0 = arith.constant 0 : i32
    %2 = arith.cmpi ne, %1, %c0_i32_0 : i32
    scf.if %2 {
      %cst_10 = arith.constant 0.000000e+00 : f32
      %13 = vector.broadcast %cst_10 : f32 to vector<8x32xf32>
      %c0_11 = arith.constant 0 : index
      %c0_12 = arith.constant 0 : index
      %14 = vector.load %arg7[%c0_11, %c0_12] : memref<8x32xf32, #tpu.memory_space<vmem>>, vector<8x32xf32>
      tpu.vector_store %arg7[%c0_11, %c0_12], %13 {strides = array<i32>} : memref<8x32xf32, #tpu.memory_space<vmem>>, vector<8x32xf32>,
    } else {
    }
    %c0 = arith.constant 0 : index
    %c0_1 = arith.constant 0 : index
    %3 = vector.load %arg7[%c0, %c0_1] : memref<8x32xf32, #tpu.memory_space<vmem>>, vector<8x32xf32>
    %c0_2 = arith.constant 0 : index
    %c0_3 = arith.constant 0 : index
    %4 = vector.load %arg3[%c0_2, %c0_3] : memref<8x768xf32, #tpu.memory_space<vmem>>, vector<8x768xf32>
    %5 = arith.truncf %4 : vector<8x768xf32> to vector<8x768xbf16>
    %c0_4 = arith.constant 0 : index
    %c0_5 = arith.constant 0 : index
    %6 = vector.load %arg4[%c0_4, %c0_5] : memref<768x32xbf16, #tpu.memory_space<vmem>>, vector<768x32xbf16>
    %cst = arith.constant dense<0.000000e+00> : vector<8x32xf32>
    %7 = tpu.matmul %5, %6, %cst {dimension_numbers = #tpu.dot_dimension_numbers<[1], [0], [0], [1], [0, 0, 1, 1], [], []>} : vector<8x768xbf16>, vector<768x32xbf16>, vector<8x32xf32> -> vector<8x32xf32>
    %8 = arith.addf %3, %7 : vector<8x32xf32>
    %c0_6 = arith.constant 0 : index
    %c0_7 = arith.constant 0 : index
    %9 = vector.load %arg7[%c0_6, %c0_7] : memref<8x32xf32, #tpu.memory_space<vmem>>, vector<8x32xf32>
    tpu.vector_store %arg7[%c0_6, %c0_7], %8 {strides = array<i32>} : memref<8x32xf32, #tpu.memory_space<vmem>>, vector<8x32xf32>,
    %c0_i32_8 = arith.constant 0 : i32
    %10 = arith.cmpi eq, %arg2, %c0_i32_8 : i32
    %11 = arith.extui %10 : i1 to i32
    %c0_i32_9 = arith.constant 0 : i32
    %12 = arith.cmpi ne, %11, %c0_i32_9 : i32
    scf.if %12 {
      %c0_10 = arith.constant 0 : index
      %c0_11 = arith.constant 0 : index
      %13 = vector.load %arg7[%c0_10, %c0_11] : memref<8x32xf32, #tpu.memory_space<vmem>>, vector<8x32xf32>
      %c0_12 = arith.constant 0 : index
      %c0_13 = arith.constant 0 : index
      %14 = vector.load %arg5[%c0_12, %c0_13] : memref<1x32xf32, #tpu.memory_space<vmem>>, vector<1x32xf32>
      %15 = vector.broadcast %14 : vector<1x32xf32> to vector<8x32xf32>
      %16 = arith.addf %13, %15 : vector<8x32xf32>
      %c0_14 = arith.constant 0 : index
      %c0_15 = arith.constant 0 : index
      %17 = vector.load %arg6[%c0_14, %c0_15] : memref<8x32xf32, #tpu.memory_space<vmem>>, vector<8x32xf32>
      tpu.vector_store %arg6[%c0_14, %c0_15], %16 {strides = array<i32>} : memref<8x32xf32, #tpu.memory_space<vmem>>, vector<8x32xf32>,
    } else {
    }
    return
  }
  func.func @transform_0(%arg0: i32, %arg1: i32, %arg2: i32) -> (i32, i32) {
    %c0_i32 = arith.constant 0 : i32
    return %arg0, %arg2 : i32, i32
  }
  func.func @transform_1(%arg0: i32, %arg1: i32, %arg2: i32) -> (i32, i32) {
    %c0_i32 = arith.constant 0 : i32
    return %arg2, %arg1 : i32, i32
  }
  func.func @transform_2(%arg0: i32, %arg1: i32, %arg2: i32) -> (i32, i32) {
    %c0_i32 = arith.constant 0 : i32
    %c0_i32_0 = arith.constant 0 : i32
    return %c0_i32, %arg1 : i32, i32
  }
  func.func @transform_3(%arg0: i32, %arg1: i32, %arg2: i32) -> (i32, i32) {
    %c0_i32 = arith.constant 0 : i32
    return %arg0, %arg1 : i32, i32
  }
}

module attributes {stable_mosaic.version = 11 : i64} {
  func.func @_encoder_layer_kernel(%arg0: i32, %arg1: memref<1x4x32xf32, #tpu.memory_space<vmem>>, %arg2: memref<3x4x32x8xbf16, #tpu.memory_space<vmem>>, %arg3: memref<3x4x1x8xf32, #tpu.memory_space<vmem>>, %arg4: memref<4x8x32xbf16, #tpu.memory_space<vmem>>, %arg5: memref<1x32xf32, #tpu.memory_space<vmem>>, %arg6: memref<1x32xf32, #tpu.memory_space<vmem>>, %arg7: memref<1x32xf32, #tpu.memory_space<vmem>>, %arg8: memref<32x64xbf16, #tpu.memory_space<vmem>>, %arg9: memref<1x64xf32, #tpu.memory_space<vmem>>, %arg10: memref<64x32xbf16, #tpu.memory_space<vmem>>, %arg11: memref<1x32xf32, #tpu.memory_space<vmem>>, %arg12: memref<1x32xf32, #tpu.memory_space<vmem>>, %arg13: memref<1x32xf32, #tpu.memory_space<vmem>>, %arg14: memref<1x4x32xf32, #tpu.memory_space<vmem>>) attributes {dimension_semantics = [#tpu.dimension_semantics<parallel>], iteration_bounds = array<i64: 2>, scalar_prefetch = 0 : i64, scratch_operands = 0 : i64, tpu.core_type = #tpu.core_type<tc>, window_params = [{transform_indices = @transform_0, window_bounds = array<i64: 1, 4, 32>}, {pipeline_mode = #tpu.pipeline_mode<synchronous>, transform_indices = @transform_1, window_bounds = array<i64: 3, 4, 32, 8>}, {pipeline_mode = #tpu.pipeline_mode<synchronous>, transform_indices = @transform_2, window_bounds = array<i64: 3, 4, 1, 8>}, {pipeline_mode = #tpu.pipeline_mode<synchronous>, transform_indices = @transform_3, window_bounds = array<i64: 4, 8, 32>}, {pipeline_mode = #tpu.pipeline_mode<synchronous>, transform_indices = @transform_4, window_bounds = array<i64: 1, 32>}, {pipeline_mode = #tpu.pipeline_mode<synchronous>, transform_indices = @transform_5, window_bounds = array<i64: 1, 32>}, {pipeline_mode = #tpu.pipeline_mode<synchronous>, transform_indices = @transform_6, window_bounds = array<i64: 1, 32>}, {pipeline_mode = #tpu.pipeline_mode<synchronous>, transform_indices = @transform_7, window_bounds = array<i64: 32, 64>}, {pipeline_mode = #tpu.pipeline_mode<synchronous>, transform_indices = @transform_8, window_bounds = array<i64: 1, 64>}, {pipeline_mode = #tpu.pipeline_mode<synchronous>, transform_indices = @transform_9, window_bounds = array<i64: 64, 32>}, {pipeline_mode = #tpu.pipeline_mode<synchronous>, transform_indices = @transform_10, window_bounds = array<i64: 1, 32>}, {pipeline_mode = #tpu.pipeline_mode<synchronous>, transform_indices = @transform_11, window_bounds = array<i64: 1, 32>}, {pipeline_mode = #tpu.pipeline_mode<synchronous>, transform_indices = @transform_12, window_bounds = array<i64: 1, 32>}, {transform_indices = @transform_13, window_bounds = array<i64: 1, 4, 32>}]} {
    %c0 = arith.constant 0 : index
    %c0_0 = arith.constant 0 : index
    %c0_1 = arith.constant 0 : index
    %0 = vector.load %arg1[%c0, %c0_0, %c0_1] : memref<1x4x32xf32, #tpu.memory_space<vmem>>, vector<1x4x32xf32>
    %1 = vector.shape_cast %0 : vector<1x4x32xf32> to vector<4x32xf32>
    %2 = arith.truncf %1 : vector<4x32xf32> to vector<4x32xbf16>
    %c0_2 = arith.constant 0 : index
    %c0_3 = arith.constant 0 : index
    %3 = vector.load %arg5[%c0_2, %c0_3] : memref<1x32xf32, #tpu.memory_space<vmem>>, vector<1x32xf32>
    %4 = vector.broadcast %3 : vector<1x32xf32> to vector<4x32xf32>
    %5 = arith.addf %1, %4 : vector<4x32xf32>
    %c0_4 = arith.constant 0 : index
    %c0_5 = arith.constant 0 : index
    %c0_6 = arith.constant 0 : index
    %c0_7 = arith.constant 0 : index
    %6 = vector.load %arg2[%c0_4, %c0_5, %c0_6, %c0_7] : memref<3x4x32x8xbf16, #tpu.memory_space<vmem>>, vector<1x1x32x8xbf16>
    %7 = vector.shape_cast %6 : vector<1x1x32x8xbf16> to vector<32x8xbf16>
    %cst = arith.constant dense<0.000000e+00> : vector<4x8xf32>
    %8 = tpu.matmul %2, %7, %cst {dimension_numbers = #tpu.dot_dimension_numbers<[1], [0], [0], [1], [0, 0, 1, 1], [], []>} : vector<4x32xbf16>, vector<32x8xbf16>, vector<4x8xf32> -> vector<4x8xf32>
    %c0_8 = arith.constant 0 : index
    %c0_9 = arith.constant 0 : index
    %c0_10 = arith.constant 0 : index
    %c0_11 = arith.constant 0 : index
    %9 = vector.load %arg3[%c0_8, %c0_9, %c0_10, %c0_11] : memref<3x4x1x8xf32, #tpu.memory_space<vmem>>, vector<1x1x1x8xf32>
    %10 = vector.shape_cast %9 : vector<1x1x1x8xf32> to vector<1x8xf32>
    %11 = vector.broadcast %10 : vector<1x8xf32> to vector<4x8xf32>
    %12 = arith.addf %8, %11 : vector<4x8xf32>
    %c1 = arith.constant 1 : index
    %c0_12 = arith.constant 0 : index
    %c0_13 = arith.constant 0 : index
    %c0_14 = arith.constant 0 : index
    %13 = vector.load %arg2[%c1, %c0_12, %c0_13, %c0_14] : memref<3x4x32x8xbf16, #tpu.memory_space<vmem>>, vector<1x1x32x8xbf16>
    %14 = vector.shape_cast %13 : vector<1x1x32x8xbf16> to vector<32x8xbf16>
    %cst_15 = arith.constant dense<0.000000e+00> : vector<4x8xf32>
    %15 = tpu.matmul %2, %14, %cst_15 {dimension_numbers = #tpu.dot_dimension_numbers<[1], [0], [0], [1], [0, 0, 1, 1], [], []>} : vector<4x32xbf16>, vector<32x8xbf16>, vector<4x8xf32> -> vector<4x8xf32>
    %c1_16 = arith.constant 1 : index
    %c0_17 = arith.constant 0 : index
    %c0_18 = arith.constant 0 : index
    %c0_19 = arith.constant 0 : index
    %16 = vector.load %arg3[%c1_16, %c0_17, %c0_18, %c0_19] : memref<3x4x1x8xf32, #tpu.memory_space<vmem>>, vector<1x1x1x8xf32>
    %17 = vector.shape_cast %16 : vector<1x1x1x8xf32> to vector<1x8xf32>
    %18 = vector.broadcast %17 : vector<1x8xf32> to vector<4x8xf32>
    %19 = arith.addf %15, %18 : vector<4x8xf32>
    %c2 = arith.constant 2 : index
    %c0_20 = arith.constant 0 : index
    %c0_21 = arith.constant 0 : index
    %c0_22 = arith.constant 0 : index
    %20 = vector.load %arg2[%c2, %c0_20, %c0_21, %c0_22] : memref<3x4x32x8xbf16, #tpu.memory_space<vmem>>, vector<1x1x32x8xbf16>
    %21 = vector.shape_cast %20 : vector<1x1x32x8xbf16> to vector<32x8xbf16>
    %cst_23 = arith.constant dense<0.000000e+00> : vector<4x8xf32>
    %22 = tpu.matmul %2, %21, %cst_23 {dimension_numbers = #tpu.dot_dimension_numbers<[1], [0], [0], [1], [0, 0, 1, 1], [], []>} : vector<4x32xbf16>, vector<32x8xbf16>, vector<4x8xf32> -> vector<4x8xf32>
    %c2_24 = arith.constant 2 : index
    %c0_25 = arith.constant 0 : index
    %c0_26 = arith.constant 0 : index
    %c0_27 = arith.constant 0 : index
    %23 = vector.load %arg3[%c2_24, %c0_25, %c0_26, %c0_27] : memref<3x4x1x8xf32, #tpu.memory_space<vmem>>, vector<1x1x1x8xf32>
    %24 = vector.shape_cast %23 : vector<1x1x1x8xf32> to vector<1x8xf32>
    %25 = vector.broadcast %24 : vector<1x8xf32> to vector<4x8xf32>
    %26 = arith.addf %22, %25 : vector<4x8xf32>
    %cst_28 = arith.constant 0.353553385 : f32
    %27 = vector.broadcast %cst_28 : f32 to vector<4x8xf32>
    %28 = arith.mulf %12, %27 : vector<4x8xf32>
    %29 = arith.truncf %28 : vector<4x8xf32> to vector<4x8xbf16>
    %30 = arith.truncf %19 : vector<4x8xf32> to vector<4x8xbf16>
    %cst_29 = arith.constant dense<0.000000e+00> : vector<4x4xf32>
    %31 = tpu.matmul %29, %30, %cst_29 {dimension_numbers = #tpu.dot_dimension_numbers<[1], [1], [0], [0], [0, 0, 1, 0], [], []>} : vector<4x8xbf16>, vector<4x8xbf16>, vector<4x4xf32> -> vector<4x4xf32>
    %cst_30 = arith.constant dense<0xFF800000> : vector<4xf32>
    %32 = vector.multi_reduction <maximumf>, %31, %cst_30 [1] : vector<4x4xf32> to vector<4xf32>
    %33 = vector.shape_cast %32 : vector<4xf32> to vector<4x1xf32>
    %34 = vector.broadcast %33 : vector<4x1xf32> to vector<4x4xf32>
    %35 = arith.subf %31, %34 : vector<4x4xf32>
    %36 = math.exp %35 : vector<4x4xf32>
    %cst_31 = arith.constant dense<0.000000e+00> : vector<4xf32>
    %37 = vector.multi_reduction <add>, %36, %cst_31 [1] : vector<4x4xf32> to vector<4xf32>
    %38 = vector.shape_cast %37 : vector<4xf32> to vector<4x1xf32>
    %39 = vector.broadcast %38 : vector<4x1xf32> to vector<4x4xf32>
    %40 = arith.divf %36, %39 : vector<4x4xf32>
    %41 = arith.truncf %40 : vector<4x4xf32> to vector<4x4xbf16>
    %42 = arith.truncf %26 : vector<4x8xf32> to vector<4x8xbf16>
    %cst_32 = arith.constant dense<0.000000e+00> : vector<4x8xf32>
    %43 = tpu.matmul %41, %42, %cst_32 {dimension_numbers = #tpu.dot_dimension_numbers<[1], [0], [0], [1], [0, 0, 1, 1], [], []>} : vector<4x4xbf16>, vector<4x8xbf16>, vector<4x8xf32> -> vector<4x8xf32>
    %44 = arith.truncf %43 : vector<4x8xf32> to vector<4x8xbf16>
    %c0_33 = arith.constant 0 : index
    %c0_34 = arith.constant 0 : index
    %c0_35 = arith.constant 0 : index
    %45 = vector.load %arg4[%c0_33, %c0_34, %c0_35] : memref<4x8x32xbf16, #tpu.memory_space<vmem>>, vector<1x8x32xbf16>
    %46 = vector.shape_cast %45 : vector<1x8x32xbf16> to vector<8x32xbf16>
    %cst_36 = arith.constant dense<0.000000e+00> : vector<4x32xf32>
    %47 = tpu.matmul %44, %46, %cst_36 {dimension_numbers = #tpu.dot_dimension_numbers<[1], [0], [0], [1], [0, 0, 1, 1], [], []>} : vector<4x8xbf16>, vector<8x32xbf16>, vector<4x32xf32> -> vector<4x32xf32>
    %48 = arith.addf %5, %47 : vector<4x32xf32>
    %c0_37 = arith.constant 0 : index
    %c1_38 = arith.constant 1 : index
    %c0_39 = arith.constant 0 : index
    %c0_40 = arith.constant 0 : index
    %49 = vector.load %arg2[%c0_37, %c1_38, %c0_39, %c0_40] : memref<3x4x32x8xbf16, #tpu.memory_space<vmem>>, vector<1x1x32x8xbf16>
    %50 = vector.shape_cast %49 : vector<1x1x32x8xbf16> to vector<32x8xbf16>
    %cst_41 = arith.constant dense<0.000000e+00> : vector<4x8xf32>
    %51 = tpu.matmul %2, %50, %cst_41 {dimension_numbers = #tpu.dot_dimension_numbers<[1], [0], [0], [1], [0, 0, 1, 1], [], []>} : vector<4x32xbf16>, vector<32x8xbf16>, vector<4x8xf32> -> vector<4x8xf32>
    %c0_42 = arith.constant 0 : index
    %c1_43 = arith.constant 1 : index
    %c0_44 = arith.constant 0 : index
    %c0_45 = arith.constant 0 : index
    %52 = vector.load %arg3[%c0_42, %c1_43, %c0_44, %c0_45] : memref<3x4x1x8xf32, #tpu.memory_space<vmem>>, vector<1x1x1x8xf32>
    %53 = vector.shape_cast %52 : vector<1x1x1x8xf32> to vector<1x8xf32>
    %54 = vector.broadcast %53 : vector<1x8xf32> to vector<4x8xf32>
    %55 = arith.addf %51, %54 : vector<4x8xf32>
    %c1_46 = arith.constant 1 : index
    %c1_47 = arith.constant 1 : index
    %c0_48 = arith.constant 0 : index
    %c0_49 = arith.constant 0 : index
    %56 = vector.load %arg2[%c1_46, %c1_47, %c0_48, %c0_49] : memref<3x4x32x8xbf16, #tpu.memory_space<vmem>>, vector<1x1x32x8xbf16>
    %57 = vector.shape_cast %56 : vector<1x1x32x8xbf16> to vector<32x8xbf16>
    %cst_50 = arith.constant dense<0.000000e+00> : vector<4x8xf32>
    %58 = tpu.matmul %2, %57, %cst_50 {dimension_numbers = #tpu.dot_dimension_numbers<[1], [0], [0], [1], [0, 0, 1, 1], [], []>} : vector<4x32xbf16>, vector<32x8xbf16>, vector<4x8xf32> -> vector<4x8xf32>
    %c1_51 = arith.constant 1 : index
    %c1_52 = arith.constant 1 : index
    %c0_53 = arith.constant 0 : index
    %c0_54 = arith.constant 0 : index
    %59 = vector.load %arg3[%c1_51, %c1_52, %c0_53, %c0_54] : memref<3x4x1x8xf32, #tpu.memory_space<vmem>>, vector<1x1x1x8xf32>
    %60 = vector.shape_cast %59 : vector<1x1x1x8xf32> to vector<1x8xf32>
    %61 = vector.broadcast %60 : vector<1x8xf32> to vector<4x8xf32>
    %62 = arith.addf %58, %61 : vector<4x8xf32>
    %c2_55 = arith.constant 2 : index
    %c1_56 = arith.constant 1 : index
    %c0_57 = arith.constant 0 : index
    %c0_58 = arith.constant 0 : index
    %63 = vector.load %arg2[%c2_55, %c1_56, %c0_57, %c0_58] : memref<3x4x32x8xbf16, #tpu.memory_space<vmem>>, vector<1x1x32x8xbf16>
    %64 = vector.shape_cast %63 : vector<1x1x32x8xbf16> to vector<32x8xbf16>
    %cst_59 = arith.constant dense<0.000000e+00> : vector<4x8xf32>
    %65 = tpu.matmul %2, %64, %cst_59 {dimension_numbers = #tpu.dot_dimension_numbers<[1], [0], [0], [1], [0, 0, 1, 1], [], []>} : vector<4x32xbf16>, vector<32x8xbf16>, vector<4x8xf32> -> vector<4x8xf32>
    %c2_60 = arith.constant 2 : index
    %c1_61 = arith.constant 1 : index
    %c0_62 = arith.constant 0 : index
    %c0_63 = arith.constant 0 : index
    %66 = vector.load %arg3[%c2_60, %c1_61, %c0_62, %c0_63] : memref<3x4x1x8xf32, #tpu.memory_space<vmem>>, vector<1x1x1x8xf32>
    %67 = vector.shape_cast %66 : vector<1x1x1x8xf32> to vector<1x8xf32>
    %68 = vector.broadcast %67 : vector<1x8xf32> to vector<4x8xf32>
    %69 = arith.addf %65, %68 : vector<4x8xf32>
    %cst_64 = arith.constant 0.353553385 : f32
    %70 = vector.broadcast %cst_64 : f32 to vector<4x8xf32>
    %71 = arith.mulf %55, %70 : vector<4x8xf32>
    %72 = arith.truncf %71 : vector<4x8xf32> to vector<4x8xbf16>
    %73 = arith.truncf %62 : vector<4x8xf32> to vector<4x8xbf16>
    %cst_65 = arith.constant dense<0.000000e+00> : vector<4x4xf32>
    %74 = tpu.matmul %72, %73, %cst_65 {dimension_numbers = #tpu.dot_dimension_numbers<[1], [1], [0], [0], [0, 0, 1, 0], [], []>} : vector<4x8xbf16>, vector<4x8xbf16>, vector<4x4xf32> -> vector<4x4xf32>
    %cst_66 = arith.constant dense<0xFF800000> : vector<4xf32>
    %75 = vector.multi_reduction <maximumf>, %74, %cst_66 [1] : vector<4x4xf32> to vector<4xf32>
    %76 = vector.shape_cast %75 : vector<4xf32> to vector<4x1xf32>
    %77 = vector.broadcast %76 : vector<4x1xf32> to vector<4x4xf32>
    %78 = arith.subf %74, %77 : vector<4x4xf32>
    %79 = math.exp %78 : vector<4x4xf32>
    %cst_67 = arith.constant dense<0.000000e+00> : vector<4xf32>
    %80 = vector.multi_reduction <add>, %79, %cst_67 [1] : vector<4x4xf32> to vector<4xf32>
    %81 = vector.shape_cast %80 : vector<4xf32> to vector<4x1xf32>
    %82 = vector.broadcast %81 : vector<4x1xf32> to vector<4x4xf32>
    %83 = arith.divf %79, %82 : vector<4x4xf32>
    %84 = arith.truncf %83 : vector<4x4xf32> to vector<4x4xbf16>
    %85 = arith.truncf %69 : vector<4x8xf32> to vector<4x8xbf16>
    %cst_68 = arith.constant dense<0.000000e+00> : vector<4x8xf32>
    %86 = tpu.matmul %84, %85, %cst_68 {dimension_numbers = #tpu.dot_dimension_numbers<[1], [0], [0], [1], [0, 0, 1, 1], [], []>} : vector<4x4xbf16>, vector<4x8xbf16>, vector<4x8xf32> -> vector<4x8xf32>
    %87 = arith.truncf %86 : vector<4x8xf32> to vector<4x8xbf16>
    %c1_69 = arith.constant 1 : index
    %c0_70 = arith.constant 0 : index
    %c0_71 = arith.constant 0 : index
    %88 = vector.load %arg4[%c1_69, %c0_70, %c0_71] : memref<4x8x32xbf16, #tpu.memory_space<vmem>>, vector<1x8x32xbf16>
    %89 = vector.shape_cast %88 : vector<1x8x32xbf16> to vector<8x32xbf16>
    %cst_72 = arith.constant dense<0.000000e+00> : vector<4x32xf32>
    %90 = tpu.matmul %87, %89, %cst_72 {dimension_numbers = #tpu.dot_dimension_numbers<[1], [0], [0], [1], [0, 0, 1, 1], [], []>} : vector<4x8xbf16>, vector<8x32xbf16>, vector<4x32xf32> -> vector<4x32xf32>
    %91 = arith.addf %48, %90 : vector<4x32xf32>
    %c0_73 = arith.constant 0 : index
    %c2_74 = arith.constant 2 : index
    %c0_75 = arith.constant 0 : index
    %c0_76 = arith.constant 0 : index
    %92 = vector.load %arg2[%c0_73, %c2_74, %c0_75, %c0_76] : memref<3x4x32x8xbf16, #tpu.memory_space<vmem>>, vector<1x1x32x8xbf16>
    %93 = vector.shape_cast %92 : vector<1x1x32x8xbf16> to vector<32x8xbf16>
    %cst_77 = arith.constant dense<0.000000e+00> : vector<4x8xf32>
    %94 = tpu.matmul %2, %93, %cst_77 {dimension_numbers = #tpu.dot_dimension_numbers<[1], [0], [0], [1], [0, 0, 1, 1], [], []>} : vector<4x32xbf16>, vector<32x8xbf16>, vector<4x8xf32> -> vector<4x8xf32>
    %c0_78 = arith.constant 0 : index
    %c2_79 = arith.constant 2 : index
    %c0_80 = arith.constant 0 : index
    %c0_81 = arith.constant 0 : index
    %95 = vector.load %arg3[%c0_78, %c2_79, %c0_80, %c0_81] : memref<3x4x1x8xf32, #tpu.memory_space<vmem>>, vector<1x1x1x8xf32>
    %96 = vector.shape_cast %95 : vector<1x1x1x8xf32> to vector<1x8xf32>
    %97 = vector.broadcast %96 : vector<1x8xf32> to vector<4x8xf32>
    %98 = arith.addf %94, %97 : vector<4x8xf32>
    %c1_82 = arith.constant 1 : index
    %c2_83 = arith.constant 2 : index
    %c0_84 = arith.constant 0 : index
    %c0_85 = arith.constant 0 : index
    %99 = vector.load %arg2[%c1_82, %c2_83, %c0_84, %c0_85] : memref<3x4x32x8xbf16, #tpu.memory_space<vmem>>, vector<1x1x32x8xbf16>
    %100 = vector.shape_cast %99 : vector<1x1x32x8xbf16> to vector<32x8xbf16>
    %cst_86 = arith.constant dense<0.000000e+00> : vector<4x8xf32>
    %101 = tpu.matmul %2, %100, %cst_86 {dimension_numbers = #tpu.dot_dimension_numbers<[1], [0], [0], [1], [0, 0, 1, 1], [], []>} : vector<4x32xbf16>, vector<32x8xbf16>, vector<4x8xf32> -> vector<4x8xf32>
    %c1_87 = arith.constant 1 : index
    %c2_88 = arith.constant 2 : index
    %c0_89 = arith.constant 0 : index
    %c0_90 = arith.constant 0 : index
    %102 = vector.load %arg3[%c1_87, %c2_88, %c0_89, %c0_90] : memref<3x4x1x8xf32, #tpu.memory_space<vmem>>, vector<1x1x1x8xf32>
    %103 = vector.shape_cast %102 : vector<1x1x1x8xf32> to vector<1x8xf32>
    %104 = vector.broadcast %103 : vector<1x8xf32> to vector<4x8xf32>
    %105 = arith.addf %101, %104 : vector<4x8xf32>
    %c2_91 = arith.constant 2 : index
    %c2_92 = arith.constant 2 : index
    %c0_93 = arith.constant 0 : index
    %c0_94 = arith.constant 0 : index
    %106 = vector.load %arg2[%c2_91, %c2_92, %c0_93, %c0_94] : memref<3x4x32x8xbf16, #tpu.memory_space<vmem>>, vector<1x1x32x8xbf16>
    %107 = vector.shape_cast %106 : vector<1x1x32x8xbf16> to vector<32x8xbf16>
    %cst_95 = arith.constant dense<0.000000e+00> : vector<4x8xf32>
    %108 = tpu.matmul %2, %107, %cst_95 {dimension_numbers = #tpu.dot_dimension_numbers<[1], [0], [0], [1], [0, 0, 1, 1], [], []>} : vector<4x32xbf16>, vector<32x8xbf16>, vector<4x8xf32> -> vector<4x8xf32>
    %c2_96 = arith.constant 2 : index
    %c2_97 = arith.constant 2 : index
    %c0_98 = arith.constant 0 : index
    %c0_99 = arith.constant 0 : index
    %109 = vector.load %arg3[%c2_96, %c2_97, %c0_98, %c0_99] : memref<3x4x1x8xf32, #tpu.memory_space<vmem>>, vector<1x1x1x8xf32>
    %110 = vector.shape_cast %109 : vector<1x1x1x8xf32> to vector<1x8xf32>
    %111 = vector.broadcast %110 : vector<1x8xf32> to vector<4x8xf32>
    %112 = arith.addf %108, %111 : vector<4x8xf32>
    %cst_100 = arith.constant 0.353553385 : f32
    %113 = vector.broadcast %cst_100 : f32 to vector<4x8xf32>
    %114 = arith.mulf %98, %113 : vector<4x8xf32>
    %115 = arith.truncf %114 : vector<4x8xf32> to vector<4x8xbf16>
    %116 = arith.truncf %105 : vector<4x8xf32> to vector<4x8xbf16>
    %cst_101 = arith.constant dense<0.000000e+00> : vector<4x4xf32>
    %117 = tpu.matmul %115, %116, %cst_101 {dimension_numbers = #tpu.dot_dimension_numbers<[1], [1], [0], [0], [0, 0, 1, 0], [], []>} : vector<4x8xbf16>, vector<4x8xbf16>, vector<4x4xf32> -> vector<4x4xf32>
    %cst_102 = arith.constant dense<0xFF800000> : vector<4xf32>
    %118 = vector.multi_reduction <maximumf>, %117, %cst_102 [1] : vector<4x4xf32> to vector<4xf32>
    %119 = vector.shape_cast %118 : vector<4xf32> to vector<4x1xf32>
    %120 = vector.broadcast %119 : vector<4x1xf32> to vector<4x4xf32>
    %121 = arith.subf %117, %120 : vector<4x4xf32>
    %122 = math.exp %121 : vector<4x4xf32>
    %cst_103 = arith.constant dense<0.000000e+00> : vector<4xf32>
    %123 = vector.multi_reduction <add>, %122, %cst_103 [1] : vector<4x4xf32> to vector<4xf32>
    %124 = vector.shape_cast %123 : vector<4xf32> to vector<4x1xf32>
    %125 = vector.broadcast %124 : vector<4x1xf32> to vector<4x4xf32>
    %126 = arith.divf %122, %125 : vector<4x4xf32>
    %127 = arith.truncf %126 : vector<4x4xf32> to vector<4x4xbf16>
    %128 = arith.truncf %112 : vector<4x8xf32> to vector<4x8xbf16>
    %cst_104 = arith.constant dense<0.000000e+00> : vector<4x8xf32>
    %129 = tpu.matmul %127, %128, %cst_104 {dimension_numbers = #tpu.dot_dimension_numbers<[1], [0], [0], [1], [0, 0, 1, 1], [], []>} : vector<4x4xbf16>, vector<4x8xbf16>, vector<4x8xf32> -> vector<4x8xf32>
    %130 = arith.truncf %129 : vector<4x8xf32> to vector<4x8xbf16>
    %c2_105 = arith.constant 2 : index
    %c0_106 = arith.constant 0 : index
    %c0_107 = arith.constant 0 : index
    %131 = vector.load %arg4[%c2_105, %c0_106, %c0_107] : memref<4x8x32xbf16, #tpu.memory_space<vmem>>, vector<1x8x32xbf16>
    %132 = vector.shape_cast %131 : vector<1x8x32xbf16> to vector<8x32xbf16>
    %cst_108 = arith.constant dense<0.000000e+00> : vector<4x32xf32>
    %133 = tpu.matmul %130, %132, %cst_108 {dimension_numbers = #tpu.dot_dimension_numbers<[1], [0], [0], [1], [0, 0, 1, 1], [], []>} : vector<4x8xbf16>, vector<8x32xbf16>, vector<4x32xf32> -> vector<4x32xf32>
    %134 = arith.addf %91, %133 : vector<4x32xf32>
    %c0_109 = arith.constant 0 : index
    %c3 = arith.constant 3 : index
    %c0_110 = arith.constant 0 : index
    %c0_111 = arith.constant 0 : index
    %135 = vector.load %arg2[%c0_109, %c3, %c0_110, %c0_111] : memref<3x4x32x8xbf16, #tpu.memory_space<vmem>>, vector<1x1x32x8xbf16>
    %136 = vector.shape_cast %135 : vector<1x1x32x8xbf16> to vector<32x8xbf16>
    %cst_112 = arith.constant dense<0.000000e+00> : vector<4x8xf32>
    %137 = tpu.matmul %2, %136, %cst_112 {dimension_numbers = #tpu.dot_dimension_numbers<[1], [0], [0], [1], [0, 0, 1, 1], [], []>} : vector<4x32xbf16>, vector<32x8xbf16>, vector<4x8xf32> -> vector<4x8xf32>
    %c0_113 = arith.constant 0 : index
    %c3_114 = arith.constant 3 : index
    %c0_115 = arith.constant 0 : index
    %c0_116 = arith.constant 0 : index
    %138 = vector.load %arg3[%c0_113, %c3_114, %c0_115, %c0_116] : memref<3x4x1x8xf32, #tpu.memory_space<vmem>>, vector<1x1x1x8xf32>
    %139 = vector.shape_cast %138 : vector<1x1x1x8xf32> to vector<1x8xf32>
    %140 = vector.broadcast %139 : vector<1x8xf32> to vector<4x8xf32>
    %141 = arith.addf %137, %140 : vector<4x8xf32>
    %c1_117 = arith.constant 1 : index
    %c3_118 = arith.constant 3 : index
    %c0_119 = arith.constant 0 : index
    %c0_120 = arith.constant 0 : index
    %142 = vector.load %arg2[%c1_117, %c3_118, %c0_119, %c0_120] : memref<3x4x32x8xbf16, #tpu.memory_space<vmem>>, vector<1x1x32x8xbf16>
    %143 = vector.shape_cast %142 : vector<1x1x32x8xbf16> to vector<32x8xbf16>
    %cst_121 = arith.constant dense<0.000000e+00> : vector<4x8xf32>
    %144 = tpu.matmul %2, %143, %cst_121 {dimension_numbers = #tpu.dot_dimension_numbers<[1], [0], [0], [1], [0, 0, 1, 1], [], []>} : vector<4x32xbf16>, vector<32x8xbf16>, vector<4x8xf32> -> vector<4x8xf32>
    %c1_122 = arith.constant 1 : index
    %c3_123 = arith.constant 3 : index
    %c0_124 = arith.constant 0 : index
    %c0_125 = arith.constant 0 : index
    %145 = vector.load %arg3[%c1_122, %c3_123, %c0_124, %c0_125] : memref<3x4x1x8xf32, #tpu.memory_space<vmem>>, vector<1x1x1x8xf32>
    %146 = vector.shape_cast %145 : vector<1x1x1x8xf32> to vector<1x8xf32>
    %147 = vector.broadcast %146 : vector<1x8xf32> to vector<4x8xf32>
    %148 = arith.addf %144, %147 : vector<4x8xf32>
    %c2_126 = arith.constant 2 : index
    %c3_127 = arith.constant 3 : index
    %c0_128 = arith.constant 0 : index
    %c0_129 = arith.constant 0 : index
    %149 = vector.load %arg2[%c2_126, %c3_127, %c0_128, %c0_129] : memref<3x4x32x8xbf16, #tpu.memory_space<vmem>>, vector<1x1x32x8xbf16>
    %150 = vector.shape_cast %149 : vector<1x1x32x8xbf16> to vector<32x8xbf16>
    %cst_130 = arith.constant dense<0.000000e+00> : vector<4x8xf32>
    %151 = tpu.matmul %2, %150, %cst_130 {dimension_numbers = #tpu.dot_dimension_numbers<[1], [0], [0], [1], [0, 0, 1, 1], [], []>} : vector<4x32xbf16>, vector<32x8xbf16>, vector<4x8xf32> -> vector<4x8xf32>
    %c2_131 = arith.constant 2 : index
    %c3_132 = arith.constant 3 : index
    %c0_133 = arith.constant 0 : index
    %c0_134 = arith.constant 0 : index
    %152 = vector.load %arg3[%c2_131, %c3_132, %c0_133, %c0_134] : memref<3x4x1x8xf32, #tpu.memory_space<vmem>>, vector<1x1x1x8xf32>
    %153 = vector.shape_cast %152 : vector<1x1x1x8xf32> to vector<1x8xf32>
    %154 = vector.broadcast %153 : vector<1x8xf32> to vector<4x8xf32>
    %155 = arith.addf %151, %154 : vector<4x8xf32>
    %cst_135 = arith.constant 0.353553385 : f32
    %156 = vector.broadcast %cst_135 : f32 to vector<4x8xf32>
    %157 = arith.mulf %141, %156 : vector<4x8xf32>
    %158 = arith.truncf %157 : vector<4x8xf32> to vector<4x8xbf16>
    %159 = arith.truncf %148 : vector<4x8xf32> to vector<4x8xbf16>
    %cst_136 = arith.constant dense<0.000000e+00> : vector<4x4xf32>
    %160 = tpu.matmul %158, %159, %cst_136 {dimension_numbers = #tpu.dot_dimension_numbers<[1], [1], [0], [0], [0, 0, 1, 0], [], []>} : vector<4x8xbf16>, vector<4x8xbf16>, vector<4x4xf32> -> vector<4x4xf32>
    %cst_137 = arith.constant dense<0xFF800000> : vector<4xf32>
    %161 = vector.multi_reduction <maximumf>, %160, %cst_137 [1] : vector<4x4xf32> to vector<4xf32>
    %162 = vector.shape_cast %161 : vector<4xf32> to vector<4x1xf32>
    %163 = vector.broadcast %162 : vector<4x1xf32> to vector<4x4xf32>
    %164 = arith.subf %160, %163 : vector<4x4xf32>
    %165 = math.exp %164 : vector<4x4xf32>
    %cst_138 = arith.constant dense<0.000000e+00> : vector<4xf32>
    %166 = vector.multi_reduction <add>, %165, %cst_138 [1] : vector<4x4xf32> to vector<4xf32>
    %167 = vector.shape_cast %166 : vector<4xf32> to vector<4x1xf32>
    %168 = vector.broadcast %167 : vector<4x1xf32> to vector<4x4xf32>
    %169 = arith.divf %165, %168 : vector<4x4xf32>
    %170 = arith.truncf %169 : vector<4x4xf32> to vector<4x4xbf16>
    %171 = arith.truncf %155 : vector<4x8xf32> to vector<4x8xbf16>
    %cst_139 = arith.constant dense<0.000000e+00> : vector<4x8xf32>
    %172 = tpu.matmul %170, %171, %cst_139 {dimension_numbers = #tpu.dot_dimension_numbers<[1], [0], [0], [1], [0, 0, 1, 1], [], []>} : vector<4x4xbf16>, vector<4x8xbf16>, vector<4x8xf32> -> vector<4x8xf32>
    %173 = arith.truncf %172 : vector<4x8xf32> to vector<4x8xbf16>
    %c3_140 = arith.constant 3 : index
    %c0_141 = arith.constant 0 : index
    %c0_142 = arith.constant 0 : index
    %174 = vector.load %arg4[%c3_140, %c0_141, %c0_142] : memref<4x8x32xbf16, #tpu.memory_space<vmem>>, vector<1x8x32xbf16>
    %175 = vector.shape_cast %174 : vector<1x8x32xbf16> to vector<8x32xbf16>
    %cst_143 = arith.constant dense<0.000000e+00> : vector<4x32xf32>
    %176 = tpu.matmul %173, %175, %cst_143 {dimension_numbers = #tpu.dot_dimension_numbers<[1], [0], [0], [1], [0, 0, 1, 1], [], []>} : vector<4x8xbf16>, vector<8x32xbf16>, vector<4x32xf32> -> vector<4x32xf32>
    %177 = arith.addf %134, %176 : vector<4x32xf32>
    %cst_144 = arith.constant dense<0.000000e+00> : vector<4xf32>
    %178 = vector.multi_reduction <add>, %177, %cst_144 [1] : vector<4x32xf32> to vector<4xf32>
    %179 = vector.shape_cast %178 : vector<4xf32> to vector<4x1xf32>
    %cst_145 = arith.constant 3.200000e+01 : f32
    %180 = vector.broadcast %cst_145 : f32 to vector<4x1xf32>
    %181 = arith.divf %179, %180 : vector<4x1xf32>
    %182 = vector.broadcast %181 : vector<4x1xf32> to vector<4x32xf32>
    %183 = arith.subf %177, %182 : vector<4x32xf32>
    %184 = vector.broadcast %181 : vector<4x1xf32> to vector<4x32xf32>
    %185 = arith.subf %177, %184 : vector<4x32xf32>
    %186 = arith.mulf %183, %185 : vector<4x32xf32>
    %cst_146 = arith.constant dense<0.000000e+00> : vector<4xf32>
    %187 = vector.multi_reduction <add>, %186, %cst_146 [1] : vector<4x32xf32> to vector<4xf32>
    %188 = vector.shape_cast %187 : vector<4xf32> to vector<4x1xf32>
    %cst_147 = arith.constant 3.200000e+01 : f32
    %189 = vector.broadcast %cst_147 : f32 to vector<4x1xf32>
    %190 = arith.divf %188, %189 : vector<4x1xf32>
    %191 = vector.broadcast %181 : vector<4x1xf32> to vector<4x32xf32>
    %192 = arith.subf %177, %191 : vector<4x32xf32>
    %cst_148 = arith.constant 9.99999974E-6 : f32
    %193 = vector.broadcast %cst_148 : f32 to vector<4x1xf32>
    %194 = arith.addf %190, %193 : vector<4x1xf32>
    %195 = math.rsqrt %194 : vector<4x1xf32>
    %196 = vector.broadcast %195 : vector<4x1xf32> to vector<4x32xf32>
    %197 = arith.mulf %192, %196 : vector<4x32xf32>
    %c0_149 = arith.constant 0 : index
    %c0_150 = arith.constant 0 : index
    %198 = vector.load %arg6[%c0_149, %c0_150] : memref<1x32xf32, #tpu.memory_space<vmem>>, vector<1x32xf32>
    %199 = vector.broadcast %198 : vector<1x32xf32> to vector<4x32xf32>
    %200 = arith.mulf %197, %199 : vector<4x32xf32>
    %c0_151 = arith.constant 0 : index
    %c0_152 = arith.constant 0 : index
    %201 = vector.load %arg7[%c0_151, %c0_152] : memref<1x32xf32, #tpu.memory_space<vmem>>, vector<1x32xf32>
    %202 = vector.broadcast %201 : vector<1x32xf32> to vector<4x32xf32>
    %203 = arith.addf %200, %202 : vector<4x32xf32>
    %204 = arith.truncf %203 : vector<4x32xf32> to vector<4x32xbf16>
    %c0_153 = arith.constant 0 : index
    %c0_154 = arith.constant 0 : index
    %205 = vector.load %arg8[%c0_153, %c0_154] : memref<32x64xbf16, #tpu.memory_space<vmem>>, vector<32x64xbf16>
    %cst_155 = arith.constant dense<0.000000e+00> : vector<4x64xf32>
    %206 = tpu.matmul %204, %205, %cst_155 {dimension_numbers = #tpu.dot_dimension_numbers<[1], [0], [0], [1], [0, 0, 1, 1], [], []>} : vector<4x32xbf16>, vector<32x64xbf16>, vector<4x64xf32> -> vector<4x64xf32>
    %c0_156 = arith.constant 0 : index
    %c0_157 = arith.constant 0 : index
    %207 = vector.load %arg9[%c0_156, %c0_157] : memref<1x64xf32, #tpu.memory_space<vmem>>, vector<1x64xf32>
    %208 = vector.broadcast %207 : vector<1x64xf32> to vector<4x64xf32>
    %209 = arith.addf %206, %208 : vector<4x64xf32>
    %cst_158 = arith.constant 5.000000e-01 : f32
    %210 = vector.broadcast %cst_158 : f32 to vector<4x64xf32>
    %211 = arith.mulf %210, %209 : vector<4x64xf32>
    %cst_159 = arith.constant 0.707106769 : f32
    %212 = vector.broadcast %cst_159 : f32 to vector<4x64xf32>
    %213 = arith.mulf %209, %212 : vector<4x64xf32>
    %214 = math.erf %213 : vector<4x64xf32>
    %cst_160 = arith.constant 1.000000e+00 : f32
    %215 = vector.broadcast %cst_160 : f32 to vector<4x64xf32>
    %216 = arith.addf %215, %214 : vector<4x64xf32>
    %217 = arith.mulf %211, %216 : vector<4x64xf32>
    %218 = arith.truncf %217 : vector<4x64xf32> to vector<4x64xbf16>
    %c0_161 = arith.constant 0 : index
    %c0_162 = arith.constant 0 : index
    %219 = vector.load %arg10[%c0_161, %c0_162] : memref<64x32xbf16, #tpu.memory_space<vmem>>, vector<64x32xbf16>
    %cst_163 = arith.constant dense<0.000000e+00> : vector<4x32xf32>
    %220 = tpu.matmul %218, %219, %cst_163 {dimension_numbers = #tpu.dot_dimension_numbers<[1], [0], [0], [1], [0, 0, 1, 1], [], []>} : vector<4x64xbf16>, vector<64x32xbf16>, vector<4x32xf32> -> vector<4x32xf32>
    %c0_164 = arith.constant 0 : index
    %c0_165 = arith.constant 0 : index
    %221 = vector.load %arg11[%c0_164, %c0_165] : memref<1x32xf32, #tpu.memory_space<vmem>>, vector<1x32xf32>
    %222 = vector.broadcast %221 : vector<1x32xf32> to vector<4x32xf32>
    %223 = arith.addf %220, %222 : vector<4x32xf32>
    %224 = arith.addf %223, %203 : vector<4x32xf32>
    %cst_166 = arith.constant dense<0.000000e+00> : vector<4xf32>
    %225 = vector.multi_reduction <add>, %224, %cst_166 [1] : vector<4x32xf32> to vector<4xf32>
    %226 = vector.shape_cast %225 : vector<4xf32> to vector<4x1xf32>
    %cst_167 = arith.constant 3.200000e+01 : f32
    %227 = vector.broadcast %cst_167 : f32 to vector<4x1xf32>
    %228 = arith.divf %226, %227 : vector<4x1xf32>
    %229 = vector.broadcast %228 : vector<4x1xf32> to vector<4x32xf32>
    %230 = arith.subf %224, %229 : vector<4x32xf32>
    %231 = vector.broadcast %228 : vector<4x1xf32> to vector<4x32xf32>
    %232 = arith.subf %224, %231 : vector<4x32xf32>
    %233 = arith.mulf %230, %232 : vector<4x32xf32>
    %cst_168 = arith.constant dense<0.000000e+00> : vector<4xf32>
    %234 = vector.multi_reduction <add>, %233, %cst_168 [1] : vector<4x32xf32> to vector<4xf32>
    %235 = vector.shape_cast %234 : vector<4xf32> to vector<4x1xf32>
    %cst_169 = arith.constant 3.200000e+01 : f32
    %236 = vector.broadcast %cst_169 : f32 to vector<4x1xf32>
    %237 = arith.divf %235, %236 : vector<4x1xf32>
    %238 = vector.broadcast %228 : vector<4x1xf32> to vector<4x32xf32>
    %239 = arith.subf %224, %238 : vector<4x32xf32>
    %cst_170 = arith.constant 9.99999974E-6 : f32
    %240 = vector.broadcast %cst_170 : f32 to vector<4x1xf32>
    %241 = arith.addf %237, %240 : vector<4x1xf32>
    %242 = math.rsqrt %241 : vector<4x1xf32>
    %243 = vector.broadcast %242 : vector<4x1xf32> to vector<4x32xf32>
    %244 = arith.mulf %239, %243 : vector<4x32xf32>
    %c0_171 = arith.constant 0 : index
    %c0_172 = arith.constant 0 : index
    %245 = vector.load %arg12[%c0_171, %c0_172] : memref<1x32xf32, #tpu.memory_space<vmem>>, vector<1x32xf32>
    %246 = vector.broadcast %245 : vector<1x32xf32> to vector<4x32xf32>
    %247 = arith.mulf %244, %246 : vector<4x32xf32>
    %c0_173 = arith.constant 0 : index
    %c0_174 = arith.constant 0 : index
    %248 = vector.load %arg13[%c0_173, %c0_174] : memref<1x32xf32, #tpu.memory_space<vmem>>, vector<1x32xf32>
    %249 = vector.broadcast %248 : vector<1x32xf32> to vector<4x32xf32>
    %250 = arith.addf %247, %249 : vector<4x32xf32>
    %c0_175 = arith.constant 0 : index
    %c0_176 = arith.constant 0 : index
    %c0_177 = arith.constant 0 : index
    %251 = vector.load %arg14[%c0_175, %c0_176, %c0_177] : memref<1x4x32xf32, #tpu.memory_space<vmem>>, vector<1x4x32xf32>
    %252 = vector.shape_cast %251 : vector<1x4x32xf32> to vector<4x32xf32>
    %253 = vector.shape_cast %250 : vector<4x32xf32> to vector<1x4x32xf32>
    tpu.vector_store %arg14[%c0_175, %c0_176, %c0_177], %253 {strides = array<i32>} : memref<1x4x32xf32, #tpu.memory_space<vmem>>, vector<1x4x32xf32>,
    return
  }
  func.func @transform_0(%arg0: i32) -> (i32, i32, i32) {
    %c0_i32 = arith.constant 0 : i32
    %c0_i32_0 = arith.constant 0 : i32
    %c0_i32_1 = arith.constant 0 : i32
    return %arg0, %c0_i32, %c0_i32_0 : i32, i32, i32
  }
  func.func @transform_1(%arg0: i32) -> (i32, i32, i32, i32) {
    %c0_i32 = arith.constant 0 : i32
    %c0_i32_0 = arith.constant 0 : i32
    %c0_i32_1 = arith.constant 0 : i32
    %c0_i32_2 = arith.constant 0 : i32
    %c0_i32_3 = arith.constant 0 : i32
    return %c0_i32, %c0_i32_0, %c0_i32_1, %c0_i32_2 : i32, i32, i32, i32
  }
  func.func @transform_2(%arg0: i32) -> (i32, i32, i32, i32) {
    %c0_i32 = arith.constant 0 : i32
    %c0_i32_0 = arith.constant 0 : i32
    %c0_i32_1 = arith.constant 0 : i32
    %c0_i32_2 = arith.constant 0 : i32
    %c0_i32_3 = arith.constant 0 : i32
    return %c0_i32, %c0_i32_0, %c0_i32_1, %c0_i32_2 : i32, i32, i32, i32
  }
  func.func @transform_3(%arg0: i32) -> (i32, i32, i32) {
    %c0_i32 = arith.constant 0 : i32
    %c0_i32_0 = arith.constant 0 : i32
    %c0_i32_1 = arith.constant 0 : i32
    %c0_i32_2 = arith.constant 0 : i32
    return %c0_i32, %c0_i32_0, %c0_i32_1 : i32, i32, i32
  }
  func.func @transform_4(%arg0: i32) -> (i32, i32) {
    %c0_i32 = arith.constant 0 : i32
    %c0_i32_0 = arith.constant 0 : i32
    %c0_i32_1 = arith.constant 0 : i32
    return %c0_i32, %c0_i32_0 : i32, i32
  }
  func.func @transform_5(%arg0: i32) -> (i32, i32) {
    %c0_i32 = arith.constant 0 : i32
    %c0_i32_0 = arith.constant 0 : i32
    %c0_i32_1 = arith.constant 0 : i32
    return %c0_i32, %c0_i32_0 : i32, i32
  }
  func.func @transform_6(%arg0: i32) -> (i32, i32) {
    %c0_i32 = arith.constant 0 : i32
    %c0_i32_0 = arith.constant 0 : i32
    %c0_i32_1 = arith.constant 0 : i32
    return %c0_i32, %c0_i32_0 : i32, i32
  }
  func.func @transform_7(%arg0: i32) -> (i32, i32) {
    %c0_i32 = arith.constant 0 : i32
    %c0_i32_0 = arith.constant 0 : i32
    %c0_i32_1 = arith.constant 0 : i32
    return %c0_i32, %c0_i32_0 : i32, i32
  }
  func.func @transform_8(%arg0: i32) -> (i32, i32) {
    %c0_i32 = arith.constant 0 : i32
    %c0_i32_0 = arith.constant 0 : i32
    %c0_i32_1 = arith.constant 0 : i32
    return %c0_i32, %c0_i32_0 : i32, i32
  }
  func.func @transform_9(%arg0: i32) -> (i32, i32) {
    %c0_i32 = arith.constant 0 : i32
    %c0_i32_0 = arith.constant 0 : i32
    %c0_i32_1 = arith.constant 0 : i32
    return %c0_i32, %c0_i32_0 : i32, i32
  }
  func.func @transform_10(%arg0: i32) -> (i32, i32) {
    %c0_i32 = arith.constant 0 : i32
    %c0_i32_0 = arith.constant 0 : i32
    %c0_i32_1 = arith.constant 0 : i32
    return %c0_i32, %c0_i32_0 : i32, i32
  }
  func.func @transform_11(%arg0: i32) -> (i32, i32) {
    %c0_i32 = arith.constant 0 : i32
    %c0_i32_0 = arith.constant 0 : i32
    %c0_i32_1 = arith.constant 0 : i32
    return %c0_i32, %c0_i32_0 : i32, i32
  }
  func.func @transform_12(%arg0: i32) -> (i32, i32) {
    %c0_i32 = arith.constant 0 : i32
    %c0_i32_0 = arith.constant 0 : i32
    %c0_i32_1 = arith.constant 0 : i32
    return %c0_i32, %c0_i32_0 : i32, i32
  }
  func.func @transform_13(%arg0: i32) -> (i32, i32, i32) {
    %c0_i32 = arith.constant 0 : i32
    %c0_i32_0 = arith.constant 0 : i32
    %c0_i32_1 = arith.constant 0 : i32
    return %arg0, %c0_i32, %c0_i32_0 : i32, i32, i32
  }
}

module attributes {stable_mosaic.version = 11 : i64} {
  func.func @_head_kernel(%arg0: i32, %arg1: memref<1x4x32xf32, #tpu.memory_space<vmem>>, %arg2: memref<1x32xf32, #tpu.memory_space<vmem>>, %arg3: memref<1x32xf32, #tpu.memory_space<vmem>>, %arg4: memref<32x10xbf16, #tpu.memory_space<vmem>>, %arg5: memref<1x10xf32, #tpu.memory_space<vmem>>, %arg6: memref<1x1x10xf32, #tpu.memory_space<vmem>>) attributes {dimension_semantics = [#tpu.dimension_semantics<parallel>], iteration_bounds = array<i64: 2>, scalar_prefetch = 0 : i64, scratch_operands = 0 : i64, tpu.core_type = #tpu.core_type<tc>, window_params = [{transform_indices = @transform_0, window_bounds = array<i64: 1, 4, 32>}, {pipeline_mode = #tpu.pipeline_mode<synchronous>, transform_indices = @transform_1, window_bounds = array<i64: 1, 32>}, {pipeline_mode = #tpu.pipeline_mode<synchronous>, transform_indices = @transform_2, window_bounds = array<i64: 1, 32>}, {pipeline_mode = #tpu.pipeline_mode<synchronous>, transform_indices = @transform_3, window_bounds = array<i64: 32, 10>}, {pipeline_mode = #tpu.pipeline_mode<synchronous>, transform_indices = @transform_4, window_bounds = array<i64: 1, 10>}, {transform_indices = @transform_5, window_bounds = array<i64: 1, 1, 10>}]} {
    %c0 = arith.constant 0 : index
    %c0_0 = arith.constant 0 : index
    %c0_1 = arith.constant 0 : index
    %0 = vector.load %arg1[%c0, %c0_0, %c0_1] : memref<1x4x32xf32, #tpu.memory_space<vmem>>, vector<1x4x32xf32>
    %1 = vector.shape_cast %0 : vector<1x4x32xf32> to vector<4x32xf32>
    %cst = arith.constant dense<0.000000e+00> : vector<4xf32>
    %2 = vector.multi_reduction <add>, %1, %cst [1] : vector<4x32xf32> to vector<4xf32>
    %3 = vector.shape_cast %2 : vector<4xf32> to vector<4x1xf32>
    %cst_2 = arith.constant 3.200000e+01 : f32
    %4 = vector.broadcast %cst_2 : f32 to vector<4x1xf32>
    %5 = arith.divf %3, %4 : vector<4x1xf32>
    %6 = vector.broadcast %5 : vector<4x1xf32> to vector<4x32xf32>
    %7 = arith.subf %1, %6 : vector<4x32xf32>
    %8 = vector.broadcast %5 : vector<4x1xf32> to vector<4x32xf32>
    %9 = arith.subf %1, %8 : vector<4x32xf32>
    %10 = arith.mulf %7, %9 : vector<4x32xf32>
    %cst_3 = arith.constant dense<0.000000e+00> : vector<4xf32>
    %11 = vector.multi_reduction <add>, %10, %cst_3 [1] : vector<4x32xf32> to vector<4xf32>
    %12 = vector.shape_cast %11 : vector<4xf32> to vector<4x1xf32>
    %cst_4 = arith.constant 3.200000e+01 : f32
    %13 = vector.broadcast %cst_4 : f32 to vector<4x1xf32>
    %14 = arith.divf %12, %13 : vector<4x1xf32>
    %15 = vector.broadcast %5 : vector<4x1xf32> to vector<4x32xf32>
    %16 = arith.subf %1, %15 : vector<4x32xf32>
    %cst_5 = arith.constant 9.99999974E-6 : f32
    %17 = vector.broadcast %cst_5 : f32 to vector<4x1xf32>
    %18 = arith.addf %14, %17 : vector<4x1xf32>
    %19 = math.rsqrt %18 : vector<4x1xf32>
    %20 = vector.broadcast %19 : vector<4x1xf32> to vector<4x32xf32>
    %21 = arith.mulf %16, %20 : vector<4x32xf32>
    %c0_6 = arith.constant 0 : index
    %c0_7 = arith.constant 0 : index
    %22 = vector.load %arg2[%c0_6, %c0_7] : memref<1x32xf32, #tpu.memory_space<vmem>>, vector<1x32xf32>
    %23 = vector.broadcast %22 : vector<1x32xf32> to vector<4x32xf32>
    %24 = arith.mulf %21, %23 : vector<4x32xf32>
    %c0_8 = arith.constant 0 : index
    %c0_9 = arith.constant 0 : index
    %25 = vector.load %arg3[%c0_8, %c0_9] : memref<1x32xf32, #tpu.memory_space<vmem>>, vector<1x32xf32>
    %26 = vector.broadcast %25 : vector<1x32xf32> to vector<4x32xf32>
    %27 = arith.addf %24, %26 : vector<4x32xf32>
    %28 = arith.truncf %27 : vector<4x32xf32> to vector<4x32xbf16>
    %c0_10 = arith.constant 0 : index
    %c0_11 = arith.constant 0 : index
    %29 = vector.load %arg4[%c0_10, %c0_11] : memref<32x10xbf16, #tpu.memory_space<vmem>>, vector<32x10xbf16>
    %cst_12 = arith.constant dense<0.000000e+00> : vector<4x10xf32>
    %30 = tpu.matmul %28, %29, %cst_12 {dimension_numbers = #tpu.dot_dimension_numbers<[1], [0], [0], [1], [0, 0, 1, 1], [], []>} : vector<4x32xbf16>, vector<32x10xbf16>, vector<4x10xf32> -> vector<4x10xf32>
    %cst_13 = arith.constant dense<0.000000e+00> : vector<10xf32>
    %31 = vector.multi_reduction <add>, %30, %cst_13 [0] : vector<4x10xf32> to vector<10xf32>
    %32 = vector.shape_cast %31 : vector<10xf32> to vector<1x10xf32>
    %cst_14 = arith.constant 4.000000e+00 : f32
    %33 = vector.broadcast %cst_14 : f32 to vector<1x10xf32>
    %34 = arith.divf %32, %33 : vector<1x10xf32>
    %c0_15 = arith.constant 0 : index
    %c0_16 = arith.constant 0 : index
    %35 = vector.load %arg5[%c0_15, %c0_16] : memref<1x10xf32, #tpu.memory_space<vmem>>, vector<1x10xf32>
    %36 = arith.addf %34, %35 : vector<1x10xf32>
    %c0_17 = arith.constant 0 : index
    %c0_18 = arith.constant 0 : index
    %c0_19 = arith.constant 0 : index
    %37 = vector.load %arg6[%c0_17, %c0_18, %c0_19] : memref<1x1x10xf32, #tpu.memory_space<vmem>>, vector<1x1x10xf32>
    %38 = vector.shape_cast %37 : vector<1x1x10xf32> to vector<1x10xf32>
    %39 = vector.shape_cast %36 : vector<1x10xf32> to vector<1x1x10xf32>
    tpu.vector_store %arg6[%c0_17, %c0_18, %c0_19], %39 {strides = array<i32>} : memref<1x1x10xf32, #tpu.memory_space<vmem>>, vector<1x1x10xf32>,
    return
  }
  func.func @transform_0(%arg0: i32) -> (i32, i32, i32) {
    %c0_i32 = arith.constant 0 : i32
    %c0_i32_0 = arith.constant 0 : i32
    %c0_i32_1 = arith.constant 0 : i32
    return %arg0, %c0_i32, %c0_i32_0 : i32, i32, i32
  }
  func.func @transform_1(%arg0: i32) -> (i32, i32) {
    %c0_i32 = arith.constant 0 : i32
    %c0_i32_0 = arith.constant 0 : i32
    %c0_i32_1 = arith.constant 0 : i32
    return %c0_i32, %c0_i32_0 : i32, i32
  }
  func.func @transform_2(%arg0: i32) -> (i32, i32) {
    %c0_i32 = arith.constant 0 : i32
    %c0_i32_0 = arith.constant 0 : i32
    %c0_i32_1 = arith.constant 0 : i32
    return %c0_i32, %c0_i32_0 : i32, i32
  }
  func.func @transform_3(%arg0: i32) -> (i32, i32) {
    %c0_i32 = arith.constant 0 : i32
    %c0_i32_0 = arith.constant 0 : i32
    %c0_i32_1 = arith.constant 0 : i32
    return %c0_i32, %c0_i32_0 : i32, i32
  }
  func.func @transform_4(%arg0: i32) -> (i32, i32) {
    %c0_i32 = arith.constant 0 : i32
    %c0_i32_0 = arith.constant 0 : i32
    %c0_i32_1 = arith.constant 0 : i32
    return %c0_i32, %c0_i32_0 : i32, i32
  }
  func.func @transform_5(%arg0: i32) -> (i32, i32, i32) {
    %c0_i32 = arith.constant 0 : i32
    %c0_i32_0 = arith.constant 0 : i32
    %c0_i32_1 = arith.constant 0 : i32
    return %arg0, %c0_i32, %c0_i32_0 : i32, i32, i32
  }
}

</mosaic_0001>

<llo_original>
// kernel: transformer_forward.7
$region0: #{transformer_forward.7}
  #allocation0 [shape = 'u32[]', space=smem, size = 0x4, offset = 0x4, fixed_abs, tag = 'smem constant byte address 0x4 - core index']
  #allocation1 [shape = 'u32[144,128]{1,0:T(1,128)}', space=vmem, size = 0x12000, scoped, tag = 'internal scratch']
  %s0 = inlined_call_operand.vmem [shape: f32[2,4,32], index: 0, kind: input, shape index: {}]
  %s1 = inlined_call_operand.vmem [shape: f32[1,32], index: 1, kind: input, shape index: {}]
  %s2 = inlined_call_operand.vmem [shape: f32[1,32], index: 2, kind: input, shape index: {}]
  %s3 = inlined_call_operand.vmem [shape: bf16[32,10], index: 3, kind: input, shape index: {}]
  %s4 = inlined_call_operand.vmem [shape: f32[1,10], index: 4, kind: input, shape index: {}]
  %s5 = inlined_call_operand.hbm [shape: f32[2,1,10], index: 5, kind: output, shape index: {}]
  %s6 = sld [smem:[#allocation0]]
  $region53: #{transformer_forward.7} parent=0
    _
  %s8 = ssub.s32 1, %s6
  %s9 = scalar_select 0, %s8, %s6
  $region1: #{transformer_forward.7} parent=0
    #allocation2 [shape = 'u8[1024]{0}', space=vmem, size = 0x400, scoped, tag = 'output window, operand 0']
    #allocation3 [shape = 's32[2]{0}', space=sflag, size = 0x8, scoped, tag = 'scoped memory for transformer_forward.7']
    %10 = vsyncpa [#allocation3], 0
    %s11 = scalar_lea.sflag [#allocation3], 1
    %12 = vsyncpa %s11, 0
    loop: start=0, step=1, limit=4
    $region2: #{transformer_forward.7} parent=1 // loop_pre_header
      _
    $region3: #{transformer_forward.7} parent=1 // loop_header
      %s14 = sphi 0, %s18
      %p15 = scmp.ge.s32.totalorder %s14, 4
      %s24 = sphi 0, %s26
      %s27 = sphi 0, %s24
      %s28 = sphi 0, %s27
      %s44 = sphi 0, %s28
      %s48 = sphi 0, %s48
      %s50 = sphi 0, %s48
      %s51 = sphi 0, %s50
      %s65 = sphi 0, %s51
      %s69 = sphi 0, %s69
      %s71 = sphi 0, %s69
      %s72 = sphi 0, %s71
      %s86 = sphi 0, %s72
      %s90 = sphi 0, %s90
      %s92 = sphi 0, %s90
      %s93 = sphi 0, %s92
      %s107 = sphi 0, %s93
      %s111 = sphi 0, %s111
      %s113 = sphi 0, %s111
      %s114 = sphi 0, %s113
      %s128 = sphi 0, %s114
      %s134 = sphi 0, %s136
      %s137 = sphi 0, %s134
      %s138 = sphi 0, %s137
      %s154 = sphi 0, %s138
    $region4: #{transformer_forward.7} parent=1 // loop_header_branch
      %17 = sbr.rel (%p15) target = $region8
    $region5: #{transformer_forward.7} parent=1 // loop_body
      %s19 = ssub.s32 %s14, 1
      %s20 = ssub.s32 %s14, 2
      %s21 = sadd.s32 %s14, 1
      %s22 = ssub.s32 %s14, %s21
      %p23 = scmp.eq.s32.totalorder %s22, 0
      %s25 = sadd.s32 %s24, 1
      %s26 = scalar_select %p23, %s24, %s25
      %p29 = pneg %p23
      %p30 = scmp.eq.s32.totalorder %s14, 1
      %p31 = por %p29, %p30
      %p32 = scmp.ne.s32.totalorder %s24, %s27
      %p33 = scmp.eq.s32.totalorder %s14, 0
      %p34 = por %p32, %p33
      %p35 = scmp.ne.s32.totalorder %s24, %s27
      %p36 = scmp.eq.s32.totalorder %s19, 1
      %p37 = por %p35, %p36
      %p38 = scmp.ne.s32.totalorder %s27, %s28
      %p39 = scmp.eq.s32.totalorder %s19, 0
      %p40 = por %p38, %p39
      %p41 = scmp.ne.s32.totalorder %s27, %s28
      %p42 = scmp.eq.s32.totalorder %s20, 1
      %p43 = por %p41, %p42
      %p45 = scmp.ne.s32.totalorder %s28, %s44
      %p46 = scmp.eq.s32.totalorder %s20, 0
      %p47 = por %p45, %p46
      %s49 = sadd.s32 %s48, 1
      %p52 = scmp.eq.s32.totalorder %s14, 1
      %p53 = scmp.ne.s32.totalorder %s48, %s50
      %p54 = scmp.eq.s32.totalorder %s14, 0
      %p55 = por %p53, %p54
      %p56 = scmp.ne.s32.totalorder %s48, %s50
      %p57 = scmp.eq.s32.totalorder %s19, 1
      %p58 = por %p56, %p57
      %p59 = scmp.ne.s32.totalorder %s50, %s51
      %p60 = scmp.eq.s32.totalorder %s19, 0
      %p61 = por %p59, %p60
      %p62 = scmp.ne.s32.totalorder %s50, %s51
      %p63 = scmp.eq.s32.totalorder %s20, 1
      %p64 = por %p62, %p63
      %p66 = scmp.ne.s32.totalorder %s51, %s65
      %p67 = scmp.eq.s32.totalorder %s20, 0
      %p68 = por %p66, %p67
      %s70 = sadd.s32 %s69, 1
      %p73 = scmp.eq.s32.totalorder %s14, 1
      %p74 = scmp.ne.s32.totalorder %s69, %s71
      %p75 = scmp.eq.s32.totalorder %s14, 0
      %p76 = por %p74, %p75
      %p77 = scmp.ne.s32.totalorder %s69, %s71
      %p78 = scmp.eq.s32.totalorder %s19, 1
      %p79 = por %p77, %p78
      %p80 = scmp.ne.s32.totalorder %s71, %s72
      %p81 = scmp.eq.s32.totalorder %s19, 0
      %p82 = por %p80, %p81
      %p83 = scmp.ne.s32.totalorder %s71, %s72
      %p84 = scmp.eq.s32.totalorder %s20, 1
      %p85 = por %p83, %p84
      %p87 = scmp.ne.s32.totalorder %s72, %s86
      %p88 = scmp.eq.s32.totalorder %s20, 0
      %p89 = por %p87, %p88
      %s91 = sadd.s32 %s90, 1
      %p94 = scmp.eq.s32.totalorder %s14, 1
      %p95 = scmp.ne.s32.totalorder %s90, %s92
      %p96 = scmp.eq.s32.totalorder %s14, 0
      %p97 = por %p95, %p96
      %p98 = scmp.ne.s32.totalorder %s90, %s92
      %p99 = scmp.eq.s32.totalorder %s19, 1
      %p100 = por %p98, %p99
      %p101 = scmp.ne.s32.totalorder %s92, %s93
      %p102 = scmp.eq.s32.totalorder %s19, 0
      %p103 = por %p101, %p102
      %p104 = scmp.ne.s32.totalorder %s92, %s93
      %p105 = scmp.eq.s32.totalorder %s20, 1
      %p106 = por %p104, %p105
      %p108 = scmp.ne.s32.totalorder %s93, %s107
      %p109 = scmp.eq.s32.totalorder %s20, 0
      %p110 = por %p108, %p109
      %s112 = sadd.s32 %s111, 1
      %p115 = scmp.eq.s32.totalorder %s14, 1
      %p116 = scmp.ne.s32.totalorder %s111, %s113
      %p117 = scmp.eq.s32.totalorder %s14, 0
      %p118 = por %p116, %p117
      %p119 = scmp.ne.s32.totalorder %s111, %s113
      %p120 = scmp.eq.s32.totalorder %s19, 1
      %p121 = por %p119, %p120
      %p122 = scmp.ne.s32.totalorder %s113, %s114
      %p123 = scmp.eq.s32.totalorder %s19, 0
      %p124 = por %p122, %p123
      %p125 = scmp.ne.s32.totalorder %s113, %s114
      %p126 = scmp.eq.s32.totalorder %s20, 1
      %p127 = por %p125, %p126
      %p129 = scmp.ne.s32.totalorder %s114, %s128
      %p130 = scmp.eq.s32.totalorder %s20, 0
      %p131 = por %p129, %p130
      %s132 = ssub.s32 %s14, %s21
      %p133 = scmp.eq.s32.totalorder %s132, 0
      %s135 = sadd.s32 %s134, 1
      %s136 = scalar_select %p133, %s134, %s135
      %p139 = pneg %p133
      %p140 = scmp.eq.s32.totalorder %s14, 1
      %p141 = por %p139, %p140
      %p142 = scmp.ne.s32.totalorder %s134, %s137
      %p143 = scmp.eq.s32.totalorder %s14, 0
      %p144 = por %p142, %p143
      %p145 = scmp.ne.s32.totalorder %s134, %s137
      %p146 = scmp.eq.s32.totalorder %s19, 1
      %p147 = por %p145, %p146
      %p148 = scmp.ne.s32.totalorder %s137, %s138
      %p149 = scmp.eq.s32.totalorder %s19, 0
      %p150 = por %p148, %p149
      %p151 = scmp.ne.s32.totalorder %s137, %s138
      %p152 = scmp.eq.s32.totalorder %s20, 1
      %p153 = por %p151, %p152
      %p155 = scmp.ne.s32.totalorder %s138, %s154
      %p156 = scmp.eq.s32.totalorder %s20, 0
      %p157 = por %p155, %p156
      %p158 = scmp.le.s32.totalorder 1, %s14
      %p159 = scmp.lt.s32.totalorder %s14, 3
      %p160 = pnand %p158, %p159
      %p161 = pneg %p160
      // Predicated region
      $region9: #{transformer_forward.7} parent=5 // pred_check
        _
      $region10: #{transformer_forward.7} parent=5 // pred_check_branch
        %163 = sbr.rel (%p160) target = $region12
      $region11: #{transformer_forward.7} parent=5 // pred_region
        %s164 = ssub.s32 %s14, 1
        // Predicated region
        $region13: #{transformer_forward.7} parent=11 // pred_check
          %p165 = pneg %p61
        $region14: #{transformer_forward.7} parent=11 // pred_check_branch
          %167 = sbr.rel (%p165) target = $region16
        $region15: #{transformer_forward.7} parent=11 // pred_region
          _
        $region16: #{transformer_forward.7} parent=11 // pred_fallthru
          _
        // Predicated region
        $region17: #{transformer_forward.7} parent=11 // pred_check
          %p168 = pneg %p82
        $region18: #{transformer_forward.7} parent=11 // pred_check_branch
          %170 = sbr.rel (%p168) target = $region20
        $region19: #{transformer_forward.7} parent=11 // pred_region
          _
        $region20: #{transformer_forward.7} parent=11 // pred_fallthru
          _
        // Predicated region
        $region21: #{transformer_forward.7} parent=11 // pred_check
          %p171 = pneg %p103
        $region22: #{transformer_forward.7} parent=11 // pred_check_branch
          %173 = sbr.rel (%p171) target = $region24
        $region23: #{transformer_forward.7} parent=11 // pred_region
          _
        $region24: #{transformer_forward.7} parent=11 // pred_fallthru
          _
        // Predicated region
        $region25: #{transformer_forward.7} parent=11 // pred_check
          %p174 = pneg %p124
        $region26: #{transformer_forward.7} parent=11 // pred_check_branch
          %176 = sbr.rel (%p174) target = $region28
        $region27: #{transformer_forward.7} parent=11 // pred_region
          _
        $region28: #{transformer_forward.7} parent=11 // pred_fallthru
          _
      $region12: #{transformer_forward.7} parent=5 // pred_fallthru
        _
      %p177 = scmp.lt.s32.totalorder %s14, 2
      // Predicated region
      $region29: #{transformer_forward.7} parent=5 // pred_check
        %p178 = pneg %p177
      $region30: #{transformer_forward.7} parent=5 // pred_check_branch
        %180 = sbr.rel (%p178) target = $region32
      $region31: #{transformer_forward.7} parent=5 // pred_region
        // Predicated region
        $region33: #{transformer_forward.7} parent=31 // pred_check
          %p181 = pneg %p34
        $region34: #{transformer_forward.7} parent=31 // pred_check_branch
          %183 = sbr.rel (%p181) target = $region36
        $region35: #{transformer_forward.7} parent=31 // pred_region
          %p184 = scmp.lt.s32.totalorder %s14, 1
          %s185 = scalar_select %p184, %s14, 1
          %s186 = smul.addr %s185, 4
          %s187 = scalar_lea.vmem %s0, %s186
        $region36: #{transformer_forward.7} parent=31 // pred_fallthru
          _
      $region32: #{transformer_forward.7} parent=5 // pred_fallthru
        _
      %p188 = scmp.le.s32.totalorder 1, %s14
      %p189 = scmp.lt.s32.totalorder %s14, 3
      %p190 = pnand %p188, %p189
      %p191 = pneg %p190
      // Predicated region
      $region37: #{transformer_forward.7} parent=5 // pred_check
        _
      $region38: #{transformer_forward.7} parent=5 // pred_check_branch
        %193 = sbr.rel (%p190) target = $region40
      $region39: #{transformer_forward.7} parent=5 // pred_region
        %s194 = ssub.s32 %s14, 1
        %p195 = scmp.lt.s32.totalorder %s19, 1
        %s196 = scalar_select %p195, %s19, 1
        %s197 = smul.addr %s196, 4
        %s198 = scalar_lea.vmem %s0, %s197
        %p199 = pneg %p40
        %p200 = pneg %p37
        %p201 = pneg %p61
        %p202 = pneg %p58
        %p203 = pneg %p82
        %p204 = pneg %p79
        %p205 = pneg %p103
        %p206 = pneg %p100
        %p207 = pneg %p124
        %p208 = pneg %p121
        %p209 = pneg %p150
        %p210 = pneg %p147
        %s211 = sand.u32 %s137, 1
        %s212 = scalar_lea.sflag [#allocation3], %s211
        %s213 = sand.u32 %s137, 1
        %s214 = scalar_lea.vmem [#allocation2], %s213
        %p215 = scmp.lt.s32.totalorder %s19, 1
        %s216 = scalar_select %p215, %s19, 1
        %s217 = smul.addr %s216, 4
        %s218 = scalar_lea.vmem %s0, %s217
        %v220 = vld [vmem:[%s218] sm:$0xf]
        %vm221 = vcmask 257024
        %v222 = vsel %vm221, %v220, 0.0
        %223 = vadd.xlane.f32.xlu0 %v222
        %v224 = vpop.xlane.xlu0 %223
        %v225 = vrcp.pop 32.0
        %v226 = vmul.f32 %v224, %v225
        %v227 = vsub.f32 %v220, %v226
        %v228 = vmul.f32 %v227, %v227
        %v229 = vsel %vm221, %v228, 0.0
        %230 = vadd.xlane.f32.xlu0 %v229
        %v231 = vpop.xlane.xlu0 %230
        %v232 = vmul.f32 %v231, %v225
        %v233 = vadd.f32 %v232, 1e-05
        %v234 = vrsqrt.pop %v233
        %v235 = vmul.f32 %v227, %v234
        %v236 = vld [vmem:[%s1] sm:$0x1]
        %v238 = vlaneseq
        %v239 = vshrl.u32 %v238, 7
        %v240 = vsub.s32 0, %v239
        %v241 = vrot.slane %v236, %v240
        %v243 = vmul.f32 %v235, %v241
        %v244 = vld [vmem:[%s2] sm:$0x1]
        %v246 = vlaneseq
        %v247 = vshrl.u32 %v246, 7
        %v248 = vsub.s32 0, %v247
        %v249 = vrot.slane %v244, %v248
        %v251 = vadd.f32 %v243, %v249
        %v252 = vpack.c.bf16 %v251, %v251
        %v253 = vld [vmem:[%s3] sm:$0xf]
        %v254 = vld [vmem:[%s3 + $0x4] sm:$0xf]
        %v255 = vld [vmem:[%s3 + $0x8] sm:$0xf]
        %v256 = vld [vmem:[%s3 + $0xc] sm:$0xf]
        %v261 = vunpack.c.l.b16 %v253
        %v262 = vunpack.c.l.b16 %v254
        %v263 = vunpack.c.l.b16 %v255
        %v264 = vunpack.c.l.b16 %v256
        %v265 = vpack.c.b16 %v262, %v261
        %v266 = vpack.c.b16 %v264, %v263
        %vm269 = vcmask 261120
        %v271 = vsel %vm269, %v252, 0
        %273 = vmatprep.subr.bf16.mxu0 0
        %274 = vmatpush1.bf16.msra.mxu0 %v265
        %275 = vmatprep.subr.bf16.mxu0 0
        %276 = vmatpush1.bf16.msra.mxu0 %v266
        %277 = vmatprep.subr.bf16.mxu0 0
        %278 = vmatpush1.bf16.msra.mxu0 0
        %279 = vmatprep.subr.bf16.mxu0 0
        %280 = vmatpush1.bf16.msra.mxu0 0
        %281 = vmatprep.subr.bf16.mxu0 0
        %282 = vmatpush1.bf16.msra.mxu0 0
        %283 = vmatprep.subr.bf16.mxu0 0
        %284 = vmatpush1.bf16.msra.mxu0 0
        %285 = vmatprep.subr.bf16.mxu0 0
        %286 = vmatpush1.bf16.msra.mxu0 0
        %287 = vmatprep.subr.bf16.mxu0 0
        %288 = vmatpush1.bf16.msra.mxu0 0
        %289 = vmatprep.subr.bf16.mxu0 0
        %290 = vmatpush1.bf16.msra.mxu0 0
        %291 = vmatprep.subr.bf16.mxu0 0
        %292 = vmatpush1.bf16.msra.mxu0 0
        %293 = vmatprep.subr.bf16.mxu0 0
        %294 = vmatpush1.bf16.msra.mxu0 0
        %295 = vmatprep.subr.bf16.mxu0 0
        %296 = vmatpush1.bf16.msra.mxu0 0
        %297 = vmatprep.subr.bf16.mxu0 0
        %298 = vmatpush1.bf16.msra.mxu0 0
        %299 = vmatprep.subr.bf16.mxu0 0
        %300 = vmatpush1.bf16.msra.mxu0 0
        %301 = vmatprep.subr.bf16.mxu0 0
        %302 = vmatpush1.bf16.msra.mxu0 0
        %303 = vmatprep.subr.bf16.mxu0 0
        %304 = vmatpush1.bf16.msra.mxu0 0
        %305 = vmatprep.mubr.bf16.mxu0 0
        %306 = vmatmul.mubr.bf16.gmra.mrb[0].mxu0 %v271
        %v307 = vpop.f32.mrb[0].mxu0
        %v308 = vadd.f32 0.0, %v307
        %v309 = vpop.f32.mrb[0].mxu0
        %v310 = vpop.f32.mrb[0].mxu0
        %v311 = vpop.f32.mrb[0].mxu0
        %312 = vdwg.mxu0
        %vm313 = vcmask 76800
        %v314 = vsel %vm313, %v308, 0.0
        %v315 = vrot.slane %v314, 4
        %v316 = vadd.f32 %v314, %v315
        %v317 = vrot.slane %v316, 2
        %v318 = vadd.f32 %v316, %v317
        %v319 = vrot.slane %v318, 1
        %v320 = vadd.f32 %v318, %v319
        %v321 = vrcp.pop 4.0
        %v322 = vmul.f32 %v320, %v321
        %v323 = vld [vmem:[%s4] sm:$0x1]
        %v324 = vadd.f32 %v322, %v323
        %vm325 = vcmask 73728
        %326 = vst.msk [vmem:[%s214] sm:$0x1] %vm325, %v324
        %s327 = sand.u32 %s137, 1
        %s328 = scalar_lea.sflag [#allocation3], %s327
        %s329 = sand.u32 %s137, 1
        %s330 = scalar_lea.vmem [#allocation2], %s329
        // Predicated region
        $region41: #{transformer_forward.7} parent=39 // pred_check
          %p331 = pneg %p147
        $region42: #{transformer_forward.7} parent=39 // pred_check_branch
          %333 = sbr.rel (%p331) target = $region44
        $region43: #{transformer_forward.7} parent=39 // pred_region
          %s335 = ssub.s32 16, 16
          %336 = vsyncadd %s328, %s335
          %s337 = smul.addr %s19, 16
          %s338 = scalar_lea.hbm %s5, %s337
          %s340 = sshll.u32 %s330, 4
          %s341 = int_to_ptr.vmem [resolvable:$true] %s340
          %343 = dma.vmem_to_hbm [thread:$0]  %s341, 16, %s338, %s328
        $region44: #{transformer_forward.7} parent=39 // pred_fallthru
          _
      $region40: #{transformer_forward.7} parent=5 // pred_fallthru
        _
      %p344 = scmp.le.s32.totalorder 2, %s14
      // Predicated region
      $region45: #{transformer_forward.7} parent=5 // pred_check
        %p345 = pneg %p344
      $region46: #{transformer_forward.7} parent=5 // pred_check_branch
        %347 = sbr.rel (%p345) target = $region48
      $region47: #{transformer_forward.7} parent=5 // pred_region
        %s348 = ssub.s32 %s14, 2
        // Predicated region
        $region49: #{transformer_forward.7} parent=47 // pred_check
          %p349 = pneg %p153
        $region50: #{transformer_forward.7} parent=47 // pred_check_branch
          %351 = sbr.rel (%p349) target = $region52
        $region51: #{transformer_forward.7} parent=47 // pred_region
          %s352 = sand.u32 %s138, 1
          %s353 = scalar_lea.sflag [#allocation3], %s352
          %s354 = sand.u32 %s138, 1
          %s355 = scalar_lea.vmem [#allocation2], %s354
          %356 = dma.done %s353, 16
        $region52: #{transformer_forward.7} parent=47 // pred_fallthru
          _
      $region48: #{transformer_forward.7} parent=5 // pred_fallthru
        _
    $region6: #{transformer_forward.7} parent=1 // loop_footer
      %s18 = sadd.s32 1, %s14
    $region7: #{transformer_forward.7} parent=1 // loop_footer_branch
      %13 = sbr.rel target = $region3
    $region8: #{transformer_forward.7} parent=1 // loop_exit
      _
    %357 = vsyncpa [#allocation3], 1
    %s358 = scalar_lea.sflag [#allocation3], 1
    %359 = vsyncpa %s358, 1

// kernel: transformer_forward.4
$region0: #{transformer_forward.4}
  #allocation0 [shape = 'u32[]', space=smem, size = 0x4, offset = 0x4, fixed_abs, tag = 'smem constant byte address 0x4 - core index']
  #allocation1 [shape = 'u32[144,128]{1,0:T(1,128)}', space=vmem, size = 0x12000, scoped, tag = 'internal scratch']
  #allocation2 [shape = 'f32[8,32]{1,0:T(8,128)}', space=vmem, size = 0x1000, scoped, tag = 'scratch operand']
  %s0 = inlined_call_operand.vmem [shape: f32[8,768], index: 0, kind: input, shape index: {}]
  %s1 = inlined_call_operand.vmem [shape: bf16[768,32], index: 1, kind: input, shape index: {}]
  %s2 = inlined_call_operand.vmem [shape: f32[1,32], index: 2, kind: input, shape index: {}]
  %s3 = inlined_call_operand.vmem [shape: f32[8,32], index: 3, kind: output, shape index: {}]
  %s4 = sld [smem:[#allocation0]]
  $region30: #{transformer_forward.4} parent=0
    _
  %s6 = ssub.s32 1, %s4
  %s7 = scalar_select 0, %s6, %s4
  // Predicated region
  $region2: #{transformer_forward.4} parent=0 // pred_check
    _
  $region3: #{transformer_forward.4} parent=0 // pred_check_branch
    %9 = sbr.rel (0) target = $region5
  $region4: #{transformer_forward.4} parent=0 // pred_region
    _
  $region5: #{transformer_forward.4} parent=0 // pred_fallthru
    _
  // Predicated region
  $region6: #{transformer_forward.4} parent=0 // pred_check
    _
  $region7: #{transformer_forward.4} parent=0 // pred_check_branch
    %11 = sbr.rel (0) target = $region9
  $region8: #{transformer_forward.4} parent=0 // pred_region
    _
  $region9: #{transformer_forward.4} parent=0 // pred_fallthru
    _
  // Predicated region
  $region10: #{transformer_forward.4} parent=0 // pred_check
    _
  $region11: #{transformer_forward.4} parent=0 // pred_check_branch
    %13 = sbr.rel (0) target = $region13
  $region12: #{transformer_forward.4} parent=0 // pred_region
    _
  $region13: #{transformer_forward.4} parent=0 // pred_fallthru
    _
  %p15 = scmp.eq.s32.totalorder 0, 0
  // Predicated region
  $region14: #{transformer_forward.4} parent=0 // pred_check
    %p16 = pneg %p15
  $region15: #{transformer_forward.4} parent=0 // pred_check_branch
    %18 = sbr.rel (%p16) target = $region17
  $region16: #{transformer_forward.4} parent=0 // pred_region
    %vm19 = vcmask 261120
    %20 = vst.msk [vmem:[#allocation2] sm:$0xff] %vm19, 0.0
  $region17: #{transformer_forward.4} parent=0 // pred_fallthru
    _
  %v21 = vld [vmem:[#allocation2] sm:$0xff]
  %v22 = vld [vmem:[%s0] sm:$0xff]
  %v23 = vld [vmem:[%s0 + $0x8] sm:$0xff]
  %v24 = vld [vmem:[%s0 + $0x10] sm:$0xff]
  %v25 = vld [vmem:[%s0 + $0x18] sm:$0xff]
  %v26 = vld [vmem:[%s0 + $0x20] sm:$0xff]
  %v27 = vld [vmem:[%s0 + $0x28] sm:$0xff]
  %v28 = vpack.c.bf16 %v22, %v22
  %v29 = vpack.c.bf16 %v23, %v23
  %v30 = vpack.c.bf16 %v24, %v24
  %v31 = vpack.c.bf16 %v25, %v25
  %v32 = vpack.c.bf16 %v26, %v26
  %v33 = vpack.c.bf16 %v27, %v27
  %v34 = vld [vmem:[%s1] sm:$0xf]
  %v35 = vld [vmem:[%s1 + $0x4] sm:$0xf]
  %v36 = vld [vmem:[%s1 + $0x8] sm:$0xf]
  %v37 = vld [vmem:[%s1 + $0xc] sm:$0xf]
  %v38 = vld [vmem:[%s1 + $0x10] sm:$0xf]
  %v39 = vld [vmem:[%s1 + $0x14] sm:$0xf]
  %v40 = vld [vmem:[%s1 + $0x18] sm:$0xf]
  %v41 = vld [vmem:[%s1 + $0x1c] sm:$0xf]
  %v42 = vld [vmem:[%s1 + $0x20] sm:$0xf]
  %v43 = vld [vmem:[%s1 + $0x24] sm:$0xf]
  %v44 = vld [vmem:[%s1 + $0x28] sm:$0xf]
  %v45 = vld [vmem:[%s1 + $0x2c] sm:$0xf]
  %v46 = vld [vmem:[%s1 + $0x30] sm:$0xf]
  %v47 = vld [vmem:[%s1 + $0x34] sm:$0xf]
  %v48 = vld [vmem:[%s1 + $0x38] sm:$0xf]
  %v49 = vld [vmem:[%s1 + $0x3c] sm:$0xf]
  %v50 = vld [vmem:[%s1 + $0x40] sm:$0xf]
  %v51 = vld [vmem:[%s1 + $0x44] sm:$0xf]
  %v52 = vld [vmem:[%s1 + $0x48] sm:$0xf]
  %v53 = vld [vmem:[%s1 + $0x4c] sm:$0xf]
  %v54 = vld [vmem:[%s1 + $0x50] sm:$0xf]
  %v55 = vld [vmem:[%s1 + $0x54] sm:$0xf]
  %v56 = vld [vmem:[%s1 + $0x58] sm:$0xf]
  %v57 = vld [vmem:[%s1 + $0x5c] sm:$0xf]
  %v58 = vld [vmem:[%s1 + $0x60] sm:$0xf]
  %v59 = vld [vmem:[%s1 + $0x64] sm:$0xf]
  %v60 = vld [vmem:[%s1 + $0x68] sm:$0xf]
  %v61 = vld [vmem:[%s1 + $0x6c] sm:$0xf]
  %v62 = vld [vmem:[%s1 + $0x70] sm:$0xf]
  %v63 = vld [vmem:[%s1 + $0x74] sm:$0xf]
  %v64 = vld [vmem:[%s1 + $0x78] sm:$0xf]
  %v65 = vld [vmem:[%s1 + $0x7c] sm:$0xf]
  %v66 = vld [vmem:[%s1 + $0x80] sm:$0xf]
  %v67 = vld [vmem:[%s1 + $0x84] sm:$0xf]
  %v68 = vld [vmem:[%s1 + $0x88] sm:$0xf]
  %v69 = vld [vmem:[%s1 + $0x8c] sm:$0xf]
  %v70 = vld [vmem:[%s1 + $0x90] sm:$0xf]
  %v71 = vld [vmem:[%s1 + $0x94] sm:$0xf]
  %v72 = vld [vmem:[%s1 + $0x98] sm:$0xf]
  %v73 = vld [vmem:[%s1 + $0x9c] sm:$0xf]
  %v74 = vld [vmem:[%s1 + $0xa0] sm:$0xf]
  %v75 = vld [vmem:[%s1 + $0xa4] sm:$0xf]
  %v76 = vld [vmem:[%s1 + $0xa8] sm:$0xf]
  %v77 = vld [vmem:[%s1 + $0xac] sm:$0xf]
  %v78 = vld [vmem:[%s1 + $0xb0] sm:$0xf]
  %v79 = vld [vmem:[%s1 + $0xb4] sm:$0xf]
  %v80 = vld [vmem:[%s1 + $0xb8] sm:$0xf]
  %v81 = vld [vmem:[%s1 + $0xbc] sm:$0xf]
  %v82 = vld [vmem:[%s1 + $0xc0] sm:$0xf]
  %v83 = vld [vmem:[%s1 + $0xc4] sm:$0xf]
  %v84 = vld [vmem:[%s1 + $0xc8] sm:$0xf]
  %v85 = vld [vmem:[%s1 + $0xcc] sm:$0xf]
  %v86 = vld [vmem:[%s1 + $0xd0] sm:$0xf]
  %v87 = vld [vmem:[%s1 + $0xd4] sm:$0xf]
  %v88 = vld [vmem:[%s1 + $0xd8] sm:$0xf]
  %v89 = vld [vmem:[%s1 + $0xdc] sm:$0xf]
  %v90 = vld [vmem:[%s1 + $0xe0] sm:$0xf]
  %v91 = vld [vmem:[%s1 + $0xe4] sm:$0xf]
  %v92 = vld [vmem:[%s1 + $0xe8] sm:$0xf]
  %v93 = vld [vmem:[%s1 + $0xec] sm:$0xf]
  %v94 = vld [vmem:[%s1 + $0xf0] sm:$0xf]
  %v95 = vld [vmem:[%s1 + $0xf4] sm:$0xf]
  %v96 = vld [vmem:[%s1 + $0xf8] sm:$0xf]
  %v97 = vld [vmem:[%s1 + $0xfc] sm:$0xf]
  %v98 = vld [vmem:[%s1 + $0x100] sm:$0xf]
  %v99 = vld [vmem:[%s1 + $0x104] sm:$0xf]
  %v100 = vld [vmem:[%s1 + $0x108] sm:$0xf]
  %v101 = vld [vmem:[%s1 + $0x10c] sm:$0xf]
  %v102 = vld [vmem:[%s1 + $0x110] sm:$0xf]
  %v103 = vld [vmem:[%s1 + $0x114] sm:$0xf]
  %v104 = vld [vmem:[%s1 + $0x118] sm:$0xf]
  %v105 = vld [vmem:[%s1 + $0x11c] sm:$0xf]
  %v106 = vld [vmem:[%s1 + $0x120] sm:$0xf]
  %v107 = vld [vmem:[%s1 + $0x124] sm:$0xf]
  %v108 = vld [vmem:[%s1 + $0x128] sm:$0xf]
  %v109 = vld [vmem:[%s1 + $0x12c] sm:$0xf]
  %v110 = vld [vmem:[%s1 + $0x130] sm:$0xf]
  %v111 = vld [vmem:[%s1 + $0x134] sm:$0xf]
  %v112 = vld [vmem:[%s1 + $0x138] sm:$0xf]
  %v113 = vld [vmem:[%s1 + $0x13c] sm:$0xf]
  %v114 = vld [vmem:[%s1 + $0x140] sm:$0xf]
  %v115 = vld [vmem:[%s1 + $0x144] sm:$0xf]
  %v116 = vld [vmem:[%s1 + $0x148] sm:$0xf]
  %v117 = vld [vmem:[%s1 + $0x14c] sm:$0xf]
  %v118 = vld [vmem:[%s1 + $0x150] sm:$0xf]
  %v119 = vld [vmem:[%s1 + $0x154] sm:$0xf]
  %v120 = vld [vmem:[%s1 + $0x158] sm:$0xf]
  %v121 = vld [vmem:[%s1 + $0x15c] sm:$0xf]
  %v122 = vld [vmem:[%s1 + $0x160] sm:$0xf]
  %v123 = vld [vmem:[%s1 + $0x164] sm:$0xf]
  %v124 = vld [vmem:[%s1 + $0x168] sm:$0xf]
  %v125 = vld [vmem:[%s1 + $0x16c] sm:$0xf]
  %v126 = vld [vmem:[%s1 + $0x170] sm:$0xf]
  %v127 = vld [vmem:[%s1 + $0x174] sm:$0xf]
  %v128 = vld [vmem:[%s1 + $0x178] sm:$0xf]
  %v129 = vld [vmem:[%s1 + $0x17c] sm:$0xf]
  %v226 = vunpack.c.l.b16 %v34
  %v227 = vunpack.c.l.b16 %v35
  %v228 = vunpack.c.l.b16 %v36
  %v229 = vunpack.c.l.b16 %v37
  %v230 = vunpack.c.l.b16 %v38
  %v231 = vunpack.c.l.b16 %v39
  %v232 = vunpack.c.l.b16 %v40
  %v233 = vunpack.c.l.b16 %v41
  %v234 = vunpack.c.l.b16 %v42
  %v235 = vunpack.c.l.b16 %v43
  %v236 = vunpack.c.l.b16 %v44
  %v237 = vunpack.c.l.b16 %v45
  %v238 = vunpack.c.l.b16 %v46
  %v239 = vunpack.c.l.b16 %v47
  %v240 = vunpack.c.l.b16 %v48
  %v241 = vunpack.c.l.b16 %v49
  %v242 = vunpack.c.l.b16 %v50
  %v243 = vunpack.c.l.b16 %v51
  %v244 = vunpack.c.l.b16 %v52
  %v245 = vunpack.c.l.b16 %v53
  %v246 = vunpack.c.l.b16 %v54
  %v247 = vunpack.c.l.b16 %v55
  %v248 = vunpack.c.l.b16 %v56
  %v249 = vunpack.c.l.b16 %v57
  %v250 = vunpack.c.l.b16 %v58
  %v251 = vunpack.c.l.b16 %v59
  %v252 = vunpack.c.l.b16 %v60
  %v253 = vunpack.c.l.b16 %v61
  %v254 = vunpack.c.l.b16 %v62
  %v255 = vunpack.c.l.b16 %v63
  %v256 = vunpack.c.l.b16 %v64
  %v257 = vunpack.c.l.b16 %v65
  %v258 = vunpack.c.l.b16 %v66
  %v259 = vunpack.c.l.b16 %v67
  %v260 = vunpack.c.l.b16 %v68
  %v261 = vunpack.c.l.b16 %v69
  %v262 = vunpack.c.l.b16 %v70
  %v263 = vunpack.c.l.b16 %v71
  %v264 = vunpack.c.l.b16 %v72
  %v265 = vunpack.c.l.b16 %v73
  %v266 = vunpack.c.l.b16 %v74
  %v267 = vunpack.c.l.b16 %v75
  %v268 = vunpack.c.l.b16 %v76
  %v269 = vunpack.c.l.b16 %v77
  %v270 = vunpack.c.l.b16 %v78
  %v271 = vunpack.c.l.b16 %v79
  %v272 = vunpack.c.l.b16 %v80
  %v273 = vunpack.c.l.b16 %v81
  %v274 = vunpack.c.l.b16 %v82
  %v275 = vunpack.c.l.b16 %v83
  %v276 = vunpack.c.l.b16 %v84
  %v277 = vunpack.c.l.b16 %v85
  %v278 = vunpack.c.l.b16 %v86
  %v279 = vunpack.c.l.b16 %v87
  %v280 = vunpack.c.l.b16 %v88
  %v281 = vunpack.c.l.b16 %v89
  %v282 = vunpack.c.l.b16 %v90
  %v283 = vunpack.c.l.b16 %v91
  %v284 = vunpack.c.l.b16 %v92
  %v285 = vunpack.c.l.b16 %v93
  %v286 = vunpack.c.l.b16 %v94
  %v287 = vunpack.c.l.b16 %v95
  %v288 = vunpack.c.l.b16 %v96
  %v289 = vunpack.c.l.b16 %v97
  %v290 = vunpack.c.l.b16 %v98
  %v291 = vunpack.c.l.b16 %v99
  %v292 = vunpack.c.l.b16 %v100
  %v293 = vunpack.c.l.b16 %v101
  %v294 = vunpack.c.l.b16 %v102
  %v295 = vunpack.c.l.b16 %v103
  %v296 = vunpack.c.l.b16 %v104
  %v297 = vunpack.c.l.b16 %v105
  %v298 = vunpack.c.l.b16 %v106
  %v299 = vunpack.c.l.b16 %v107
  %v300 = vunpack.c.l.b16 %v108
  %v301 = vunpack.c.l.b16 %v109
  %v302 = vunpack.c.l.b16 %v110
  %v303 = vunpack.c.l.b16 %v111
  %v304 = vunpack.c.l.b16 %v112
  %v305 = vunpack.c.l.b16 %v113
  %v306 = vunpack.c.l.b16 %v114
  %v307 = vunpack.c.l.b16 %v115
  %v308 = vunpack.c.l.b16 %v116
  %v309 = vunpack.c.l.b16 %v117
  %v310 = vunpack.c.l.b16 %v118
  %v311 = vunpack.c.l.b16 %v119
  %v312 = vunpack.c.l.b16 %v120
  %v313 = vunpack.c.l.b16 %v121
  %v314 = vunpack.c.l.b16 %v122
  %v315 = vunpack.c.l.b16 %v123
  %v316 = vunpack.c.l.b16 %v124
  %v317 = vunpack.c.l.b16 %v125
  %v318 = vunpack.c.l.b16 %v126
  %v319 = vunpack.c.l.b16 %v127
  %v320 = vunpack.c.l.b16 %v128
  %v321 = vunpack.c.l.b16 %v129
  %v322 = vpack.c.b16 %v227, %v226
  %v323 = vpack.c.b16 %v229, %v228
  %v324 = vpack.c.b16 %v231, %v230
  %v325 = vpack.c.b16 %v233, %v232
  %v326 = vpack.c.b16 %v235, %v234
  %v327 = vpack.c.b16 %v237, %v236
  %v328 = vpack.c.b16 %v239, %v238
  %v329 = vpack.c.b16 %v241, %v240
  %v330 = vpack.c.b16 %v243, %v242
  %v331 = vpack.c.b16 %v245, %v244
  %v332 = vpack.c.b16 %v247, %v246
  %v333 = vpack.c.b16 %v249, %v248
  %v334 = vpack.c.b16 %v251, %v250
  %v335 = vpack.c.b16 %v253, %v252
  %v336 = vpack.c.b16 %v255, %v254
  %v337 = vpack.c.b16 %v257, %v256
  %v338 = vpack.c.b16 %v259, %v258
  %v339 = vpack.c.b16 %v261, %v260
  %v340 = vpack.c.b16 %v263, %v262
  %v341 = vpack.c.b16 %v265, %v264
  %v342 = vpack.c.b16 %v267, %v266
  %v343 = vpack.c.b16 %v269, %v268
  %v344 = vpack.c.b16 %v271, %v270
  %v345 = vpack.c.b16 %v273, %v272
  %v346 = vpack.c.b16 %v275, %v274
  %v347 = vpack.c.b16 %v277, %v276
  %v348 = vpack.c.b16 %v279, %v278
  %v349 = vpack.c.b16 %v281, %v280
  %v350 = vpack.c.b16 %v283, %v282
  %v351 = vpack.c.b16 %v285, %v284
  %v352 = vpack.c.b16 %v287, %v286
  %v353 = vpack.c.b16 %v289, %v288
  %v354 = vpack.c.b16 %v291, %v290
  %v355 = vpack.c.b16 %v293, %v292
  %v356 = vpack.c.b16 %v295, %v294
  %v357 = vpack.c.b16 %v297, %v296
  %v358 = vpack.c.b16 %v299, %v298
  %v359 = vpack.c.b16 %v301, %v300
  %v360 = vpack.c.b16 %v303, %v302
  %v361 = vpack.c.b16 %v305, %v304
  %v362 = vpack.c.b16 %v307, %v306
  %v363 = vpack.c.b16 %v309, %v308
  %v364 = vpack.c.b16 %v311, %v310
  %v365 = vpack.c.b16 %v313, %v312
  %v366 = vpack.c.b16 %v315, %v314
  %v367 = vpack.c.b16 %v317, %v316
  %v368 = vpack.c.b16 %v319, %v318
  %v369 = vpack.c.b16 %v321, %v320
  %418 = vmatprep.subr.bf16.mxu0 0
  %419 = vmatpush1.bf16.msra.mxu0 %v322
  %420 = vmatprep.subr.bf16.mxu0 0
  %421 = vmatpush1.bf16.msra.mxu0 %v323
  %422 = vmatprep.subr.bf16.mxu0 0
  %423 = vmatpush1.bf16.msra.mxu0 %v324
  %424 = vmatprep.subr.bf16.mxu0 0
  %425 = vmatpush1.bf16.msra.mxu0 %v325
  %426 = vmatprep.subr.bf16.mxu0 0
  %427 = vmatpush1.bf16.msra.mxu0 %v326
  %428 = vmatprep.subr.bf16.mxu0 0
  %429 = vmatpush1.bf16.msra.mxu0 %v327
  %430 = vmatprep.subr.bf16.mxu0 0
  %431 = vmatpush1.bf16.msra.mxu0 %v328
  %432 = vmatprep.subr.bf16.mxu0 0
  %433 = vmatpush1.bf16.msra.mxu0 %v329
  %434 = vmatprep.subr.bf16.mxu0 0
  %435 = vmatpush1.bf16.msra.mxu0 %v330
  %436 = vmatprep.subr.bf16.mxu0 0
  %437 = vmatpush1.bf16.msra.mxu0 %v331
  %438 = vmatprep.subr.bf16.mxu0 0
  %439 = vmatpush1.bf16.msra.mxu0 %v332
  %440 = vmatprep.subr.bf16.mxu0 0
  %441 = vmatpush1.bf16.msra.mxu0 %v333
  %442 = vmatprep.subr.bf16.mxu0 0
  %443 = vmatpush1.bf16.msra.mxu0 %v334
  %444 = vmatprep.subr.bf16.mxu0 0
  %445 = vmatpush1.bf16.msra.mxu0 %v335
  %446 = vmatprep.subr.bf16.mxu0 0
  %447 = vmatpush1.bf16.msra.mxu0 %v336
  %448 = vmatprep.subr.bf16.mxu0 0
  %449 = vmatpush1.bf16.msra.mxu0 %v337
  %450 = vmatprep.mubr.bf16.mxu0 %v29
  %451 = vmatmul.mubr.bf16.gmra.mrb[0].mxu0 %v28
  %v452 = vpop.f32.mrb[0].mxu0
  %v453 = vadd.f32 0.0, %v452
  %v454 = vpop.f32.mrb[0].mxu0
  %v455 = vpop.f32.mrb[0].mxu0
  %v456 = vpop.f32.mrb[0].mxu0
  %457 = vdwg.mxu0
  %458 = vmatprep.subr.bf16.mxu0 0
  %459 = vmatpush1.bf16.msra.mxu0 %v338
  %460 = vmatprep.subr.bf16.mxu0 0
  %461 = vmatpush1.bf16.msra.mxu0 %v339
  %462 = vmatprep.subr.bf16.mxu0 0
  %463 = vmatpush1.bf16.msra.mxu0 %v340
  %464 = vmatprep.subr.bf16.mxu0 0
  %465 = vmatpush1.bf16.msra.mxu0 %v341
  %466 = vmatprep.subr.bf16.mxu0 0
  %467 = vmatpush1.bf16.msra.mxu0 %v342
  %468 = vmatprep.subr.bf16.mxu0 0
  %469 = vmatpush1.bf16.msra.mxu0 %v343
  %470 = vmatprep.subr.bf16.mxu0 0
  %471 = vmatpush1.bf16.msra.mxu0 %v344
  %472 = vmatprep.subr.bf16.mxu0 0
  %473 = vmatpush1.bf16.msra.mxu0 %v345
  %474 = vmatprep.subr.bf16.mxu0 0
  %475 = vmatpush1.bf16.msra.mxu0 %v346
  %476 = vmatprep.subr.bf16.mxu0 0
  %477 = vmatpush1.bf16.msra.mxu0 %v347
  %478 = vmatprep.subr.bf16.mxu0 0
  %479 = vmatpush1.bf16.msra.mxu0 %v348
  %480 = vmatprep.subr.bf16.mxu0 0
  %481 = vmatpush1.bf16.msra.mxu0 %v349
  %482 = vmatprep.subr.bf16.mxu0 0
  %483 = vmatpush1.bf16.msra.mxu0 %v350
  %484 = vmatprep.subr.bf16.mxu0 0
  %485 = vmatpush1.bf16.msra.mxu0 %v351
  %486 = vmatprep.subr.bf16.mxu0 0
  %487 = vmatpush1.bf16.msra.mxu0 %v352
  %488 = vmatprep.subr.bf16.mxu0 0
  %489 = vmatpush1.bf16.msra.mxu0 %v353
  %490 = vmatprep.mubr.bf16.mxu0 %v31
  %491 = vmatmul.mubr.bf16.gmra.mrb[0].mxu0 %v30
  %v492 = vpop.f32.mrb[0].mxu0
  %v493 = vadd.f32 %v453, %v492
  %v494 = vpop.f32.mrb[0].mxu0
  %v495 = vpop.f32.mrb[0].mxu0
  %v496 = vpop.f32.mrb[0].mxu0
  %497 = vdwg.mxu0
  %498 = vmatprep.subr.bf16.mxu0 0
  %499 = vmatpush1.bf16.msra.mxu0 %v354
  %500 = vmatprep.subr.bf16.mxu0 0
  %501 = vmatpush1.bf16.msra.mxu0 %v355
  %502 = vmatprep.subr.bf16.mxu0 0
  %503 = vmatpush1.bf16.msra.mxu0 %v356
  %504 = vmatprep.subr.bf16.mxu0 0
  %505 = vmatpush1.bf16.msra.mxu0 %v357
  %506 = vmatprep.subr.bf16.mxu0 0
  %507 = vmatpush1.bf16.msra.mxu0 %v358
  %508 = vmatprep.subr.bf16.mxu0 0
  %509 = vmatpush1.bf16.msra.mxu0 %v359
  %510 = vmatprep.subr.bf16.mxu0 0
  %511 = vmatpush1.bf16.msra.mxu0 %v360
  %512 = vmatprep.subr.bf16.mxu0 0
  %513 = vmatpush1.bf16.msra.mxu0 %v361
  %514 = vmatprep.subr.bf16.mxu0 0
  %515 = vmatpush1.bf16.msra.mxu0 %v362
  %516 = vmatprep.subr.bf16.mxu0 0
  %517 = vmatpush1.bf16.msra.mxu0 %v363
  %518 = vmatprep.subr.bf16.mxu0 0
  %519 = vmatpush1.bf16.msra.mxu0 %v364
  %520 = vmatprep.subr.bf16.mxu0 0
  %521 = vmatpush1.bf16.msra.mxu0 %v365
  %522 = vmatprep.subr.bf16.mxu0 0
  %523 = vmatpush1.bf16.msra.mxu0 %v366
  %524 = vmatprep.subr.bf16.mxu0 0
  %525 = vmatpush1.bf16.msra.mxu0 %v367
  %526 = vmatprep.subr.bf16.mxu0 0
  %527 = vmatpush1.bf16.msra.mxu0 %v368
  %528 = vmatprep.subr.bf16.mxu0 0
  %529 = vmatpush1.bf16.msra.mxu0 %v369
  %530 = vmatprep.mubr.bf16.mxu0 %v33
  %531 = vmatmul.mubr.bf16.gmra.mrb[0].mxu0 %v32
  %v532 = vpop.f32.mrb[0].mxu0
  %v533 = vadd.f32 %v493, %v532
  %v534 = vpop.f32.mrb[0].mxu0
  %v535 = vpop.f32.mrb[0].mxu0
  %v536 = vpop.f32.mrb[0].mxu0
  %537 = vdwg.mxu0
  %v538 = vadd.f32 %v21, %v533
  %vm539 = vcmask 261120
  %540 = vst.msk [vmem:[#allocation2] sm:$0xff] %vm539, %v538
  // Predicated region
  $region18: #{transformer_forward.4} parent=0 // pred_check
    %p541 = pneg %p15
  $region19: #{transformer_forward.4} parent=0 // pred_check_branch
    %543 = sbr.rel (%p541) target = $region21
  $region20: #{transformer_forward.4} parent=0 // pred_region
    %v544 = vld [vmem:[#allocation2] sm:$0xff]
    %v545 = vld [vmem:[%s2] sm:$0x1]
    %v547 = vlaneseq
    %v548 = vshrl.u32 %v547, 7
    %v549 = vsub.s32 0, %v548
    %v550 = vrot.slane %v545, %v549
    %v552 = vadd.f32 %v544, %v550
    %553 = vst.msk [vmem:[%s3] sm:$0xff] %vm539, %v552
  $region21: #{transformer_forward.4} parent=0 // pred_fallthru
    _
  // Predicated region
  $region22: #{transformer_forward.4} parent=0 // pred_check
    _
  $region23: #{transformer_forward.4} parent=0 // pred_check_branch
    %555 = sbr.rel (0) target = $region25
  $region24: #{transformer_forward.4} parent=0 // pred_region
    _
  $region25: #{transformer_forward.4} parent=0 // pred_fallthru
    _
  // Predicated region
  $region26: #{transformer_forward.4} parent=0 // pred_check
    _
  $region27: #{transformer_forward.4} parent=0 // pred_check_branch
    %557 = sbr.rel (0) target = $region29
  $region28: #{transformer_forward.4} parent=0 // pred_region
    _
  $region29: #{transformer_forward.4} parent=0 // pred_fallthru
    _

// kernel: transformer_forward.5
$region0: #{transformer_forward.5}
  #allocation0 [shape = 'u32[]', space=smem, size = 0x4, offset = 0x4, fixed_abs, tag = 'smem constant byte address 0x4 - core index']
  #allocation1 [shape = 'u32[144,128]{1,0:T(1,128)}', space=vmem, size = 0x12000, scoped, tag = 'internal scratch']
  %s0 = inlined_call_operand.vmem [shape: f32[2,4,32], index: 0, kind: input, shape index: {}]
  %s1 = inlined_call_operand.vmem [shape: bf16[3,4,32,8], index: 1, kind: input, shape index: {}]
  %s2 = inlined_call_operand.vmem [shape: f32[3,4,1,8], index: 2, kind: input, shape index: {}]
  %s3 = inlined_call_operand.vmem [shape: bf16[4,8,32], index: 3, kind: input, shape index: {}]
  %s4 = inlined_call_operand.vmem [shape: f32[1,32], index: 4, kind: input, shape index: {}]
  %s5 = inlined_call_operand.vmem [shape: f32[1,32], index: 5, kind: input, shape index: {}]
  %s6 = inlined_call_operand.vmem [shape: f32[1,32], index: 6, kind: input, shape index: {}]
  %s7 = inlined_call_operand.vmem [shape: bf16[32,64], index: 7, kind: input, shape index: {}]
  %s8 = inlined_call_operand.vmem [shape: f32[1,64], index: 8, kind: input, shape index: {}]
  %s9 = inlined_call_operand.vmem [shape: bf16[64,32], index: 9, kind: input, shape index: {}]
  %s10 = inlined_call_operand.vmem [shape: f32[1,32], index: 10, kind: input, shape index: {}]
  %s11 = inlined_call_operand.vmem [shape: f32[1,32], index: 11, kind: input, shape index: {}]
  %s12 = inlined_call_operand.vmem [shape: f32[1,32], index: 12, kind: input, shape index: {}]
  %s13 = inlined_call_operand.vmem [shape: f32[2,4,32], index: 13, kind: output, shape index: {}]
  %s14 = sld [smem:[#allocation0]]
  $region85: #{transformer_forward.5} parent=0
    _
  %s16 = ssub.s32 1, %s14
  %s17 = scalar_select 0, %s16, %s14
  loop: start=0, step=1, limit=4
  $region2: #{transformer_forward.5} parent=0 // loop_pre_header
    _
  $region3: #{transformer_forward.5} parent=0 // loop_header
    %s19 = sphi 0, %s23
    %p20 = scmp.ge.s32.totalorder %s19, 4
    %s29 = sphi 0, %s31
    %s32 = sphi 0, %s29
    %s33 = sphi 0, %s32
    %s49 = sphi 0, %s33
    %s53 = sphi 0, %s53
    %s55 = sphi 0, %s53
    %s56 = sphi 0, %s55
    %s70 = sphi 0, %s56
    %s74 = sphi 0, %s74
    %s76 = sphi 0, %s74
    %s77 = sphi 0, %s76
    %s91 = sphi 0, %s77
    %s95 = sphi 0, %s95
    %s97 = sphi 0, %s95
    %s98 = sphi 0, %s97
    %s112 = sphi 0, %s98
    %s116 = sphi 0, %s116
    %s118 = sphi 0, %s116
    %s119 = sphi 0, %s118
    %s133 = sphi 0, %s119
    %s137 = sphi 0, %s137
    %s139 = sphi 0, %s137
    %s140 = sphi 0, %s139
    %s154 = sphi 0, %s140
    %s158 = sphi 0, %s158
    %s160 = sphi 0, %s158
    %s161 = sphi 0, %s160
    %s175 = sphi 0, %s161
    %s179 = sphi 0, %s179
    %s181 = sphi 0, %s179
    %s182 = sphi 0, %s181
    %s196 = sphi 0, %s182
    %s200 = sphi 0, %s200
    %s202 = sphi 0, %s200
    %s203 = sphi 0, %s202
    %s217 = sphi 0, %s203
    %s221 = sphi 0, %s221
    %s223 = sphi 0, %s221
    %s224 = sphi 0, %s223
    %s238 = sphi 0, %s224
    %s242 = sphi 0, %s242
    %s244 = sphi 0, %s242
    %s245 = sphi 0, %s244
    %s259 = sphi 0, %s245
    %s263 = sphi 0, %s263
    %s265 = sphi 0, %s263
    %s266 = sphi 0, %s265
    %s280 = sphi 0, %s266
    %s284 = sphi 0, %s284
    %s286 = sphi 0, %s284
    %s287 = sphi 0, %s286
    %s301 = sphi 0, %s287
    %s307 = sphi 0, %s309
    %s310 = sphi 0, %s307
    %s311 = sphi 0, %s310
    %s327 = sphi 0, %s311
  $region4: #{transformer_forward.5} parent=0 // loop_header_branch
    %22 = sbr.rel (%p20) target = $region8
  $region5: #{transformer_forward.5} parent=0 // loop_body
    %s24 = ssub.s32 %s19, 1
    %s25 = ssub.s32 %s19, 2
    %s26 = sadd.s32 %s19, 1
    %s27 = ssub.s32 %s19, %s26
    %p28 = scmp.eq.s32.totalorder %s27, 0
    %s30 = sadd.s32 %s29, 1
    %s31 = scalar_select %p28, %s29, %s30
    %p34 = pneg %p28
    %p35 = scmp.eq.s32.totalorder %s19, 1
    %p36 = por %p34, %p35
    %p37 = scmp.ne.s32.totalorder %s29, %s32
    %p38 = scmp.eq.s32.totalorder %s19, 0
    %p39 = por %p37, %p38
    %p40 = scmp.ne.s32.totalorder %s29, %s32
    %p41 = scmp.eq.s32.totalorder %s24, 1
    %p42 = por %p40, %p41
    %p43 = scmp.ne.s32.totalorder %s32, %s33
    %p44 = scmp.eq.s32.totalorder %s24, 0
    %p45 = por %p43, %p44
    %p46 = scmp.ne.s32.totalorder %s32, %s33
    %p47 = scmp.eq.s32.totalorder %s25, 1
    %p48 = por %p46, %p47
    %p50 = scmp.ne.s32.totalorder %s33, %s49
    %p51 = scmp.eq.s32.totalorder %s25, 0
    %p52 = por %p50, %p51
    %s54 = sadd.s32 %s53, 1
    %p57 = scmp.eq.s32.totalorder %s19, 1
    %p58 = scmp.ne.s32.totalorder %s53, %s55
    %p59 = scmp.eq.s32.totalorder %s19, 0
    %p60 = por %p58, %p59
    %p61 = scmp.ne.s32.totalorder %s53, %s55
    %p62 = scmp.eq.s32.totalorder %s24, 1
    %p63 = por %p61, %p62
    %p64 = scmp.ne.s32.totalorder %s55, %s56
    %p65 = scmp.eq.s32.totalorder %s24, 0
    %p66 = por %p64, %p65
    %p67 = scmp.ne.s32.totalorder %s55, %s56
    %p68 = scmp.eq.s32.totalorder %s25, 1
    %p69 = por %p67, %p68
    %p71 = scmp.ne.s32.totalorder %s56, %s70
    %p72 = scmp.eq.s32.totalorder %s25, 0
    %p73 = por %p71, %p72
    %s75 = sadd.s32 %s74, 1
    %p78 = scmp.eq.s32.totalorder %s19, 1
    %p79 = scmp.ne.s32.totalorder %s74, %s76
    %p80 = scmp.eq.s32.totalorder %s19, 0
    %p81 = por %p79, %p80
    %p82 = scmp.ne.s32.totalorder %s74, %s76
    %p83 = scmp.eq.s32.totalorder %s24, 1
    %p84 = por %p82, %p83
    %p85 = scmp.ne.s32.totalorder %s76, %s77
    %p86 = scmp.eq.s32.totalorder %s24, 0
    %p87 = por %p85, %p86
    %p88 = scmp.ne.s32.totalorder %s76, %s77
    %p89 = scmp.eq.s32.totalorder %s25, 1
    %p90 = por %p88, %p89
    %p92 = scmp.ne.s32.totalorder %s77, %s91
    %p93 = scmp.eq.s32.totalorder %s25, 0
    %p94 = por %p92, %p93
    %s96 = sadd.s32 %s95, 1
    %p99 = scmp.eq.s32.totalorder %s19, 1
    %p100 = scmp.ne.s32.totalorder %s95, %s97
    %p101 = scmp.eq.s32.totalorder %s19, 0
    %p102 = por %p100, %p101
    %p103 = scmp.ne.s32.totalorder %s95, %s97
    %p104 = scmp.eq.s32.totalorder %s24, 1
    %p105 = por %p103, %p104
    %p106 = scmp.ne.s32.totalorder %s97, %s98
    %p107 = scmp.eq.s32.totalorder %s24, 0
    %p108 = por %p106, %p107
    %p109 = scmp.ne.s32.totalorder %s97, %s98
    %p110 = scmp.eq.s32.totalorder %s25, 1
    %p111 = por %p109, %p110
    %p113 = scmp.ne.s32.totalorder %s98, %s112
    %p114 = scmp.eq.s32.totalorder %s25, 0
    %p115 = por %p113, %p114
    %s117 = sadd.s32 %s116, 1
    %p120 = scmp.eq.s32.totalorder %s19, 1
    %p121 = scmp.ne.s32.totalorder %s116, %s118
    %p122 = scmp.eq.s32.totalorder %s19, 0
    %p123 = por %p121, %p122
    %p124 = scmp.ne.s32.totalorder %s116, %s118
    %p125 = scmp.eq.s32.totalorder %s24, 1
    %p126 = por %p124, %p125
    %p127 = scmp.ne.s32.totalorder %s118, %s119
    %p128 = scmp.eq.s32.totalorder %s24, 0
    %p129 = por %p127, %p128
    %p130 = scmp.ne.s32.totalorder %s118, %s119
    %p131 = scmp.eq.s32.totalorder %s25, 1
    %p132 = por %p130, %p131
    %p134 = scmp.ne.s32.totalorder %s119, %s133
    %p135 = scmp.eq.s32.totalorder %s25, 0
    %p136 = por %p134, %p135
    %s138 = sadd.s32 %s137, 1
    %p141 = scmp.eq.s32.totalorder %s19, 1
    %p142 = scmp.ne.s32.totalorder %s137, %s139
    %p143 = scmp.eq.s32.totalorder %s19, 0
    %p144 = por %p142, %p143
    %p145 = scmp.ne.s32.totalorder %s137, %s139
    %p146 = scmp.eq.s32.totalorder %s24, 1
    %p147 = por %p145, %p146
    %p148 = scmp.ne.s32.totalorder %s139, %s140
    %p149 = scmp.eq.s32.totalorder %s24, 0
    %p150 = por %p148, %p149
    %p151 = scmp.ne.s32.totalorder %s139, %s140
    %p152 = scmp.eq.s32.totalorder %s25, 1
    %p153 = por %p151, %p152
    %p155 = scmp.ne.s32.totalorder %s140, %s154
    %p156 = scmp.eq.s32.totalorder %s25, 0
    %p157 = por %p155, %p156
    %s159 = sadd.s32 %s158, 1
    %p162 = scmp.eq.s32.totalorder %s19, 1
    %p163 = scmp.ne.s32.totalorder %s158, %s160
    %p164 = scmp.eq.s32.totalorder %s19, 0
    %p165 = por %p163, %p164
    %p166 = scmp.ne.s32.totalorder %s158, %s160
    %p167 = scmp.eq.s32.totalorder %s24, 1
    %p168 = por %p166, %p167
    %p169 = scmp.ne.s32.totalorder %s160, %s161
    %p170 = scmp.eq.s32.totalorder %s24, 0
    %p171 = por %p169, %p170
    %p172 = scmp.ne.s32.totalorder %s160, %s161
    %p173 = scmp.eq.s32.totalorder %s25, 1
    %p174 = por %p172, %p173
    %p176 = scmp.ne.s32.totalorder %s161, %s175
    %p177 = scmp.eq.s32.totalorder %s25, 0
    %p178 = por %p176, %p177
    %s180 = sadd.s32 %s179, 1
    %p183 = scmp.eq.s32.totalorder %s19, 1
    %p184 = scmp.ne.s32.totalorder %s179, %s181
    %p185 = scmp.eq.s32.totalorder %s19, 0
    %p186 = por %p184, %p185
    %p187 = scmp.ne.s32.totalorder %s179, %s181
    %p188 = scmp.eq.s32.totalorder %s24, 1
    %p189 = por %p187, %p188
    %p190 = scmp.ne.s32.totalorder %s181, %s182
    %p191 = scmp.eq.s32.totalorder %s24, 0
    %p192 = por %p190, %p191
    %p193 = scmp.ne.s32.totalorder %s181, %s182
    %p194 = scmp.eq.s32.totalorder %s25, 1
    %p195 = por %p193, %p194
    %p197 = scmp.ne.s32.totalorder %s182, %s196
    %p198 = scmp.eq.s32.totalorder %s25, 0
    %p199 = por %p197, %p198
    %s201 = sadd.s32 %s200, 1
    %p204 = scmp.eq.s32.totalorder %s19, 1
    %p205 = scmp.ne.s32.totalorder %s200, %s202
    %p206 = scmp.eq.s32.totalorder %s19, 0
    %p207 = por %p205, %p206
    %p208 = scmp.ne.s32.totalorder %s200, %s202
    %p209 = scmp.eq.s32.totalorder %s24, 1
    %p210 = por %p208, %p209
    %p211 = scmp.ne.s32.totalorder %s202, %s203
    %p212 = scmp.eq.s32.totalorder %s24, 0
    %p213 = por %p211, %p212
    %p214 = scmp.ne.s32.totalorder %s202, %s203
    %p215 = scmp.eq.s32.totalorder %s25, 1
    %p216 = por %p214, %p215
    %p218 = scmp.ne.s32.totalorder %s203, %s217
    %p219 = scmp.eq.s32.totalorder %s25, 0
    %p220 = por %p218, %p219
    %s222 = sadd.s32 %s221, 1
    %p225 = scmp.eq.s32.totalorder %s19, 1
    %p226 = scmp.ne.s32.totalorder %s221, %s223
    %p227 = scmp.eq.s32.totalorder %s19, 0
    %p228 = por %p226, %p227
    %p229 = scmp.ne.s32.totalorder %s221, %s223
    %p230 = scmp.eq.s32.totalorder %s24, 1
    %p231 = por %p229, %p230
    %p232 = scmp.ne.s32.totalorder %s223, %s224
    %p233 = scmp.eq.s32.totalorder %s24, 0
    %p234 = por %p232, %p233
    %p235 = scmp.ne.s32.totalorder %s223, %s224
    %p236 = scmp.eq.s32.totalorder %s25, 1
    %p237 = por %p235, %p236
    %p239 = scmp.ne.s32.totalorder %s224, %s238
    %p240 = scmp.eq.s32.totalorder %s25, 0
    %p241 = por %p239, %p240
    %s243 = sadd.s32 %s242, 1
    %p246 = scmp.eq.s32.totalorder %s19, 1
    %p247 = scmp.ne.s32.totalorder %s242, %s244
    %p248 = scmp.eq.s32.totalorder %s19, 0
    %p249 = por %p247, %p248
    %p250 = scmp.ne.s32.totalorder %s242, %s244
    %p251 = scmp.eq.s32.totalorder %s24, 1
    %p252 = por %p250, %p251
    %p253 = scmp.ne.s32.totalorder %s244, %s245
    %p254 = scmp.eq.s32.totalorder %s24, 0
    %p255 = por %p253, %p254
    %p256 = scmp.ne.s32.totalorder %s244, %s245
    %p257 = scmp.eq.s32.totalorder %s25, 1
    %p258 = por %p256, %p257
    %p260 = scmp.ne.s32.totalorder %s245, %s259
    %p261 = scmp.eq.s32.totalorder %s25, 0
    %p262 = por %p260, %p261
    %s264 = sadd.s32 %s263, 1
    %p267 = scmp.eq.s32.totalorder %s19, 1
    %p268 = scmp.ne.s32.totalorder %s263, %s265
    %p269 = scmp.eq.s32.totalorder %s19, 0
    %p270 = por %p268, %p269
    %p271 = scmp.ne.s32.totalorder %s263, %s265
    %p272 = scmp.eq.s32.totalorder %s24, 1
    %p273 = por %p271, %p272
    %p274 = scmp.ne.s32.totalorder %s265, %s266
    %p275 = scmp.eq.s32.totalorder %s24, 0
    %p276 = por %p274, %p275
    %p277 = scmp.ne.s32.totalorder %s265, %s266
    %p278 = scmp.eq.s32.totalorder %s25, 1
    %p279 = por %p277, %p278
    %p281 = scmp.ne.s32.totalorder %s266, %s280
    %p282 = scmp.eq.s32.totalorder %s25, 0
    %p283 = por %p281, %p282
    %s285 = sadd.s32 %s284, 1
    %p288 = scmp.eq.s32.totalorder %s19, 1
    %p289 = scmp.ne.s32.totalorder %s284, %s286
    %p290 = scmp.eq.s32.totalorder %s19, 0
    %p291 = por %p289, %p290
    %p292 = scmp.ne.s32.totalorder %s284, %s286
    %p293 = scmp.eq.s32.totalorder %s24, 1
    %p294 = por %p292, %p293
    %p295 = scmp.ne.s32.totalorder %s286, %s287
    %p296 = scmp.eq.s32.totalorder %s24, 0
    %p297 = por %p295, %p296
    %p298 = scmp.ne.s32.totalorder %s286, %s287
    %p299 = scmp.eq.s32.totalorder %s25, 1
    %p300 = por %p298, %p299
    %p302 = scmp.ne.s32.totalorder %s287, %s301
    %p303 = scmp.eq.s32.totalorder %s25, 0
    %p304 = por %p302, %p303
    %s305 = ssub.s32 %s19, %s26
    %p306 = scmp.eq.s32.totalorder %s305, 0
    %s308 = sadd.s32 %s307, 1
    %s309 = scalar_select %p306, %s307, %s308
    %p312 = pneg %p306
    %p313 = scmp.eq.s32.totalorder %s19, 1
    %p314 = por %p312, %p313
    %p315 = scmp.ne.s32.totalorder %s307, %s310
    %p316 = scmp.eq.s32.totalorder %s19, 0
    %p317 = por %p315, %p316
    %p318 = scmp.ne.s32.totalorder %s307, %s310
    %p319 = scmp.eq.s32.totalorder %s24, 1
    %p320 = por %p318, %p319
    %p321 = scmp.ne.s32.totalorder %s310, %s311
    %p322 = scmp.eq.s32.totalorder %s24, 0
    %p323 = por %p321, %p322
    %p324 = scmp.ne.s32.totalorder %s310, %s311
    %p325 = scmp.eq.s32.totalorder %s25, 1
    %p326 = por %p324, %p325
    %p328 = scmp.ne.s32.totalorder %s311, %s327
    %p329 = scmp.eq.s32.totalorder %s25, 0
    %p330 = por %p328, %p329
    %p331 = scmp.le.s32.totalorder 1, %s19
    %p332 = scmp.lt.s32.totalorder %s19, 3
    %p333 = pnand %p331, %p332
    %p334 = pneg %p333
    // Predicated region
    $region9: #{transformer_forward.5} parent=5 // pred_check
      _
    $region10: #{transformer_forward.5} parent=5 // pred_check_branch
      %336 = sbr.rel (%p333) target = $region12
    $region11: #{transformer_forward.5} parent=5 // pred_region
      %s337 = ssub.s32 %s19, 1
      // Predicated region
      $region13: #{transformer_forward.5} parent=11 // pred_check
        %p338 = pneg %p66
      $region14: #{transformer_forward.5} parent=11 // pred_check_branch
        %340 = sbr.rel (%p338) target = $region16
      $region15: #{transformer_forward.5} parent=11 // pred_region
        _
      $region16: #{transformer_forward.5} parent=11 // pred_fallthru
        _
      // Predicated region
      $region17: #{transformer_forward.5} parent=11 // pred_check
        %p341 = pneg %p87
      $region18: #{transformer_forward.5} parent=11 // pred_check_branch
        %343 = sbr.rel (%p341) target = $region20
      $region19: #{transformer_forward.5} parent=11 // pred_region
        _
      $region20: #{transformer_forward.5} parent=11 // pred_fallthru
        _
      // Predicated region
      $region21: #{transformer_forward.5} parent=11 // pred_check
        %p344 = pneg %p108
      $region22: #{transformer_forward.5} parent=11 // pred_check_branch
        %346 = sbr.rel (%p344) target = $region24
      $region23: #{transformer_forward.5} parent=11 // pred_region
        _
      $region24: #{transformer_forward.5} parent=11 // pred_fallthru
        _
      // Predicated region
      $region25: #{transformer_forward.5} parent=11 // pred_check
        %p347 = pneg %p129
      $region26: #{transformer_forward.5} parent=11 // pred_check_branch
        %349 = sbr.rel (%p347) target = $region28
      $region27: #{transformer_forward.5} parent=11 // pred_region
        _
      $region28: #{transformer_forward.5} parent=11 // pred_fallthru
        _
      // Predicated region
      $region29: #{transformer_forward.5} parent=11 // pred_check
        %p350 = pneg %p150
      $region30: #{transformer_forward.5} parent=11 // pred_check_branch
        %352 = sbr.rel (%p350) target = $region32
      $region31: #{transformer_forward.5} parent=11 // pred_region
        _
      $region32: #{transformer_forward.5} parent=11 // pred_fallthru
        _
      // Predicated region
      $region33: #{transformer_forward.5} parent=11 // pred_check
        %p353 = pneg %p171
      $region34: #{transformer_forward.5} parent=11 // pred_check_branch
        %355 = sbr.rel (%p353) target = $region36
      $region35: #{transformer_forward.5} parent=11 // pred_region
        _
      $region36: #{transformer_forward.5} parent=11 // pred_fallthru
        _
      // Predicated region
      $region37: #{transformer_forward.5} parent=11 // pred_check
        %p356 = pneg %p192
      $region38: #{transformer_forward.5} parent=11 // pred_check_branch
        %358 = sbr.rel (%p356) target = $region40
      $region39: #{transformer_forward.5} parent=11 // pred_region
        _
      $region40: #{transformer_forward.5} parent=11 // pred_fallthru
        _
      // Predicated region
      $region41: #{transformer_forward.5} parent=11 // pred_check
        %p359 = pneg %p213
      $region42: #{transformer_forward.5} parent=11 // pred_check_branch
        %361 = sbr.rel (%p359) target = $region44
      $region43: #{transformer_forward.5} parent=11 // pred_region
        _
      $region44: #{transformer_forward.5} parent=11 // pred_fallthru
        _
      // Predicated region
      $region45: #{transformer_forward.5} parent=11 // pred_check
        %p362 = pneg %p234
      $region46: #{transformer_forward.5} parent=11 // pred_check_branch
        %364 = sbr.rel (%p362) target = $region48
      $region47: #{transformer_forward.5} parent=11 // pred_region
        _
      $region48: #{transformer_forward.5} parent=11 // pred_fallthru
        _
      // Predicated region
      $region49: #{transformer_forward.5} parent=11 // pred_check
        %p365 = pneg %p255
      $region50: #{transformer_forward.5} parent=11 // pred_check_branch
        %367 = sbr.rel (%p365) target = $region52
      $region51: #{transformer_forward.5} parent=11 // pred_region
        _
      $region52: #{transformer_forward.5} parent=11 // pred_fallthru
        _
      // Predicated region
      $region53: #{transformer_forward.5} parent=11 // pred_check
        %p368 = pneg %p276
      $region54: #{transformer_forward.5} parent=11 // pred_check_branch
        %370 = sbr.rel (%p368) target = $region56
      $region55: #{transformer_forward.5} parent=11 // pred_region
        _
      $region56: #{transformer_forward.5} parent=11 // pred_fallthru
        _
      // Predicated region
      $region57: #{transformer_forward.5} parent=11 // pred_check
        %p371 = pneg %p297
      $region58: #{transformer_forward.5} parent=11 // pred_check_branch
        %373 = sbr.rel (%p371) target = $region60
      $region59: #{transformer_forward.5} parent=11 // pred_region
        _
      $region60: #{transformer_forward.5} parent=11 // pred_fallthru
        _
    $region12: #{transformer_forward.5} parent=5 // pred_fallthru
      _
    %p374 = scmp.lt.s32.totalorder %s19, 2
    // Predicated region
    $region61: #{transformer_forward.5} parent=5 // pred_check
      %p375 = pneg %p374
    $region62: #{transformer_forward.5} parent=5 // pred_check_branch
      %377 = sbr.rel (%p375) target = $region64
    $region63: #{transformer_forward.5} parent=5 // pred_region
      // Predicated region
      $region65: #{transformer_forward.5} parent=63 // pred_check
        %p378 = pneg %p39
      $region66: #{transformer_forward.5} parent=63 // pred_check_branch
        %380 = sbr.rel (%p378) target = $region68
      $region67: #{transformer_forward.5} parent=63 // pred_region
        %p381 = scmp.lt.s32.totalorder %s19, 1
        %s382 = scalar_select %p381, %s19, 1
        %s383 = smul.addr %s382, 4
        %s384 = scalar_lea.vmem %s0, %s383
      $region68: #{transformer_forward.5} parent=63 // pred_fallthru
        _
    $region64: #{transformer_forward.5} parent=5 // pred_fallthru
      _
    %p385 = scmp.le.s32.totalorder 1, %s19
    %p386 = scmp.lt.s32.totalorder %s19, 3
    %p387 = pnand %p385, %p386
    %p388 = pneg %p387
    // Predicated region
    $region69: #{transformer_forward.5} parent=5 // pred_check
      _
    $region70: #{transformer_forward.5} parent=5 // pred_check_branch
      %390 = sbr.rel (%p387) target = $region72
    $region71: #{transformer_forward.5} parent=5 // pred_region
      %s391 = ssub.s32 %s19, 1
      %p392 = scmp.lt.s32.totalorder %s24, 1
      %s393 = scalar_select %p392, %s24, 1
      %s394 = smul.addr %s393, 4
      %s395 = scalar_lea.vmem %s0, %s394
      %p396 = pneg %p45
      %p397 = pneg %p42
      %p398 = pneg %p66
      %p399 = pneg %p63
      %p400 = pneg %p87
      %p401 = pneg %p84
      %p402 = pneg %p108
      %p403 = pneg %p105
      %p404 = pneg %p129
      %p405 = pneg %p126
      %p406 = pneg %p150
      %p407 = pneg %p147
      %p408 = pneg %p171
      %p409 = pneg %p168
      %p410 = pneg %p192
      %p411 = pneg %p189
      %p412 = pneg %p213
      %p413 = pneg %p210
      %p414 = pneg %p234
      %p415 = pneg %p231
      %p416 = pneg %p255
      %p417 = pneg %p252
      %p418 = pneg %p276
      %p419 = pneg %p273
      %p420 = pneg %p297
      %p421 = pneg %p294
      %p422 = pneg %p323
      %p423 = pneg %p320
      %p424 = scmp.lt.s32.totalorder %s24, 1
      %s425 = scalar_select %p424, %s24, 1
      %s426 = smul.addr %s425, 4
      %s427 = scalar_lea.vmem %s13, %s426
      %p428 = scmp.lt.s32.totalorder %s24, 1
      %s429 = scalar_select %p428, %s24, 1
      %s430 = smul.addr %s429, 4
      %s431 = scalar_lea.vmem %s0, %s430
      %p432 = scmp.lt.s32.totalorder %s24, 1
      %s433 = scalar_select %p432, %s24, 1
      %s434 = smul.addr %s433, 4
      %s435 = scalar_lea.vmem %s13, %s434
      %v437 = vld [vmem:[%s431] sm:$0xf]
      %v438 = vpack.c.bf16 %v437, %v437
      %v439 = vld [vmem:[%s4] sm:$0x1]
      %v441 = vlaneseq
      %v442 = vshrl.u32 %v441, 7
      %v443 = vsub.s32 0, %v442
      %v444 = vrot.slane %v439, %v443
      %v446 = vadd.f32 %v437, %v444
      %v447 = vld [vmem:[%s1] sm:$0xf]
      %v448 = vld [vmem:[%s1 + $0x4] sm:$0xf]
      %v449 = vld [vmem:[%s1 + $0x8] sm:$0xf]
      %v450 = vld [vmem:[%s1 + $0xc] sm:$0xf]
      %v451 = vld [vmem:[%s2] sm:$0x1]
      %v453 = vlaneseq
      %v454 = vshrl.u32 %v453, 7
      %v455 = vsub.s32 0, %v454
      %v456 = vrot.slane %v451, %v455
      %v462 = vunpack.c.l.b16 %v447
      %v463 = vunpack.c.l.b16 %v448
      %v464 = vunpack.c.l.b16 %v449
      %v465 = vunpack.c.l.b16 %v450
      %v466 = vpack.c.b16 %v463, %v462
      %v467 = vpack.c.b16 %v465, %v464
      %vm470 = vcmask 261120
      %v472 = vsel %vm470, %v438, 0
      %474 = vmatprep.subr.bf16.mxu0 0
      %475 = vmatpush1.bf16.msra.mxu0 %v466
      %476 = vmatprep.subr.bf16.mxu0 0
      %477 = vmatpush1.bf16.msra.mxu0 %v467
      %478 = vmatprep.subr.bf16.mxu0 0
      %479 = vmatpush1.bf16.msra.mxu0 0
      %480 = vmatprep.subr.bf16.mxu0 0
      %481 = vmatpush1.bf16.msra.mxu0 0
      %482 = vmatprep.subr.bf16.mxu0 0
      %483 = vmatpush1.bf16.msra.mxu0 0
      %484 = vmatprep.subr.bf16.mxu0 0
      %485 = vmatpush1.bf16.msra.mxu0 0
      %486 = vmatprep.subr.bf16.mxu0 0
      %487 = vmatpush1.bf16.msra.mxu0 0
      %488 = vmatprep.subr.bf16.mxu0 0
      %489 = vmatpush1.bf16.msra.mxu0 0
      %490 = vmatprep.subr.bf16.mxu0 0
      %491 = vmatpush1.bf16.msra.mxu0 0
      %492 = vmatprep.subr.bf16.mxu0 0
      %493 = vmatpush1.bf16.msra.mxu0 0
      %494 = vmatprep.subr.bf16.mxu0 0
      %495 = vmatpush1.bf16.msra.mxu0 0
      %496 = vmatprep.subr.bf16.mxu0 0
      %497 = vmatpush1.bf16.msra.mxu0 0
      %498 = vmatprep.subr.bf16.mxu0 0
      %499 = vmatpush1.bf16.msra.mxu0 0
      %500 = vmatprep.subr.bf16.mxu0 0
      %501 = vmatpush1.bf16.msra.mxu0 0
      %502 = vmatprep.subr.bf16.mxu0 0
      %503 = vmatpush1.bf16.msra.mxu0 0
      %504 = vmatprep.subr.bf16.mxu0 0
      %505 = vmatpush1.bf16.msra.mxu0 0
      %506 = vmatprep.mubr.bf16.mxu0 0
      %507 = vmatmul.mubr.bf16.gmra.mrb[0].mxu0 %v472
      %v508 = vpop.f32.mrb[0].mxu0
      %v509 = vadd.f32 %v456, %v508
      %v510 = vpop.f32.mrb[0].mxu0
      %v511 = vpop.f32.mrb[0].mxu0
      %v512 = vpop.f32.mrb[0].mxu0
      %513 = vdwg.mxu0
      %s514 = scalar_lea.vmem %s1, 64
      %v515 = vld [vmem:[%s514] sm:$0xf]
      %v516 = vld [vmem:[%s514 + $0x4] sm:$0xf]
      %v517 = vld [vmem:[%s514 + $0x8] sm:$0xf]
      %v518 = vld [vmem:[%s514 + $0xc] sm:$0xf]
      %s519 = scalar_lea.vmem %s2, 4
      %v520 = vld [vmem:[%s519] sm:$0x1]
      %v522 = vlaneseq
      %v523 = vshrl.u32 %v522, 7
      %v524 = vsub.s32 0, %v523
      %v525 = vrot.slane %v520, %v524
      %v531 = vunpack.c.l.b16 %v515
      %v532 = vunpack.c.l.b16 %v516
      %v533 = vunpack.c.l.b16 %v517
      %v534 = vunpack.c.l.b16 %v518
      %v535 = vpack.c.b16 %v532, %v531
      %v536 = vpack.c.b16 %v534, %v533
      %539 = vmatprep.subr.bf16.mxu0 0
      %540 = vmatpush1.bf16.msra.mxu0 %v535
      %541 = vmatprep.subr.bf16.mxu0 0
      %542 = vmatpush1.bf16.msra.mxu0 %v536
      %543 = vmatprep.subr.bf16.mxu0 0
      %544 = vmatpush1.bf16.msra.mxu0 0
      %545 = vmatprep.subr.bf16.mxu0 0
      %546 = vmatpush1.bf16.msra.mxu0 0
      %547 = vmatprep.subr.bf16.mxu0 0
      %548 = vmatpush1.bf16.msra.mxu0 0
      %549 = vmatprep.subr.bf16.mxu0 0
      %550 = vmatpush1.bf16.msra.mxu0 0
      %551 = vmatprep.subr.bf16.mxu0 0
      %552 = vmatpush1.bf16.msra.mxu0 0
      %553 = vmatprep.subr.bf16.mxu0 0
      %554 = vmatpush1.bf16.msra.mxu0 0
      %555 = vmatprep.subr.bf16.mxu0 0
      %556 = vmatpush1.bf16.msra.mxu0 0
      %557 = vmatprep.subr.bf16.mxu0 0
      %558 = vmatpush1.bf16.msra.mxu0 0
      %559 = vmatprep.subr.bf16.mxu0 0
      %560 = vmatpush1.bf16.msra.mxu0 0
      %561 = vmatprep.subr.bf16.mxu0 0
      %562 = vmatpush1.bf16.msra.mxu0 0
      %563 = vmatprep.subr.bf16.mxu0 0
      %564 = vmatpush1.bf16.msra.mxu0 0
      %565 = vmatprep.subr.bf16.mxu0 0
      %566 = vmatpush1.bf16.msra.mxu0 0
      %567 = vmatprep.subr.bf16.mxu0 0
      %568 = vmatpush1.bf16.msra.mxu0 0
      %569 = vmatprep.subr.bf16.mxu0 0
      %570 = vmatpush1.bf16.msra.mxu0 0
      %571 = vmatprep.mubr.bf16.mxu0 0
      %572 = vmatmul.mubr.bf16.gmra.mrb[0].mxu0 %v472
      %v573 = vpop.f32.mrb[0].mxu0
      %v574 = vadd.f32 %v525, %v573
      %v575 = vpop.f32.mrb[0].mxu0
      %v576 = vpop.f32.mrb[0].mxu0
      %v577 = vpop.f32.mrb[0].mxu0
      %578 = vdwg.mxu0
      %s579 = scalar_lea.vmem %s1, 128
      %v580 = vld [vmem:[%s579] sm:$0xf]
      %v581 = vld [vmem:[%s579 + $0x4] sm:$0xf]
      %v582 = vld [vmem:[%s579 + $0x8] sm:$0xf]
      %v583 = vld [vmem:[%s579 + $0xc] sm:$0xf]
      %s584 = scalar_lea.vmem %s2, 8
      %v585 = vld [vmem:[%s584] sm:$0x1]
      %v587 = vlaneseq
      %v588 = vshrl.u32 %v587, 7
      %v589 = vsub.s32 0, %v588
      %v590 = vrot.slane %v585, %v589
      %v596 = vunpack.c.l.b16 %v580
      %v597 = vunpack.c.l.b16 %v581
      %v598 = vunpack.c.l.b16 %v582
      %v599 = vunpack.c.l.b16 %v583
      %v600 = vpack.c.b16 %v597, %v596
      %v601 = vpack.c.b16 %v599, %v598
      %604 = vmatprep.subr.bf16.mxu0 0
      %605 = vmatpush1.bf16.msra.mxu0 %v600
      %606 = vmatprep.subr.bf16.mxu0 0
      %607 = vmatpush1.bf16.msra.mxu0 %v601
      %608 = vmatprep.subr.bf16.mxu0 0
      %609 = vmatpush1.bf16.msra.mxu0 0
      %610 = vmatprep.subr.bf16.mxu0 0
      %611 = vmatpush1.bf16.msra.mxu0 0
      %612 = vmatprep.subr.bf16.mxu0 0
      %613 = vmatpush1.bf16.msra.mxu0 0
      %614 = vmatprep.subr.bf16.mxu0 0
      %615 = vmatpush1.bf16.msra.mxu0 0
      %616 = vmatprep.subr.bf16.mxu0 0
      %617 = vmatpush1.bf16.msra.mxu0 0
      %618 = vmatprep.subr.bf16.mxu0 0
      %619 = vmatpush1.bf16.msra.mxu0 0
      %620 = vmatprep.subr.bf16.mxu0 0
      %621 = vmatpush1.bf16.msra.mxu0 0
      %622 = vmatprep.subr.bf16.mxu0 0
      %623 = vmatpush1.bf16.msra.mxu0 0
      %624 = vmatprep.subr.bf16.mxu0 0
      %625 = vmatpush1.bf16.msra.mxu0 0
      %626 = vmatprep.subr.bf16.mxu0 0
      %627 = vmatpush1.bf16.msra.mxu0 0
      %628 = vmatprep.subr.bf16.mxu0 0
      %629 = vmatpush1.bf16.msra.mxu0 0
      %630 = vmatprep.subr.bf16.mxu0 0
      %631 = vmatpush1.bf16.msra.mxu0 0
      %632 = vmatprep.subr.bf16.mxu0 0
      %633 = vmatpush1.bf16.msra.mxu0 0
      %634 = vmatprep.subr.bf16.mxu0 0
      %635 = vmatpush1.bf16.msra.mxu0 0
      %636 = vmatprep.mubr.bf16.mxu0 0
      %637 = vmatmul.mubr.bf16.gmra.mrb[0].mxu0 %v472
      %v638 = vpop.f32.mrb[0].mxu0
      %v639 = vadd.f32 %v590, %v638
      %v640 = vpop.f32.mrb[0].mxu0
      %v641 = vpop.f32.mrb[0].mxu0
      %v642 = vpop.f32.mrb[0].mxu0
      %643 = vdwg.mxu0
      %v644 = vmul.f32 %v509, 0.35355338
      %v645 = vpack.c.bf16 %v644, %v644
      %v646 = vpack.c.bf16 %v574, %v574
      %vm647 = vcmask 64512
      %v649 = vsel %vm647, %v645, 0
      %v652 = vsel %vm647, %v646, 0
      %654 = vmatprep.subr.bf16.mxu0 0
      %655 = vmatpush1.bf16.xpose.msra.mxu0 %v652
      %656 = vmatprep.subr.bf16.mxu0 0
      %657 = vmatpush1.bf16.xpose.msra.mxu0 0
      %658 = vmatprep.subr.bf16.mxu0 0
      %659 = vmatpush1.bf16.xpose.msra.mxu0 0
      %660 = vmatprep.subr.bf16.mxu0 0
      %661 = vmatpush1.bf16.xpose.msra.mxu0 0
      %662 = vmatprep.subr.bf16.mxu0 0
      %663 = vmatpush1.bf16.xpose.msra.mxu0 0
      %664 = vmatprep.subr.bf16.mxu0 0
      %665 = vmatpush1.bf16.xpose.msra.mxu0 0
      %666 = vmatprep.subr.bf16.mxu0 0
      %667 = vmatpush1.bf16.xpose.msra.mxu0 0
      %668 = vmatprep.subr.bf16.mxu0 0
      %669 = vmatpush1.bf16.xpose.msra.mxu0 0
      %670 = vmatprep.subr.bf16.mxu0 0
      %671 = vmatpush1.bf16.xpose.msra.mxu0 0
      %672 = vmatprep.subr.bf16.mxu0 0
      %673 = vmatpush1.bf16.xpose.msra.mxu0 0
      %674 = vmatprep.subr.bf16.mxu0 0
      %675 = vmatpush1.bf16.xpose.msra.mxu0 0
      %676 = vmatprep.subr.bf16.mxu0 0
      %677 = vmatpush1.bf16.xpose.msra.mxu0 0
      %678 = vmatprep.subr.bf16.mxu0 0
      %679 = vmatpush1.bf16.xpose.msra.mxu0 0
      %680 = vmatprep.subr.bf16.mxu0 0
      %681 = vmatpush1.bf16.xpose.msra.mxu0 0
      %682 = vmatprep.subr.bf16.mxu0 0
      %683 = vmatpush1.bf16.xpose.msra.mxu0 0
      %684 = vmatprep.subr.bf16.mxu0 0
      %685 = vmatpush1.bf16.xpose.msra.mxu0 0
      %686 = vmatprep.mubr.bf16.mxu0 0
      %687 = vmatmul.mubr.bf16.gmra.mrb[0].mxu0 %v649
      %v688 = vpop.f32.mrb[0].mxu0
      %v689 = vadd.f32 0.0, %v688
      %v690 = vpop.f32.mrb[0].mxu0
      %v691 = vpop.f32.mrb[0].mxu0
      %v692 = vpop.f32.mrb[0].mxu0
      %693 = vdwg.mxu0
      %vm694 = vcmask 27648
      %v695 = vsel %vm694, %v689, -inf
      %696 = vmax.xlane.f32.xlu0 %v695
      %v697 = vpop.xlane.xlu0 %696
      %v698 = vsub.f32 %v689, %v697
      %v699 = vmul.f32 %v698, 1.442695
      %v700 = vpow.pop %v699
      %v701 = vsel %vm694, %v700, 0.0
      %702 = vadd.xlane.f32.xlu0 %v701
      %v703 = vpop.xlane.xlu0 %702
      %v704 = vrcp.pop %v703
      %v705 = vmul.f32 %v700, %v704
      %v706 = vpack.c.bf16 %v705, %v705
      %v707 = vpack.c.bf16 %v639, %v639
      %vm708 = vcmask 31744
      %v710 = vsel %vm708, %v706, 0
      %vm712 = vcmask 1041408
      %v714 = vsel %vm712, %v707, 0
      %716 = vmatprep.subr.bf16.mxu0 0
      %717 = vmatpush1.bf16.msra.mxu0 %v714
      %718 = vmatprep.subr.bf16.mxu0 0
      %719 = vmatpush1.bf16.msra.mxu0 0
      %720 = vmatprep.subr.bf16.mxu0 0
      %721 = vmatpush1.bf16.msra.mxu0 0
      %722 = vmatprep.subr.bf16.mxu0 0
      %723 = vmatpush1.bf16.msra.mxu0 0
      %724 = vmatprep.subr.bf16.mxu0 0
      %725 = vmatpush1.bf16.msra.mxu0 0
      %726 = vmatprep.subr.bf16.mxu0 0
      %727 = vmatpush1.bf16.msra.mxu0 0
      %728 = vmatprep.subr.bf16.mxu0 0
      %729 = vmatpush1.bf16.msra.mxu0 0
      %730 = vmatprep.subr.bf16.mxu0 0
      %731 = vmatpush1.bf16.msra.mxu0 0
      %732 = vmatprep.subr.bf16.mxu0 0
      %733 = vmatpush1.bf16.msra.mxu0 0
      %734 = vmatprep.subr.bf16.mxu0 0
      %735 = vmatpush1.bf16.msra.mxu0 0
      %736 = vmatprep.subr.bf16.mxu0 0
      %737 = vmatpush1.bf16.msra.mxu0 0
      %738 = vmatprep.subr.bf16.mxu0 0
      %739 = vmatpush1.bf16.msra.mxu0 0
      %740 = vmatprep.subr.bf16.mxu0 0
      %741 = vmatpush1.bf16.msra.mxu0 0
      %742 = vmatprep.subr.bf16.mxu0 0
      %743 = vmatpush1.bf16.msra.mxu0 0
      %744 = vmatprep.subr.bf16.mxu0 0
      %745 = vmatpush1.bf16.msra.mxu0 0
      %746 = vmatprep.subr.bf16.mxu0 0
      %747 = vmatpush1.bf16.msra.mxu0 0
      %748 = vmatprep.mubr.bf16.mxu0 0
      %749 = vmatmul.mubr.bf16.gmra.mrb[0].mxu0 %v710
      %v750 = vpop.f32.mrb[0].mxu0
      %v751 = vadd.f32 0.0, %v750
      %v752 = vpop.f32.mrb[0].mxu0
      %v753 = vpop.f32.mrb[0].mxu0
      %v754 = vpop.f32.mrb[0].mxu0
      %755 = vdwg.mxu0
      %v756 = vpack.c.bf16 %v751, %v751
      %v757 = vld [vmem:[%s3] sm:$0xf]
      %v759 = vsel %vm647, %v756, 0
      %vm761 = vcmask 1043456
      %v763 = vsel %vm761, %v757, 0
      %765 = vmatprep.subr.bf16.mxu0 0
      %766 = vmatpush1.bf16.msra.mxu0 %v763
      %767 = vmatprep.subr.bf16.mxu0 0
      %768 = vmatpush1.bf16.msra.mxu0 0
      %769 = vmatprep.subr.bf16.mxu0 0
      %770 = vmatpush1.bf16.msra.mxu0 0
      %771 = vmatprep.subr.bf16.mxu0 0
      %772 = vmatpush1.bf16.msra.mxu0 0
      %773 = vmatprep.subr.bf16.mxu0 0
      %774 = vmatpush1.bf16.msra.mxu0 0
      %775 = vmatprep.subr.bf16.mxu0 0
      %776 = vmatpush1.bf16.msra.mxu0 0
      %777 = vmatprep.subr.bf16.mxu0 0
      %778 = vmatpush1.bf16.msra.mxu0 0
      %779 = vmatprep.subr.bf16.mxu0 0
      %780 = vmatpush1.bf16.msra.mxu0 0
      %781 = vmatprep.subr.bf16.mxu0 0
      %782 = vmatpush1.bf16.msra.mxu0 0
      %783 = vmatprep.subr.bf16.mxu0 0
      %784 = vmatpush1.bf16.msra.mxu0 0
      %785 = vmatprep.subr.bf16.mxu0 0
      %786 = vmatpush1.bf16.msra.mxu0 0
      %787 = vmatprep.subr.bf16.mxu0 0
      %788 = vmatpush1.bf16.msra.mxu0 0
      %789 = vmatprep.subr.bf16.mxu0 0
      %790 = vmatpush1.bf16.msra.mxu0 0
      %791 = vmatprep.subr.bf16.mxu0 0
      %792 = vmatpush1.bf16.msra.mxu0 0
      %793 = vmatprep.subr.bf16.mxu0 0
      %794 = vmatpush1.bf16.msra.mxu0 0
      %795 = vmatprep.subr.bf16.mxu0 0
      %796 = vmatpush1.bf16.msra.mxu0 0
      %797 = vmatprep.mubr.bf16.mxu0 0
      %798 = vmatmul.mubr.bf16.gmra.mrb[0].mxu0 %v759
      %v799 = vpop.f32.mrb[0].mxu0
      %v800 = vadd.f32 0.0, %v799
      %v801 = vpop.f32.mrb[0].mxu0
      %v802 = vpop.f32.mrb[0].mxu0
      %v803 = vpop.f32.mrb[0].mxu0
      %804 = vdwg.mxu0
      %v805 = vadd.f32 %v446, %v800
      %s806 = scalar_lea.vmem %s1, 16
      %v807 = vld [vmem:[%s806] sm:$0xf]
      %v808 = vld [vmem:[%s806 + $0x4] sm:$0xf]
      %v809 = vld [vmem:[%s806 + $0x8] sm:$0xf]
      %v810 = vld [vmem:[%s806 + $0xc] sm:$0xf]
      %s811 = scalar_lea.vmem %s2, 1
      %v812 = vld [vmem:[%s811] sm:$0x1]
      %v814 = vlaneseq
      %v815 = vshrl.u32 %v814, 7
      %v816 = vsub.s32 0, %v815
      %v817 = vrot.slane %v812, %v816
      %v823 = vunpack.c.l.b16 %v807
      %v824 = vunpack.c.l.b16 %v808
      %v825 = vunpack.c.l.b16 %v809
      %v826 = vunpack.c.l.b16 %v810
      %v827 = vpack.c.b16 %v824, %v823
      %v828 = vpack.c.b16 %v826, %v825
      %831 = vmatprep.subr.bf16.mxu0 0
      %832 = vmatpush1.bf16.msra.mxu0 %v827
      %833 = vmatprep.subr.bf16.mxu0 0
      %834 = vmatpush1.bf16.msra.mxu0 %v828
      %835 = vmatprep.subr.bf16.mxu0 0
      %836 = vmatpush1.bf16.msra.mxu0 0
      %837 = vmatprep.subr.bf16.mxu0 0
      %838 = vmatpush1.bf16.msra.mxu0 0
      %839 = vmatprep.subr.bf16.mxu0 0
      %840 = vmatpush1.bf16.msra.mxu0 0
      %841 = vmatprep.subr.bf16.mxu0 0
      %842 = vmatpush1.bf16.msra.mxu0 0
      %843 = vmatprep.subr.bf16.mxu0 0
      %844 = vmatpush1.bf16.msra.mxu0 0
      %845 = vmatprep.subr.bf16.mxu0 0
      %846 = vmatpush1.bf16.msra.mxu0 0
      %847 = vmatprep.subr.bf16.mxu0 0
      %848 = vmatpush1.bf16.msra.mxu0 0
      %849 = vmatprep.subr.bf16.mxu0 0
      %850 = vmatpush1.bf16.msra.mxu0 0
      %851 = vmatprep.subr.bf16.mxu0 0
      %852 = vmatpush1.bf16.msra.mxu0 0
      %853 = vmatprep.subr.bf16.mxu0 0
      %854 = vmatpush1.bf16.msra.mxu0 0
      %855 = vmatprep.subr.bf16.mxu0 0
      %856 = vmatpush1.bf16.msra.mxu0 0
      %857 = vmatprep.subr.bf16.mxu0 0
      %858 = vmatpush1.bf16.msra.mxu0 0
      %859 = vmatprep.subr.bf16.mxu0 0
      %860 = vmatpush1.bf16.msra.mxu0 0
      %861 = vmatprep.subr.bf16.mxu0 0
      %862 = vmatpush1.bf16.msra.mxu0 0
      %863 = vmatprep.mubr.bf16.mxu0 0
      %864 = vmatmul.mubr.bf16.gmra.mrb[0].mxu0 %v472
      %v865 = vpop.f32.mrb[0].mxu0
      %v866 = vadd.f32 %v817, %v865
      %v867 = vpop.f32.mrb[0].mxu0
      %v868 = vpop.f32.mrb[0].mxu0
      %v869 = vpop.f32.mrb[0].mxu0
      %870 = vdwg.mxu0
      %s871 = scalar_lea.vmem %s1, 80
      %v872 = vld [vmem:[%s871] sm:$0xf]
      %v873 = vld [vmem:[%s871 + $0x4] sm:$0xf]
      %v874 = vld [vmem:[%s871 + $0x8] sm:$0xf]
      %v875 = vld [vmem:[%s871 + $0xc] sm:$0xf]
      %s876 = scalar_lea.vmem %s2, 5
      %v877 = vld [vmem:[%s876] sm:$0x1]
      %v879 = vlaneseq
      %v880 = vshrl.u32 %v879, 7
      %v881 = vsub.s32 0, %v880
      %v882 = vrot.slane %v877, %v881
      %v888 = vunpack.c.l.b16 %v872
      %v889 = vunpack.c.l.b16 %v873
      %v890 = vunpack.c.l.b16 %v874
      %v891 = vunpack.c.l.b16 %v875
      %v892 = vpack.c.b16 %v889, %v888
      %v893 = vpack.c.b16 %v891, %v890
      %896 = vmatprep.subr.bf16.mxu0 0
      %897 = vmatpush1.bf16.msra.mxu0 %v892
      %898 = vmatprep.subr.bf16.mxu0 0
      %899 = vmatpush1.bf16.msra.mxu0 %v893
      %900 = vmatprep.subr.bf16.mxu0 0
      %901 = vmatpush1.bf16.msra.mxu0 0
      %902 = vmatprep.subr.bf16.mxu0 0
      %903 = vmatpush1.bf16.msra.mxu0 0
      %904 = vmatprep.subr.bf16.mxu0 0
      %905 = vmatpush1.bf16.msra.mxu0 0
      %906 = vmatprep.subr.bf16.mxu0 0
      %907 = vmatpush1.bf16.msra.mxu0 0
      %908 = vmatprep.subr.bf16.mxu0 0
      %909 = vmatpush1.bf16.msra.mxu0 0
      %910 = vmatprep.subr.bf16.mxu0 0
      %911 = vmatpush1.bf16.msra.mxu0 0
      %912 = vmatprep.subr.bf16.mxu0 0
      %913 = vmatpush1.bf16.msra.mxu0 0
      %914 = vmatprep.subr.bf16.mxu0 0
      %915 = vmatpush1.bf16.msra.mxu0 0
      %916 = vmatprep.subr.bf16.mxu0 0
      %917 = vmatpush1.bf16.msra.mxu0 0
      %918 = vmatprep.subr.bf16.mxu0 0
      %919 = vmatpush1.bf16.msra.mxu0 0
      %920 = vmatprep.subr.bf16.mxu0 0
      %921 = vmatpush1.bf16.msra.mxu0 0
      %922 = vmatprep.subr.bf16.mxu0 0
      %923 = vmatpush1.bf16.msra.mxu0 0
      %924 = vmatprep.subr.bf16.mxu0 0
      %925 = vmatpush1.bf16.msra.mxu0 0
      %926 = vmatprep.subr.bf16.mxu0 0
      %927 = vmatpush1.bf16.msra.mxu0 0
      %928 = vmatprep.mubr.bf16.mxu0 0
      %929 = vmatmul.mubr.bf16.gmra.mrb[0].mxu0 %v472
      %v930 = vpop.f32.mrb[0].mxu0
      %v931 = vadd.f32 %v882, %v930
      %v932 = vpop.f32.mrb[0].mxu0
      %v933 = vpop.f32.mrb[0].mxu0
      %v934 = vpop.f32.mrb[0].mxu0
      %935 = vdwg.mxu0
      %s936 = scalar_lea.vmem %s1, 144
      %v937 = vld [vmem:[%s936] sm:$0xf]
      %v938 = vld [vmem:[%s936 + $0x4] sm:$0xf]
      %v939 = vld [vmem:[%s936 + $0x8] sm:$0xf]
      %v940 = vld [vmem:[%s936 + $0xc] sm:$0xf]
      %s941 = scalar_lea.vmem %s2, 9
      %v942 = vld [vmem:[%s941] sm:$0x1]
      %v944 = vlaneseq
      %v945 = vshrl.u32 %v944, 7
      %v946 = vsub.s32 0, %v945
      %v947 = vrot.slane %v942, %v946
      %v953 = vunpack.c.l.b16 %v937
      %v954 = vunpack.c.l.b16 %v938
      %v955 = vunpack.c.l.b16 %v939
      %v956 = vunpack.c.l.b16 %v940
      %v957 = vpack.c.b16 %v954, %v953
      %v958 = vpack.c.b16 %v956, %v955
      %961 = vmatprep.subr.bf16.mxu0 0
      %962 = vmatpush1.bf16.msra.mxu0 %v957
      %963 = vmatprep.subr.bf16.mxu0 0
      %964 = vmatpush1.bf16.msra.mxu0 %v958
      %965 = vmatprep.subr.bf16.mxu0 0
      %966 = vmatpush1.bf16.msra.mxu0 0
      %967 = vmatprep.subr.bf16.mxu0 0
      %968 = vmatpush1.bf16.msra.mxu0 0
      %969 = vmatprep.subr.bf16.mxu0 0
      %970 = vmatpush1.bf16.msra.mxu0 0
      %971 = vmatprep.subr.bf16.mxu0 0
      %972 = vmatpush1.bf16.msra.mxu0 0
      %973 = vmatprep.subr.bf16.mxu0 0
      %974 = vmatpush1.bf16.msra.mxu0 0
      %975 = vmatprep.subr.bf16.mxu0 0
      %976 = vmatpush1.bf16.msra.mxu0 0
      %977 = vmatprep.subr.bf16.mxu0 0
      %978 = vmatpush1.bf16.msra.mxu0 0
      %979 = vmatprep.subr.bf16.mxu0 0
      %980 = vmatpush1.bf16.msra.mxu0 0
      %981 = vmatprep.subr.bf16.mxu0 0
      %982 = vmatpush1.bf16.msra.mxu0 0
      %983 = vmatprep.subr.bf16.mxu0 0
      %984 = vmatpush1.bf16.msra.mxu0 0
      %985 = vmatprep.subr.bf16.mxu0 0
      %986 = vmatpush1.bf16.msra.mxu0 0
      %987 = vmatprep.subr.bf16.mxu0 0
      %988 = vmatpush1.bf16.msra.mxu0 0
      %989 = vmatprep.subr.bf16.mxu0 0
      %990 = vmatpush1.bf16.msra.mxu0 0
      %991 = vmatprep.subr.bf16.mxu0 0
      %992 = vmatpush1.bf16.msra.mxu0 0
      %993 = vmatprep.mubr.bf16.mxu0 0
      %994 = vmatmul.mubr.bf16.gmra.mrb[0].mxu0 %v472
      %v995 = vpop.f32.mrb[0].mxu0
      %v996 = vadd.f32 %v947, %v995
      %v997 = vpop.f32.mrb[0].mxu0
      %v998 = vpop.f32.mrb[0].mxu0
      %v999 = vpop.f32.mrb[0].mxu0
      %1000 = vdwg.mxu0
      %v1001 = vmul.f32 %v866, 0.35355338
      %v1002 = vpack.c.bf16 %v1001, %v1001
      %v1003 = vpack.c.bf16 %v931, %v931
      %v1005 = vsel %vm647, %v1002, 0
      %v1008 = vsel %vm647, %v1003, 0
      %1010 = vmatprep.subr.bf16.mxu0 0
      %1011 = vmatpush1.bf16.xpose.msra.mxu0 %v1008
      %1012 = vmatprep.subr.bf16.mxu0 0
      %1013 = vmatpush1.bf16.xpose.msra.mxu0 0
      %1014 = vmatprep.subr.bf16.mxu0 0
      %1015 = vmatpush1.bf16.xpose.msra.mxu0 0
      %1016 = vmatprep.subr.bf16.mxu0 0
      %1017 = vmatpush1.bf16.xpose.msra.mxu0 0
      %1018 = vmatprep.subr.bf16.mxu0 0
      %1019 = vmatpush1.bf16.xpose.msra.mxu0 0
      %1020 = vmatprep.subr.bf16.mxu0 0
      %1021 = vmatpush1.bf16.xpose.msra.mxu0 0
      %1022 = vmatprep.subr.bf16.mxu0 0
      %1023 = vmatpush1.bf16.xpose.msra.mxu0 0
      %1024 = vmatprep.subr.bf16.mxu0 0
      %1025 = vmatpush1.bf16.xpose.msra.mxu0 0
      %1026 = vmatprep.subr.bf16.mxu0 0
      %1027 = vmatpush1.bf16.xpose.msra.mxu0 0
      %1028 = vmatprep.subr.bf16.mxu0 0
      %1029 = vmatpush1.bf16.xpose.msra.mxu0 0
      %1030 = vmatprep.subr.bf16.mxu0 0
      %1031 = vmatpush1.bf16.xpose.msra.mxu0 0
      %1032 = vmatprep.subr.bf16.mxu0 0
      %1033 = vmatpush1.bf16.xpose.msra.mxu0 0
      %1034 = vmatprep.subr.bf16.mxu0 0
      %1035 = vmatpush1.bf16.xpose.msra.mxu0 0
      %1036 = vmatprep.subr.bf16.mxu0 0
      %1037 = vmatpush1.bf16.xpose.msra.mxu0 0
      %1038 = vmatprep.subr.bf16.mxu0 0
      %1039 = vmatpush1.bf16.xpose.msra.mxu0 0
      %1040 = vmatprep.subr.bf16.mxu0 0
      %1041 = vmatpush1.bf16.xpose.msra.mxu0 0
      %1042 = vmatprep.mubr.bf16.mxu0 0
      %1043 = vmatmul.mubr.bf16.gmra.mrb[0].mxu0 %v1005
      %v1044 = vpop.f32.mrb[0].mxu0
      %v1045 = vadd.f32 0.0, %v1044
      %v1046 = vpop.f32.mrb[0].mxu0
      %v1047 = vpop.f32.mrb[0].mxu0
      %v1048 = vpop.f32.mrb[0].mxu0
      %1049 = vdwg.mxu0
      %v1050 = vsel %vm694, %v1045, -inf
      %1051 = vmax.xlane.f32.xlu0 %v1050
      %v1052 = vpop.xlane.xlu0 %1051
      %v1053 = vsub.f32 %v1045, %v1052
      %v1054 = vmul.f32 %v1053, 1.442695
      %v1055 = vpow.pop %v1054
      %v1056 = vsel %vm694, %v1055, 0.0
      %1057 = vadd.xlane.f32.xlu0 %v1056
      %v1058 = vpop.xlane.xlu0 %1057
      %v1059 = vrcp.pop %v1058
      %v1060 = vmul.f32 %v1055, %v1059
      %v1061 = vpack.c.bf16 %v1060, %v1060
      %v1062 = vpack.c.bf16 %v996, %v996
      %v1064 = vsel %vm708, %v1061, 0
      %v1067 = vsel %vm712, %v1062, 0
      %1069 = vmatprep.subr.bf16.mxu0 0
      %1070 = vmatpush1.bf16.msra.mxu0 %v1067
      %1071 = vmatprep.subr.bf16.mxu0 0
      %1072 = vmatpush1.bf16.msra.mxu0 0
      %1073 = vmatprep.subr.bf16.mxu0 0
      %1074 = vmatpush1.bf16.msra.mxu0 0
      %1075 = vmatprep.subr.bf16.mxu0 0
      %1076 = vmatpush1.bf16.msra.mxu0 0
      %1077 = vmatprep.subr.bf16.mxu0 0
      %1078 = vmatpush1.bf16.msra.mxu0 0
      %1079 = vmatprep.subr.bf16.mxu0 0
      %1080 = vmatpush1.bf16.msra.mxu0 0
      %1081 = vmatprep.subr.bf16.mxu0 0
      %1082 = vmatpush1.bf16.msra.mxu0 0
      %1083 = vmatprep.subr.bf16.mxu0 0
      %1084 = vmatpush1.bf16.msra.mxu0 0
      %1085 = vmatprep.subr.bf16.mxu0 0
      %1086 = vmatpush1.bf16.msra.mxu0 0
      %1087 = vmatprep.subr.bf16.mxu0 0
      %1088 = vmatpush1.bf16.msra.mxu0 0
      %1089 = vmatprep.subr.bf16.mxu0 0
      %1090 = vmatpush1.bf16.msra.mxu0 0
      %1091 = vmatprep.subr.bf16.mxu0 0
      %1092 = vmatpush1.bf16.msra.mxu0 0
      %1093 = vmatprep.subr.bf16.mxu0 0
      %1094 = vmatpush1.bf16.msra.mxu0 0
      %1095 = vmatprep.subr.bf16.mxu0 0
      %1096 = vmatpush1.bf16.msra.mxu0 0
      %1097 = vmatprep.subr.bf16.mxu0 0
      %1098 = vmatpush1.bf16.msra.mxu0 0
      %1099 = vmatprep.subr.bf16.mxu0 0
      %1100 = vmatpush1.bf16.msra.mxu0 0
      %1101 = vmatprep.mubr.bf16.mxu0 0
      %1102 = vmatmul.mubr.bf16.gmra.mrb[0].mxu0 %v1064
      %v1103 = vpop.f32.mrb[0].mxu0
      %v1104 = vadd.f32 0.0, %v1103
      %v1105 = vpop.f32.mrb[0].mxu0
      %v1106 = vpop.f32.mrb[0].mxu0
      %v1107 = vpop.f32.mrb[0].mxu0
      %1108 = vdwg.mxu0
      %v1109 = vpack.c.bf16 %v1104, %v1104
      %s1110 = scalar_lea.vmem %s3, 4
      %v1111 = vld [vmem:[%s1110] sm:$0xf]
      %v1113 = vsel %vm647, %v1109, 0
      %v1116 = vsel %vm761, %v1111, 0
      %1118 = vmatprep.subr.bf16.mxu0 0
      %1119 = vmatpush1.bf16.msra.mxu0 %v1116
      %1120 = vmatprep.subr.bf16.mxu0 0
      %1121 = vmatpush1.bf16.msra.mxu0 0
      %1122 = vmatprep.subr.bf16.mxu0 0
      %1123 = vmatpush1.bf16.msra.mxu0 0
      %1124 = vmatprep.subr.bf16.mxu0 0
      %1125 = vmatpush1.bf16.msra.mxu0 0
      %1126 = vmatprep.subr.bf16.mxu0 0
      %1127 = vmatpush1.bf16.msra.mxu0 0
      %1128 = vmatprep.subr.bf16.mxu0 0
      %1129 = vmatpush1.bf16.msra.mxu0 0
      %1130 = vmatprep.subr.bf16.mxu0 0
      %1131 = vmatpush1.bf16.msra.mxu0 0
      %1132 = vmatprep.subr.bf16.mxu0 0
      %1133 = vmatpush1.bf16.msra.mxu0 0
      %1134 = vmatprep.subr.bf16.mxu0 0
      %1135 = vmatpush1.bf16.msra.mxu0 0
      %1136 = vmatprep.subr.bf16.mxu0 0
      %1137 = vmatpush1.bf16.msra.mxu0 0
      %1138 = vmatprep.subr.bf16.mxu0 0
      %1139 = vmatpush1.bf16.msra.mxu0 0
      %1140 = vmatprep.subr.bf16.mxu0 0
      %1141 = vmatpush1.bf16.msra.mxu0 0
      %1142 = vmatprep.subr.bf16.mxu0 0
      %1143 = vmatpush1.bf16.msra.mxu0 0
      %1144 = vmatprep.subr.bf16.mxu0 0
      %1145 = vmatpush1.bf16.msra.mxu0 0
      %1146 = vmatprep.subr.bf16.mxu0 0
      %1147 = vmatpush1.bf16.msra.mxu0 0
      %1148 = vmatprep.subr.bf16.mxu0 0
      %1149 = vmatpush1.bf16.msra.mxu0 0
      %1150 = vmatprep.mubr.bf16.mxu0 0
      %1151 = vmatmul.mubr.bf16.gmra.mrb[0].mxu0 %v1113
      %v1152 = vpop.f32.mrb[0].mxu0
      %v1153 = vadd.f32 0.0, %v1152
      %v1154 = vpop.f32.mrb[0].mxu0
      %v1155 = vpop.f32.mrb[0].mxu0
      %v1156 = vpop.f32.mrb[0].mxu0
      %1157 = vdwg.mxu0
      %v1158 = vadd.f32 %v805, %v1153
      %s1159 = scalar_lea.vmem %s1, 32
      %v1160 = vld [vmem:[%s1159] sm:$0xf]
      %v1161 = vld [vmem:[%s1159 + $0x4] sm:$0xf]
      %v1162 = vld [vmem:[%s1159 + $0x8] sm:$0xf]
      %v1163 = vld [vmem:[%s1159 + $0xc] sm:$0xf]
      %s1164 = scalar_lea.vmem %s2, 2
      %v1165 = vld [vmem:[%s1164] sm:$0x1]
      %v1167 = vlaneseq
      %v1168 = vshrl.u32 %v1167, 7
      %v1169 = vsub.s32 0, %v1168
      %v1170 = vrot.slane %v1165, %v1169
      %v1176 = vunpack.c.l.b16 %v1160
      %v1177 = vunpack.c.l.b16 %v1161
      %v1178 = vunpack.c.l.b16 %v1162
      %v1179 = vunpack.c.l.b16 %v1163
      %v1180 = vpack.c.b16 %v1177, %v1176
      %v1181 = vpack.c.b16 %v1179, %v1178
      %1184 = vmatprep.subr.bf16.mxu0 0
      %1185 = vmatpush1.bf16.msra.mxu0 %v1180
      %1186 = vmatprep.subr.bf16.mxu0 0
      %1187 = vmatpush1.bf16.msra.mxu0 %v1181
      %1188 = vmatprep.subr.bf16.mxu0 0
      %1189 = vmatpush1.bf16.msra.mxu0 0
      %1190 = vmatprep.subr.bf16.mxu0 0
      %1191 = vmatpush1.bf16.msra.mxu0 0
      %1192 = vmatprep.subr.bf16.mxu0 0
      %1193 = vmatpush1.bf16.msra.mxu0 0
      %1194 = vmatprep.subr.bf16.mxu0 0
      %1195 = vmatpush1.bf16.msra.mxu0 0
      %1196 = vmatprep.subr.bf16.mxu0 0
      %1197 = vmatpush1.bf16.msra.mxu0 0
      %1198 = vmatprep.subr.bf16.mxu0 0
      %1199 = vmatpush1.bf16.msra.mxu0 0
      %1200 = vmatprep.subr.bf16.mxu0 0
      %1201 = vmatpush1.bf16.msra.mxu0 0
      %1202 = vmatprep.subr.bf16.mxu0 0
      %1203 = vmatpush1.bf16.msra.mxu0 0
      %1204 = vmatprep.subr.bf16.mxu0 0
      %1205 = vmatpush1.bf16.msra.mxu0 0
      %1206 = vmatprep.subr.bf16.mxu0 0
      %1207 = vmatpush1.bf16.msra.mxu0 0
      %1208 = vmatprep.subr.bf16.mxu0 0
      %1209 = vmatpush1.bf16.msra.mxu0 0
      %1210 = vmatprep.subr.bf16.mxu0 0
      %1211 = vmatpush1.bf16.msra.mxu0 0
      %1212 = vmatprep.subr.bf16.mxu0 0
      %1213 = vmatpush1.bf16.msra.mxu0 0
      %1214 = vmatprep.subr.bf16.mxu0 0
      %1215 = vmatpush1.bf16.msra.mxu0 0
      %1216 = vmatprep.mubr.bf16.mxu0 0
      %1217 = vmatmul.mubr.bf16.gmra.mrb[0].mxu0 %v472
      %v1218 = vpop.f32.mrb[0].mxu0
      %v1219 = vadd.f32 %v1170, %v1218
      %v1220 = vpop.f32.mrb[0].mxu0
      %v1221 = vpop.f32.mrb[0].mxu0
      %v1222 = vpop.f32.mrb[0].mxu0
      %1223 = vdwg.mxu0
      %s1224 = scalar_lea.vmem %s1, 96
      %v1225 = vld [vmem:[%s1224] sm:$0xf]
      %v1226 = vld [vmem:[%s1224 + $0x4] sm:$0xf]
      %v1227 = vld [vmem:[%s1224 + $0x8] sm:$0xf]
      %v1228 = vld [vmem:[%s1224 + $0xc] sm:$0xf]
      %s1229 = scalar_lea.vmem %s2, 6
      %v1230 = vld [vmem:[%s1229] sm:$0x1]
      %v1232 = vlaneseq
      %v1233 = vshrl.u32 %v1232, 7
      %v1234 = vsub.s32 0, %v1233
      %v1235 = vrot.slane %v1230, %v1234
      %v1241 = vunpack.c.l.b16 %v1225
      %v1242 = vunpack.c.l.b16 %v1226
      %v1243 = vunpack.c.l.b16 %v1227
      %v1244 = vunpack.c.l.b16 %v1228
      %v1245 = vpack.c.b16 %v1242, %v1241
      %v1246 = vpack.c.b16 %v1244, %v1243
      %1249 = vmatprep.subr.bf16.mxu0 0
      %1250 = vmatpush1.bf16.msra.mxu0 %v1245
      %1251 = vmatprep.subr.bf16.mxu0 0
      %1252 = vmatpush1.bf16.msra.mxu0 %v1246
      %1253 = vmatprep.subr.bf16.mxu0 0
      %1254 = vmatpush1.bf16.msra.mxu0 0
      %1255 = vmatprep.subr.bf16.mxu0 0
      %1256 = vmatpush1.bf16.msra.mxu0 0
      %1257 = vmatprep.subr.bf16.mxu0 0
      %1258 = vmatpush1.bf16.msra.mxu0 0
      %1259 = vmatprep.subr.bf16.mxu0 0
      %1260 = vmatpush1.bf16.msra.mxu0 0
      %1261 = vmatprep.subr.bf16.mxu0 0
      %1262 = vmatpush1.bf16.msra.mxu0 0
      %1263 = vmatprep.subr.bf16.mxu0 0
      %1264 = vmatpush1.bf16.msra.mxu0 0
      %1265 = vmatprep.subr.bf16.mxu0 0
      %1266 = vmatpush1.bf16.msra.mxu0 0
      %1267 = vmatprep.subr.bf16.mxu0 0
      %1268 = vmatpush1.bf16.msra.mxu0 0
      %1269 = vmatprep.subr.bf16.mxu0 0
      %1270 = vmatpush1.bf16.msra.mxu0 0
      %1271 = vmatprep.subr.bf16.mxu0 0
      %1272 = vmatpush1.bf16.msra.mxu0 0
      %1273 = vmatprep.subr.bf16.mxu0 0
      %1274 = vmatpush1.bf16.msra.mxu0 0
      %1275 = vmatprep.subr.bf16.mxu0 0
      %1276 = vmatpush1.bf16.msra.mxu0 0
      %1277 = vmatprep.subr.bf16.mxu0 0
      %1278 = vmatpush1.bf16.msra.mxu0 0
      %1279 = vmatprep.subr.bf16.mxu0 0
      %1280 = vmatpush1.bf16.msra.mxu0 0
      %1281 = vmatprep.mubr.bf16.mxu0 0
      %1282 = vmatmul.mubr.bf16.gmra.mrb[0].mxu0 %v472
      %v1283 = vpop.f32.mrb[0].mxu0
      %v1284 = vadd.f32 %v1235, %v1283
      %v1285 = vpop.f32.mrb[0].mxu0
      %v1286 = vpop.f32.mrb[0].mxu0
      %v1287 = vpop.f32.mrb[0].mxu0
      %1288 = vdwg.mxu0
      %s1289 = scalar_lea.vmem %s1, 160
      %v1290 = vld [vmem:[%s1289] sm:$0xf]
      %v1291 = vld [vmem:[%s1289 + $0x4] sm:$0xf]
      %v1292 = vld [vmem:[%s1289 + $0x8] sm:$0xf]
      %v1293 = vld [vmem:[%s1289 + $0xc] sm:$0xf]
      %s1294 = scalar_lea.vmem %s2, 10
      %v1295 = vld [vmem:[%s1294] sm:$0x1]
      %v1297 = vlaneseq
      %v1298 = vshrl.u32 %v1297, 7
      %v1299 = vsub.s32 0, %v1298
      %v1300 = vrot.slane %v1295, %v1299
      %v1306 = vunpack.c.l.b16 %v1290
      %v1307 = vunpack.c.l.b16 %v1291
      %v1308 = vunpack.c.l.b16 %v1292
      %v1309 = vunpack.c.l.b16 %v1293
      %v1310 = vpack.c.b16 %v1307, %v1306
      %v1311 = vpack.c.b16 %v1309, %v1308
      %1314 = vmatprep.subr.bf16.mxu0 0
      %1315 = vmatpush1.bf16.msra.mxu0 %v1310
      %1316 = vmatprep.subr.bf16.mxu0 0
      %1317 = vmatpush1.bf16.msra.mxu0 %v1311
      %1318 = vmatprep.subr.bf16.mxu0 0
      %1319 = vmatpush1.bf16.msra.mxu0 0
      %1320 = vmatprep.subr.bf16.mxu0 0
      %1321 = vmatpush1.bf16.msra.mxu0 0
      %1322 = vmatprep.subr.bf16.mxu0 0
      %1323 = vmatpush1.bf16.msra.mxu0 0
      %1324 = vmatprep.subr.bf16.mxu0 0
      %1325 = vmatpush1.bf16.msra.mxu0 0
      %1326 = vmatprep.subr.bf16.mxu0 0
      %1327 = vmatpush1.bf16.msra.mxu0 0
      %1328 = vmatprep.subr.bf16.mxu0 0
      %1329 = vmatpush1.bf16.msra.mxu0 0
      %1330 = vmatprep.subr.bf16.mxu0 0
      %1331 = vmatpush1.bf16.msra.mxu0 0
      %1332 = vmatprep.subr.bf16.mxu0 0
      %1333 = vmatpush1.bf16.msra.mxu0 0
      %1334 = vmatprep.subr.bf16.mxu0 0
      %1335 = vmatpush1.bf16.msra.mxu0 0
      %1336 = vmatprep.subr.bf16.mxu0 0
      %1337 = vmatpush1.bf16.msra.mxu0 0
      %1338 = vmatprep.subr.bf16.mxu0 0
      %1339 = vmatpush1.bf16.msra.mxu0 0
      %1340 = vmatprep.subr.bf16.mxu0 0
      %1341 = vmatpush1.bf16.msra.mxu0 0
      %1342 = vmatprep.subr.bf16.mxu0 0
      %1343 = vmatpush1.bf16.msra.mxu0 0
      %1344 = vmatprep.subr.bf16.mxu0 0
      %1345 = vmatpush1.bf16.msra.mxu0 0
      %1346 = vmatprep.mubr.bf16.mxu0 0
      %1347 = vmatmul.mubr.bf16.gmra.mrb[0].mxu0 %v472
      %v1348 = vpop.f32.mrb[0].mxu0
      %v1349 = vadd.f32 %v1300, %v1348
      %v1350 = vpop.f32.mrb[0].mxu0
      %v1351 = vpop.f32.mrb[0].mxu0
      %v1352 = vpop.f32.mrb[0].mxu0
      %1353 = vdwg.mxu0
      %v1354 = vmul.f32 %v1219, 0.35355338
      %v1355 = vpack.c.bf16 %v1354, %v1354
      %v1356 = vpack.c.bf16 %v1284, %v1284
      %v1358 = vsel %vm647, %v1355, 0
      %v1361 = vsel %vm647, %v1356, 0
      %1363 = vmatprep.subr.bf16.mxu0 0
      %1364 = vmatpush1.bf16.xpose.msra.mxu0 %v1361
      %1365 = vmatprep.subr.bf16.mxu0 0
      %1366 = vmatpush1.bf16.xpose.msra.mxu0 0
      %1367 = vmatprep.subr.bf16.mxu0 0
      %1368 = vmatpush1.bf16.xpose.msra.mxu0 0
      %1369 = vmatprep.subr.bf16.mxu0 0
      %1370 = vmatpush1.bf16.xpose.msra.mxu0 0
      %1371 = vmatprep.subr.bf16.mxu0 0
      %1372 = vmatpush1.bf16.xpose.msra.mxu0 0
      %1373 = vmatprep.subr.bf16.mxu0 0
      %1374 = vmatpush1.bf16.xpose.msra.mxu0 0
      %1375 = vmatprep.subr.bf16.mxu0 0
      %1376 = vmatpush1.bf16.xpose.msra.mxu0 0
      %1377 = vmatprep.subr.bf16.mxu0 0
      %1378 = vmatpush1.bf16.xpose.msra.mxu0 0
      %1379 = vmatprep.subr.bf16.mxu0 0
      %1380 = vmatpush1.bf16.xpose.msra.mxu0 0
      %1381 = vmatprep.subr.bf16.mxu0 0
      %1382 = vmatpush1.bf16.xpose.msra.mxu0 0
      %1383 = vmatprep.subr.bf16.mxu0 0
      %1384 = vmatpush1.bf16.xpose.msra.mxu0 0
      %1385 = vmatprep.subr.bf16.mxu0 0
      %1386 = vmatpush1.bf16.xpose.msra.mxu0 0
      %1387 = vmatprep.subr.bf16.mxu0 0
      %1388 = vmatpush1.bf16.xpose.msra.mxu0 0
      %1389 = vmatprep.subr.bf16.mxu0 0
      %1390 = vmatpush1.bf16.xpose.msra.mxu0 0
      %1391 = vmatprep.subr.bf16.mxu0 0
      %1392 = vmatpush1.bf16.xpose.msra.mxu0 0
      %1393 = vmatprep.subr.bf16.mxu0 0
      %1394 = vmatpush1.bf16.xpose.msra.mxu0 0
      %1395 = vmatprep.mubr.bf16.mxu0 0
      %1396 = vmatmul.mubr.bf16.gmra.mrb[0].mxu0 %v1358
      %v1397 = vpop.f32.mrb[0].mxu0
      %v1398 = vadd.f32 0.0, %v1397
      %v1399 = vpop.f32.mrb[0].mxu0
      %v1400 = vpop.f32.mrb[0].mxu0
      %v1401 = vpop.f32.mrb[0].mxu0
      %1402 = vdwg.mxu0
      %v1403 = vsel %vm694, %v1398, -inf
      %1404 = vmax.xlane.f32.xlu0 %v1403
      %v1405 = vpop.xlane.xlu0 %1404
      %v1406 = vsub.f32 %v1398, %v1405
      %v1407 = vmul.f32 %v1406, 1.442695
      %v1408 = vpow.pop %v1407
      %v1409 = vsel %vm694, %v1408, 0.0
      %1410 = vadd.xlane.f32.xlu0 %v1409
      %v1411 = vpop.xlane.xlu0 %1410
      %v1412 = vrcp.pop %v1411
      %v1413 = vmul.f32 %v1408, %v1412
      %v1414 = vpack.c.bf16 %v1413, %v1413
      %v1415 = vpack.c.bf16 %v1349, %v1349
      %v1417 = vsel %vm708, %v1414, 0
      %v1420 = vsel %vm712, %v1415, 0
      %1422 = vmatprep.subr.bf16.mxu0 0
      %1423 = vmatpush1.bf16.msra.mxu0 %v1420
      %1424 = vmatprep.subr.bf16.mxu0 0
      %1425 = vmatpush1.bf16.msra.mxu0 0
      %1426 = vmatprep.subr.bf16.mxu0 0
      %1427 = vmatpush1.bf16.msra.mxu0 0
      %1428 = vmatprep.subr.bf16.mxu0 0
      %1429 = vmatpush1.bf16.msra.mxu0 0
      %1430 = vmatprep.subr.bf16.mxu0 0
      %1431 = vmatpush1.bf16.msra.mxu0 0
      %1432 = vmatprep.subr.bf16.mxu0 0
      %1433 = vmatpush1.bf16.msra.mxu0 0
      %1434 = vmatprep.subr.bf16.mxu0 0
      %1435 = vmatpush1.bf16.msra.mxu0 0
      %1436 = vmatprep.subr.bf16.mxu0 0
      %1437 = vmatpush1.bf16.msra.mxu0 0
      %1438 = vmatprep.subr.bf16.mxu0 0
      %1439 = vmatpush1.bf16.msra.mxu0 0
      %1440 = vmatprep.subr.bf16.mxu0 0
      %1441 = vmatpush1.bf16.msra.mxu0 0
      %1442 = vmatprep.subr.bf16.mxu0 0
      %1443 = vmatpush1.bf16.msra.mxu0 0
      %1444 = vmatprep.subr.bf16.mxu0 0
      %1445 = vmatpush1.bf16.msra.mxu0 0
      %1446 = vmatprep.subr.bf16.mxu0 0
      %1447 = vmatpush1.bf16.msra.mxu0 0
      %1448 = vmatprep.subr.bf16.mxu0 0
      %1449 = vmatpush1.bf16.msra.mxu0 0
      %1450 = vmatprep.subr.bf16.mxu0 0
      %1451 = vmatpush1.bf16.msra.mxu0 0
      %1452 = vmatprep.subr.bf16.mxu0 0
      %1453 = vmatpush1.bf16.msra.mxu0 0
      %1454 = vmatprep.mubr.bf16.mxu0 0
      %1455 = vmatmul.mubr.bf16.gmra.mrb[0].mxu0 %v1417
      %v1456 = vpop.f32.mrb[0].mxu0
      %v1457 = vadd.f32 0.0, %v1456
      %v1458 = vpop.f32.mrb[0].mxu0
      %v1459 = vpop.f32.mrb[0].mxu0
      %v1460 = vpop.f32.mrb[0].mxu0
      %1461 = vdwg.mxu0
      %v1462 = vpack.c.bf16 %v1457, %v1457
      %s1463 = scalar_lea.vmem %s3, 8
      %v1464 = vld [vmem:[%s1463] sm:$0xf]
      %v1466 = vsel %vm647, %v1462, 0
      %v1469 = vsel %vm761, %v1464, 0
      %1471 = vmatprep.subr.bf16.mxu0 0
      %1472 = vmatpush1.bf16.msra.mxu0 %v1469
      %1473 = vmatprep.subr.bf16.mxu0 0
      %1474 = vmatpush1.bf16.msra.mxu0 0
      %1475 = vmatprep.subr.bf16.mxu0 0
      %1476 = vmatpush1.bf16.msra.mxu0 0
      %1477 = vmatprep.subr.bf16.mxu0 0
      %1478 = vmatpush1.bf16.msra.mxu0 0
      %1479 = vmatprep.subr.bf16.mxu0 0
      %1480 = vmatpush1.bf16.msra.mxu0 0
      %1481 = vmatprep.subr.bf16.mxu0 0
      %1482 = vmatpush1.bf16.msra.mxu0 0
      %1483 = vmatprep.subr.bf16.mxu0 0
      %1484 = vmatpush1.bf16.msra.mxu0 0
      %1485 = vmatprep.subr.bf16.mxu0 0
      %1486 = vmatpush1.bf16.msra.mxu0 0
      %1487 = vmatprep.subr.bf16.mxu0 0
      %1488 = vmatpush1.bf16.msra.mxu0 0
      %1489 = vmatprep.subr.bf16.mxu0 0
      %1490 = vmatpush1.bf16.msra.mxu0 0
      %1491 = vmatprep.subr.bf16.mxu0 0
      %1492 = vmatpush1.bf16.msra.mxu0 0
      %1493 = vmatprep.subr.bf16.mxu0 0
      %1494 = vmatpush1.bf16.msra.mxu0 0
      %1495 = vmatprep.subr.bf16.mxu0 0
      %1496 = vmatpush1.bf16.msra.mxu0 0
      %1497 = vmatprep.subr.bf16.mxu0 0
      %1498 = vmatpush1.bf16.msra.mxu0 0
      %1499 = vmatprep.subr.bf16.mxu0 0
      %1500 = vmatpush1.bf16.msra.mxu0 0
      %1501 = vmatprep.subr.bf16.mxu0 0
      %1502 = vmatpush1.bf16.msra.mxu0 0
      %1503 = vmatprep.mubr.bf16.mxu0 0
      %1504 = vmatmul.mubr.bf16.gmra.mrb[0].mxu0 %v1466
      %v1505 = vpop.f32.mrb[0].mxu0
      %v1506 = vadd.f32 0.0, %v1505
      %v1507 = vpop.f32.mrb[0].mxu0
      %v1508 = vpop.f32.mrb[0].mxu0
      %v1509 = vpop.f32.mrb[0].mxu0
      %1510 = vdwg.mxu0
      %v1511 = vadd.f32 %v1158, %v1506
      %s1512 = scalar_lea.vmem %s1, 48
      %v1513 = vld [vmem:[%s1512] sm:$0xf]
      %v1514 = vld [vmem:[%s1512 + $0x4] sm:$0xf]
      %v1515 = vld [vmem:[%s1512 + $0x8] sm:$0xf]
      %v1516 = vld [vmem:[%s1512 + $0xc] sm:$0xf]
      %s1517 = scalar_lea.vmem %s2, 3
      %v1518 = vld [vmem:[%s1517] sm:$0x1]
      %v1520 = vlaneseq
      %v1521 = vshrl.u32 %v1520, 7
      %v1522 = vsub.s32 0, %v1521
      %v1523 = vrot.slane %v1518, %v1522
      %v1529 = vunpack.c.l.b16 %v1513
      %v1530 = vunpack.c.l.b16 %v1514
      %v1531 = vunpack.c.l.b16 %v1515
      %v1532 = vunpack.c.l.b16 %v1516
      %v1533 = vpack.c.b16 %v1530, %v1529
      %v1534 = vpack.c.b16 %v1532, %v1531
      %1537 = vmatprep.subr.bf16.mxu0 0
      %1538 = vmatpush1.bf16.msra.mxu0 %v1533
      %1539 = vmatprep.subr.bf16.mxu0 0
      %1540 = vmatpush1.bf16.msra.mxu0 %v1534
      %1541 = vmatprep.subr.bf16.mxu0 0
      %1542 = vmatpush1.bf16.msra.mxu0 0
      %1543 = vmatprep.subr.bf16.mxu0 0
      %1544 = vmatpush1.bf16.msra.mxu0 0
      %1545 = vmatprep.subr.bf16.mxu0 0
      %1546 = vmatpush1.bf16.msra.mxu0 0
      %1547 = vmatprep.subr.bf16.mxu0 0
      %1548 = vmatpush1.bf16.msra.mxu0 0
      %1549 = vmatprep.subr.bf16.mxu0 0
      %1550 = vmatpush1.bf16.msra.mxu0 0
      %1551 = vmatprep.subr.bf16.mxu0 0
      %1552 = vmatpush1.bf16.msra.mxu0 0
      %1553 = vmatprep.subr.bf16.mxu0 0
      %1554 = vmatpush1.bf16.msra.mxu0 0
      %1555 = vmatprep.subr.bf16.mxu0 0
      %1556 = vmatpush1.bf16.msra.mxu0 0
      %1557 = vmatprep.subr.bf16.mxu0 0
      %1558 = vmatpush1.bf16.msra.mxu0 0
      %1559 = vmatprep.subr.bf16.mxu0 0
      %1560 = vmatpush1.bf16.msra.mxu0 0
      %1561 = vmatprep.subr.bf16.mxu0 0
      %1562 = vmatpush1.bf16.msra.mxu0 0
      %1563 = vmatprep.subr.bf16.mxu0 0
      %1564 = vmatpush1.bf16.msra.mxu0 0
      %1565 = vmatprep.subr.bf16.mxu0 0
      %1566 = vmatpush1.bf16.msra.mxu0 0
      %1567 = vmatprep.subr.bf16.mxu0 0
      %1568 = vmatpush1.bf16.msra.mxu0 0
      %1569 = vmatprep.mubr.bf16.mxu0 0
      %1570 = vmatmul.mubr.bf16.gmra.mrb[0].mxu0 %v472
      %v1571 = vpop.f32.mrb[0].mxu0
      %v1572 = vadd.f32 %v1523, %v1571
      %v1573 = vpop.f32.mrb[0].mxu0
      %v1574 = vpop.f32.mrb[0].mxu0
      %v1575 = vpop.f32.mrb[0].mxu0
      %1576 = vdwg.mxu0
      %s1577 = scalar_lea.vmem %s1, 112
      %v1578 = vld [vmem:[%s1577] sm:$0xf]
      %v1579 = vld [vmem:[%s1577 + $0x4] sm:$0xf]
      %v1580 = vld [vmem:[%s1577 + $0x8] sm:$0xf]
      %v1581 = vld [vmem:[%s1577 + $0xc] sm:$0xf]
      %s1582 = scalar_lea.vmem %s2, 7
      %v1583 = vld [vmem:[%s1582] sm:$0x1]
      %v1585 = vlaneseq
      %v1586 = vshrl.u32 %v1585, 7
      %v1587 = vsub.s32 0, %v1586
      %v1588 = vrot.slane %v1583, %v1587
      %v1594 = vunpack.c.l.b16 %v1578
      %v1595 = vunpack.c.l.b16 %v1579
      %v1596 = vunpack.c.l.b16 %v1580
      %v1597 = vunpack.c.l.b16 %v1581
      %v1598 = vpack.c.b16 %v1595, %v1594
      %v1599 = vpack.c.b16 %v1597, %v1596
      %1602 = vmatprep.subr.bf16.mxu0 0
      %1603 = vmatpush1.bf16.msra.mxu0 %v1598
      %1604 = vmatprep.subr.bf16.mxu0 0
      %1605 = vmatpush1.bf16.msra.mxu0 %v1599
      %1606 = vmatprep.subr.bf16.mxu0 0
      %1607 = vmatpush1.bf16.msra.mxu0 0
      %1608 = vmatprep.subr.bf16.mxu0 0
      %1609 = vmatpush1.bf16.msra.mxu0 0
      %1610 = vmatprep.subr.bf16.mxu0 0
      %1611 = vmatpush1.bf16.msra.mxu0 0
      %1612 = vmatprep.subr.bf16.mxu0 0
      %1613 = vmatpush1.bf16.msra.mxu0 0
      %1614 = vmatprep.subr.bf16.mxu0 0
      %1615 = vmatpush1.bf16.msra.mxu0 0
      %1616 = vmatprep.subr.bf16.mxu0 0
      %1617 = vmatpush1.bf16.msra.mxu0 0
      %1618 = vmatprep.subr.bf16.mxu0 0
      %1619 = vmatpush1.bf16.msra.mxu0 0
      %1620 = vmatprep.subr.bf16.mxu0 0
      %1621 = vmatpush1.bf16.msra.mxu0 0
      %1622 = vmatprep.subr.bf16.mxu0 0
      %1623 = vmatpush1.bf16.msra.mxu0 0
      %1624 = vmatprep.subr.bf16.mxu0 0
      %1625 = vmatpush1.bf16.msra.mxu0 0
      %1626 = vmatprep.subr.bf16.mxu0 0
      %1627 = vmatpush1.bf16.msra.mxu0 0
      %1628 = vmatprep.subr.bf16.mxu0 0
      %1629 = vmatpush1.bf16.msra.mxu0 0
      %1630 = vmatprep.subr.bf16.mxu0 0
      %1631 = vmatpush1.bf16.msra.mxu0 0
      %1632 = vmatprep.subr.bf16.mxu0 0
      %1633 = vmatpush1.bf16.msra.mxu0 0
      %1634 = vmatprep.mubr.bf16.mxu0 0
      %1635 = vmatmul.mubr.bf16.gmra.mrb[0].mxu0 %v472
      %v1636 = vpop.f32.mrb[0].mxu0
      %v1637 = vadd.f32 %v1588, %v1636
      %v1638 = vpop.f32.mrb[0].mxu0
      %v1639 = vpop.f32.mrb[0].mxu0
      %v1640 = vpop.f32.mrb[0].mxu0
      %1641 = vdwg.mxu0
      %s1642 = scalar_lea.vmem %s1, 176
      %v1643 = vld [vmem:[%s1642] sm:$0xf]
      %v1644 = vld [vmem:[%s1642 + $0x4] sm:$0xf]
      %v1645 = vld [vmem:[%s1642 + $0x8] sm:$0xf]
      %v1646 = vld [vmem:[%s1642 + $0xc] sm:$0xf]
      %s1647 = scalar_lea.vmem %s2, 11
      %v1648 = vld [vmem:[%s1647] sm:$0x1]
      %v1650 = vlaneseq
      %v1651 = vshrl.u32 %v1650, 7
      %v1652 = vsub.s32 0, %v1651
      %v1653 = vrot.slane %v1648, %v1652
      %v1659 = vunpack.c.l.b16 %v1643
      %v1660 = vunpack.c.l.b16 %v1644
      %v1661 = vunpack.c.l.b16 %v1645
      %v1662 = vunpack.c.l.b16 %v1646
      %v1663 = vpack.c.b16 %v1660, %v1659
      %v1664 = vpack.c.b16 %v1662, %v1661
      %1667 = vmatprep.subr.bf16.mxu0 0
      %1668 = vmatpush1.bf16.msra.mxu0 %v1663
      %1669 = vmatprep.subr.bf16.mxu0 0
      %1670 = vmatpush1.bf16.msra.mxu0 %v1664
      %1671 = vmatprep.subr.bf16.mxu0 0
      %1672 = vmatpush1.bf16.msra.mxu0 0
      %1673 = vmatprep.subr.bf16.mxu0 0
      %1674 = vmatpush1.bf16.msra.mxu0 0
      %1675 = vmatprep.subr.bf16.mxu0 0
      %1676 = vmatpush1.bf16.msra.mxu0 0
      %1677 = vmatprep.subr.bf16.mxu0 0
      %1678 = vmatpush1.bf16.msra.mxu0 0
      %1679 = vmatprep.subr.bf16.mxu0 0
      %1680 = vmatpush1.bf16.msra.mxu0 0
      %1681 = vmatprep.subr.bf16.mxu0 0
      %1682 = vmatpush1.bf16.msra.mxu0 0
      %1683 = vmatprep.subr.bf16.mxu0 0
      %1684 = vmatpush1.bf16.msra.mxu0 0
      %1685 = vmatprep.subr.bf16.mxu0 0
      %1686 = vmatpush1.bf16.msra.mxu0 0
      %1687 = vmatprep.subr.bf16.mxu0 0
      %1688 = vmatpush1.bf16.msra.mxu0 0
      %1689 = vmatprep.subr.bf16.mxu0 0
      %1690 = vmatpush1.bf16.msra.mxu0 0
      %1691 = vmatprep.subr.bf16.mxu0 0
      %1692 = vmatpush1.bf16.msra.mxu0 0
      %1693 = vmatprep.subr.bf16.mxu0 0
      %1694 = vmatpush1.bf16.msra.mxu0 0
      %1695 = vmatprep.subr.bf16.mxu0 0
      %1696 = vmatpush1.bf16.msra.mxu0 0
      %1697 = vmatprep.subr.bf16.mxu0 0
      %1698 = vmatpush1.bf16.msra.mxu0 0
      %1699 = vmatprep.mubr.bf16.mxu0 0
      %1700 = vmatmul.mubr.bf16.gmra.mrb[0].mxu0 %v472
      %v1701 = vpop.f32.mrb[0].mxu0
      %v1702 = vadd.f32 %v1653, %v1701
      %v1703 = vpop.f32.mrb[0].mxu0
      %v1704 = vpop.f32.mrb[0].mxu0
      %v1705 = vpop.f32.mrb[0].mxu0
      %1706 = vdwg.mxu0
      %v1707 = vmul.f32 %v1572, 0.35355338
      %v1708 = vpack.c.bf16 %v1707, %v1707
      %v1709 = vpack.c.bf16 %v1637, %v1637
      %v1711 = vsel %vm647, %v1708, 0
      %v1714 = vsel %vm647, %v1709, 0
      %1716 = vmatprep.subr.bf16.mxu0 0
      %1717 = vmatpush1.bf16.xpose.msra.mxu0 %v1714
      %1718 = vmatprep.subr.bf16.mxu0 0
      %1719 = vmatpush1.bf16.xpose.msra.mxu0 0
      %1720 = vmatprep.subr.bf16.mxu0 0
      %1721 = vmatpush1.bf16.xpose.msra.mxu0 0
      %1722 = vmatprep.subr.bf16.mxu0 0
      %1723 = vmatpush1.bf16.xpose.msra.mxu0 0
      %1724 = vmatprep.subr.bf16.mxu0 0
      %1725 = vmatpush1.bf16.xpose.msra.mxu0 0
      %1726 = vmatprep.subr.bf16.mxu0 0
      %1727 = vmatpush1.bf16.xpose.msra.mxu0 0
      %1728 = vmatprep.subr.bf16.mxu0 0
      %1729 = vmatpush1.bf16.xpose.msra.mxu0 0
      %1730 = vmatprep.subr.bf16.mxu0 0
      %1731 = vmatpush1.bf16.xpose.msra.mxu0 0
      %1732 = vmatprep.subr.bf16.mxu0 0
      %1733 = vmatpush1.bf16.xpose.msra.mxu0 0
      %1734 = vmatprep.subr.bf16.mxu0 0
      %1735 = vmatpush1.bf16.xpose.msra.mxu0 0
      %1736 = vmatprep.subr.bf16.mxu0 0
      %1737 = vmatpush1.bf16.xpose.msra.mxu0 0
      %1738 = vmatprep.subr.bf16.mxu0 0
      %1739 = vmatpush1.bf16.xpose.msra.mxu0 0
      %1740 = vmatprep.subr.bf16.mxu0 0
      %1741 = vmatpush1.bf16.xpose.msra.mxu0 0
      %1742 = vmatprep.subr.bf16.mxu0 0
      %1743 = vmatpush1.bf16.xpose.msra.mxu0 0
      %1744 = vmatprep.subr.bf16.mxu0 0
      %1745 = vmatpush1.bf16.xpose.msra.mxu0 0
      %1746 = vmatprep.subr.bf16.mxu0 0
      %1747 = vmatpush1.bf16.xpose.msra.mxu0 0
      %1748 = vmatprep.mubr.bf16.mxu0 0
      %1749 = vmatmul.mubr.bf16.gmra.mrb[0].mxu0 %v1711
      %v1750 = vpop.f32.mrb[0].mxu0
      %v1751 = vadd.f32 0.0, %v1750
      %v1752 = vpop.f32.mrb[0].mxu0
      %v1753 = vpop.f32.mrb[0].mxu0
      %v1754 = vpop.f32.mrb[0].mxu0
      %1755 = vdwg.mxu0
      %v1756 = vsel %vm694, %v1751, -inf
      %1757 = vmax.xlane.f32.xlu0 %v1756
      %v1758 = vpop.xlane.xlu0 %1757
      %v1759 = vsub.f32 %v1751, %v1758
      %v1760 = vmul.f32 %v1759, 1.442695
      %v1761 = vpow.pop %v1760
      %v1762 = vsel %vm694, %v1761, 0.0
      %1763 = vadd.xlane.f32.xlu0 %v1762
      %v1764 = vpop.xlane.xlu0 %1763
      %v1765 = vrcp.pop %v1764
      %v1766 = vmul.f32 %v1761, %v1765
      %v1767 = vpack.c.bf16 %v1766, %v1766
      %v1768 = vpack.c.bf16 %v1702, %v1702
      %v1770 = vsel %vm708, %v1767, 0
      %v1773 = vsel %vm712, %v1768, 0
      %1775 = vmatprep.subr.bf16.mxu0 0
      %1776 = vmatpush1.bf16.msra.mxu0 %v1773
      %1777 = vmatprep.subr.bf16.mxu0 0
      %1778 = vmatpush1.bf16.msra.mxu0 0
      %1779 = vmatprep.subr.bf16.mxu0 0
      %1780 = vmatpush1.bf16.msra.mxu0 0
      %1781 = vmatprep.subr.bf16.mxu0 0
      %1782 = vmatpush1.bf16.msra.mxu0 0
      %1783 = vmatprep.subr.bf16.mxu0 0
      %1784 = vmatpush1.bf16.msra.mxu0 0
      %1785 = vmatprep.subr.bf16.mxu0 0
      %1786 = vmatpush1.bf16.msra.mxu0 0
      %1787 = vmatprep.subr.bf16.mxu0 0
      %1788 = vmatpush1.bf16.msra.mxu0 0
      %1789 = vmatprep.subr.bf16.mxu0 0
      %1790 = vmatpush1.bf16.msra.mxu0 0
      %1791 = vmatprep.subr.bf16.mxu0 0
      %1792 = vmatpush1.bf16.msra.mxu0 0
      %1793 = vmatprep.subr.bf16.mxu0 0
      %1794 = vmatpush1.bf16.msra.mxu0 0
      %1795 = vmatprep.subr.bf16.mxu0 0
      %1796 = vmatpush1.bf16.msra.mxu0 0
      %1797 = vmatprep.subr.bf16.mxu0 0
      %1798 = vmatpush1.bf16.msra.mxu0 0
      %1799 = vmatprep.subr.bf16.mxu0 0
      %1800 = vmatpush1.bf16.msra.mxu0 0
      %1801 = vmatprep.subr.bf16.mxu0 0
      %1802 = vmatpush1.bf16.msra.mxu0 0
      %1803 = vmatprep.subr.bf16.mxu0 0
      %1804 = vmatpush1.bf16.msra.mxu0 0
      %1805 = vmatprep.subr.bf16.mxu0 0
      %1806 = vmatpush1.bf16.msra.mxu0 0
      %1807 = vmatprep.mubr.bf16.mxu0 0
      %1808 = vmatmul.mubr.bf16.gmra.mrb[0].mxu0 %v1770
      %v1809 = vpop.f32.mrb[0].mxu0
      %v1810 = vadd.f32 0.0, %v1809
      %v1811 = vpop.f32.mrb[0].mxu0
      %v1812 = vpop.f32.mrb[0].mxu0
      %v1813 = vpop.f32.mrb[0].mxu0
      %1814 = vdwg.mxu0
      %v1815 = vpack.c.bf16 %v1810, %v1810
      %s1816 = scalar_lea.vmem %s3, 12
      %v1817 = vld [vmem:[%s1816] sm:$0xf]
      %v1819 = vsel %vm647, %v1815, 0
      %v1822 = vsel %vm761, %v1817, 0
      %1824 = vmatprep.subr.bf16.mxu0 0
      %1825 = vmatpush1.bf16.msra.mxu0 %v1822
      %1826 = vmatprep.subr.bf16.mxu0 0
      %1827 = vmatpush1.bf16.msra.mxu0 0
      %1828 = vmatprep.subr.bf16.mxu0 0
      %1829 = vmatpush1.bf16.msra.mxu0 0
      %1830 = vmatprep.subr.bf16.mxu0 0
      %1831 = vmatpush1.bf16.msra.mxu0 0
      %1832 = vmatprep.subr.bf16.mxu0 0
      %1833 = vmatpush1.bf16.msra.mxu0 0
      %1834 = vmatprep.subr.bf16.mxu0 0
      %1835 = vmatpush1.bf16.msra.mxu0 0
      %1836 = vmatprep.subr.bf16.mxu0 0
      %1837 = vmatpush1.bf16.msra.mxu0 0
      %1838 = vmatprep.subr.bf16.mxu0 0
      %1839 = vmatpush1.bf16.msra.mxu0 0
      %1840 = vmatprep.subr.bf16.mxu0 0
      %1841 = vmatpush1.bf16.msra.mxu0 0
      %1842 = vmatprep.subr.bf16.mxu0 0
      %1843 = vmatpush1.bf16.msra.mxu0 0
      %1844 = vmatprep.subr.bf16.mxu0 0
      %1845 = vmatpush1.bf16.msra.mxu0 0
      %1846 = vmatprep.subr.bf16.mxu0 0
      %1847 = vmatpush1.bf16.msra.mxu0 0
      %1848 = vmatprep.subr.bf16.mxu0 0
      %1849 = vmatpush1.bf16.msra.mxu0 0
      %1850 = vmatprep.subr.bf16.mxu0 0
      %1851 = vmatpush1.bf16.msra.mxu0 0
      %1852 = vmatprep.subr.bf16.mxu0 0
      %1853 = vmatpush1.bf16.msra.mxu0 0
      %1854 = vmatprep.subr.bf16.mxu0 0
      %1855 = vmatpush1.bf16.msra.mxu0 0
      %1856 = vmatprep.mubr.bf16.mxu0 0
      %1857 = vmatmul.mubr.bf16.gmra.mrb[0].mxu0 %v1819
      %v1858 = vpop.f32.mrb[0].mxu0
      %v1859 = vadd.f32 0.0, %v1858
      %v1860 = vpop.f32.mrb[0].mxu0
      %v1861 = vpop.f32.mrb[0].mxu0
      %v1862 = vpop.f32.mrb[0].mxu0
      %1863 = vdwg.mxu0
      %v1864 = vadd.f32 %v1511, %v1859
      %vm1865 = vcmask 257024
      %v1866 = vsel %vm1865, %v1864, 0.0
      %1867 = vadd.xlane.f32.xlu0 %v1866
      %v1868 = vpop.xlane.xlu0 %1867
      %v1869 = vrcp.pop 32.0
      %v1870 = vmul.f32 %v1868, %v1869
      %v1871 = vsub.f32 %v1864, %v1870
      %v1872 = vmul.f32 %v1871, %v1871
      %v1873 = vsel %vm1865, %v1872, 0.0
      %1874 = vadd.xlane.f32.xlu0 %v1873
      %v1875 = vpop.xlane.xlu0 %1874
      %v1876 = vmul.f32 %v1875, %v1869
      %v1877 = vadd.f32 %v1876, 1e-05
      %v1878 = vrsqrt.pop %v1877
      %v1879 = vmul.f32 %v1871, %v1878
      %v1880 = vld [vmem:[%s5] sm:$0x1]
      %v1882 = vlaneseq
      %v1883 = vshrl.u32 %v1882, 7
      %v1884 = vsub.s32 0, %v1883
      %v1885 = vrot.slane %v1880, %v1884
      %v1887 = vmul.f32 %v1879, %v1885
      %v1888 = vld [vmem:[%s6] sm:$0x1]
      %v1890 = vlaneseq
      %v1891 = vshrl.u32 %v1890, 7
      %v1892 = vsub.s32 0, %v1891
      %v1893 = vrot.slane %v1888, %v1892
      %v1895 = vadd.f32 %v1887, %v1893
      %v1896 = vpack.c.bf16 %v1895, %v1895
      %v1897 = vld [vmem:[%s7] sm:$0xf]
      %v1898 = vld [vmem:[%s7 + $0x4] sm:$0xf]
      %v1899 = vld [vmem:[%s7 + $0x8] sm:$0xf]
      %v1900 = vld [vmem:[%s7 + $0xc] sm:$0xf]
      %v1901 = vld [vmem:[%s8] sm:$0x1]
      %v1903 = vlaneseq
      %v1904 = vshrl.u32 %v1903, 7
      %v1905 = vsub.s32 0, %v1904
      %v1906 = vrot.slane %v1901, %v1905
      %v1912 = vunpack.c.l.b16 %v1897
      %v1913 = vunpack.c.l.b16 %v1898
      %v1914 = vunpack.c.l.b16 %v1899
      %v1915 = vunpack.c.l.b16 %v1900
      %v1916 = vpack.c.b16 %v1913, %v1912
      %v1917 = vpack.c.b16 %v1915, %v1914
      %v1921 = vsel %vm470, %v1896, 0
      %1923 = vmatprep.subr.bf16.mxu0 0
      %1924 = vmatpush1.bf16.msra.mxu0 %v1916
      %1925 = vmatprep.subr.bf16.mxu0 0
      %1926 = vmatpush1.bf16.msra.mxu0 %v1917
      %1927 = vmatprep.subr.bf16.mxu0 0
      %1928 = vmatpush1.bf16.msra.mxu0 0
      %1929 = vmatprep.subr.bf16.mxu0 0
      %1930 = vmatpush1.bf16.msra.mxu0 0
      %1931 = vmatprep.subr.bf16.mxu0 0
      %1932 = vmatpush1.bf16.msra.mxu0 0
      %1933 = vmatprep.subr.bf16.mxu0 0
      %1934 = vmatpush1.bf16.msra.mxu0 0
      %1935 = vmatprep.subr.bf16.mxu0 0
      %1936 = vmatpush1.bf16.msra.mxu0 0
      %1937 = vmatprep.subr.bf16.mxu0 0
      %1938 = vmatpush1.bf16.msra.mxu0 0
      %1939 = vmatprep.subr.bf16.mxu0 0
      %1940 = vmatpush1.bf16.msra.mxu0 0
      %1941 = vmatprep.subr.bf16.mxu0 0
      %1942 = vmatpush1.bf16.msra.mxu0 0
      %1943 = vmatprep.subr.bf16.mxu0 0
      %1944 = vmatpush1.bf16.msra.mxu0 0
      %1945 = vmatprep.subr.bf16.mxu0 0
      %1946 = vmatpush1.bf16.msra.mxu0 0
      %1947 = vmatprep.subr.bf16.mxu0 0
      %1948 = vmatpush1.bf16.msra.mxu0 0
      %1949 = vmatprep.subr.bf16.mxu0 0
      %1950 = vmatpush1.bf16.msra.mxu0 0
      %1951 = vmatprep.subr.bf16.mxu0 0
      %1952 = vmatpush1.bf16.msra.mxu0 0
      %1953 = vmatprep.subr.bf16.mxu0 0
      %1954 = vmatpush1.bf16.msra.mxu0 0
      %1955 = vmatprep.mubr.bf16.mxu0 0
      %1956 = vmatmul.mubr.bf16.gmra.mrb[0].mxu0 %v1921
      %v1957 = vpop.f32.mrb[0].mxu0
      %v1958 = vadd.f32 %v1906, %v1957
      %v1959 = vpop.f32.mrb[0].mxu0
      %v1960 = vpop.f32.mrb[0].mxu0
      %v1961 = vpop.f32.mrb[0].mxu0
      %1962 = vdwg.mxu0
      %v1963 = vmul.f32 %v1958, 0.5
      %v1964 = vmul.f32 %v1958, 0.70710677
      %v1965 = verf.f32.pop %v1964
      %v1966 = vadd.f32 %v1965, 1.0
      %v1967 = vmul.f32 %v1963, %v1966
      %v1968 = vpack.c.bf16 %v1967, %v1967
      %v1969 = vld [vmem:[%s9] sm:$0xf]
      %v1970 = vld [vmem:[%s9 + $0x4] sm:$0xf]
      %v1971 = vld [vmem:[%s9 + $0x8] sm:$0xf]
      %v1972 = vld [vmem:[%s9 + $0xc] sm:$0xf]
      %v1973 = vld [vmem:[%s9 + $0x10] sm:$0xf]
      %v1974 = vld [vmem:[%s9 + $0x14] sm:$0xf]
      %v1975 = vld [vmem:[%s9 + $0x18] sm:$0xf]
      %v1976 = vld [vmem:[%s9 + $0x1c] sm:$0xf]
      %v1977 = vld [vmem:[%s10] sm:$0x1]
      %v1979 = vlaneseq
      %v1980 = vshrl.u32 %v1979, 7
      %v1981 = vsub.s32 0, %v1980
      %v1982 = vrot.slane %v1977, %v1981
      %v1992 = vunpack.c.l.b16 %v1969
      %v1993 = vunpack.c.l.b16 %v1970
      %v1994 = vunpack.c.l.b16 %v1971
      %v1995 = vunpack.c.l.b16 %v1972
      %v1996 = vunpack.c.l.b16 %v1973
      %v1997 = vunpack.c.l.b16 %v1974
      %v1998 = vunpack.c.l.b16 %v1975
      %v1999 = vunpack.c.l.b16 %v1976
      %v2000 = vpack.c.b16 %v1993, %v1992
      %v2001 = vpack.c.b16 %v1995, %v1994
      %v2002 = vpack.c.b16 %v1997, %v1996
      %v2003 = vpack.c.b16 %v1999, %v1998
      %vm2008 = vcmask 523264
      %v2010 = vsel %vm2008, %v1968, 0
      %2012 = vmatprep.subr.bf16.mxu0 0
      %2013 = vmatpush1.bf16.msra.mxu0 %v2000
      %2014 = vmatprep.subr.bf16.mxu0 0
      %2015 = vmatpush1.bf16.msra.mxu0 %v2001
      %2016 = vmatprep.subr.bf16.mxu0 0
      %2017 = vmatpush1.bf16.msra.mxu0 %v2002
      %2018 = vmatprep.subr.bf16.mxu0 0
      %2019 = vmatpush1.bf16.msra.mxu0 %v2003
      %2020 = vmatprep.subr.bf16.mxu0 0
      %2021 = vmatpush1.bf16.msra.mxu0 0
      %2022 = vmatprep.subr.bf16.mxu0 0
      %2023 = vmatpush1.bf16.msra.mxu0 0
      %2024 = vmatprep.subr.bf16.mxu0 0
      %2025 = vmatpush1.bf16.msra.mxu0 0
      %2026 = vmatprep.subr.bf16.mxu0 0
      %2027 = vmatpush1.bf16.msra.mxu0 0
      %2028 = vmatprep.subr.bf16.mxu0 0
      %2029 = vmatpush1.bf16.msra.mxu0 0
      %2030 = vmatprep.subr.bf16.mxu0 0
      %2031 = vmatpush1.bf16.msra.mxu0 0
      %2032 = vmatprep.subr.bf16.mxu0 0
      %2033 = vmatpush1.bf16.msra.mxu0 0
      %2034 = vmatprep.subr.bf16.mxu0 0
      %2035 = vmatpush1.bf16.msra.mxu0 0
      %2036 = vmatprep.subr.bf16.mxu0 0
      %2037 = vmatpush1.bf16.msra.mxu0 0
      %2038 = vmatprep.subr.bf16.mxu0 0
      %2039 = vmatpush1.bf16.msra.mxu0 0
      %2040 = vmatprep.subr.bf16.mxu0 0
      %2041 = vmatpush1.bf16.msra.mxu0 0
      %2042 = vmatprep.subr.bf16.mxu0 0
      %2043 = vmatpush1.bf16.msra.mxu0 0
      %2044 = vmatprep.mubr.bf16.mxu0 0
      %2045 = vmatmul.mubr.bf16.gmra.mrb[0].mxu0 %v2010
      %v2046 = vpop.f32.mrb[0].mxu0
      %v2047 = vadd.f32 %v1982, %v2046
      %v2048 = vpop.f32.mrb[0].mxu0
      %v2049 = vpop.f32.mrb[0].mxu0
      %v2050 = vpop.f32.mrb[0].mxu0
      %2051 = vdwg.mxu0
      %v2052 = vadd.f32 %v2047, %v1895
      %v2053 = vsel %vm1865, %v2052, 0.0
      %2054 = vadd.xlane.f32.xlu0 %v2053
      %v2055 = vpop.xlane.xlu0 %2054
      %v2056 = vmul.f32 %v2055, %v1869
      %v2057 = vsub.f32 %v2052, %v2056
      %v2058 = vmul.f32 %v2057, %v2057
      %v2059 = vsel %vm1865, %v2058, 0.0
      %2060 = vadd.xlane.f32.xlu0 %v2059
      %v2061 = vpop.xlane.xlu0 %2060
      %v2062 = vmul.f32 %v2061, %v1869
      %v2063 = vadd.f32 %v2062, 1e-05
      %v2064 = vrsqrt.pop %v2063
      %v2065 = vmul.f32 %v2057, %v2064
      %v2066 = vld [vmem:[%s11] sm:$0x1]
      %v2068 = vlaneseq
      %v2069 = vshrl.u32 %v2068, 7
      %v2070 = vsub.s32 0, %v2069
      %v2071 = vrot.slane %v2066, %v2070
      %v2073 = vmul.f32 %v2065, %v2071
      %v2074 = vld [vmem:[%s12] sm:$0x1]
      %v2076 = vlaneseq
      %v2077 = vshrl.u32 %v2076, 7
      %v2078 = vsub.s32 0, %v2077
      %v2079 = vrot.slane %v2074, %v2078
      %v2081 = vadd.f32 %v2073, %v2079
      %2082 = vst.msk [vmem:[%s435] sm:$0xf] %vm1865, %v2081
      %p2083 = scmp.lt.s32.totalorder %s24, 1
      %s2084 = scalar_select %p2083, %s24, 1
      %s2085 = smul.addr %s2084, 4
      %s2086 = scalar_lea.vmem %s13, %s2085
      // Predicated region
      $region73: #{transformer_forward.5} parent=71 // pred_check
        %p2087 = pneg %p320
      $region74: #{transformer_forward.5} parent=71 // pred_check_branch
        %2089 = sbr.rel (%p2087) target = $region76
      $region75: #{transformer_forward.5} parent=71 // pred_region
        _
      $region76: #{transformer_forward.5} parent=71 // pred_fallthru
        _
    $region72: #{transformer_forward.5} parent=5 // pred_fallthru
      _
    %p2090 = scmp.le.s32.totalorder 2, %s19
    // Predicated region
    $region77: #{transformer_forward.5} parent=5 // pred_check
      %p2091 = pneg %p2090
    $region78: #{transformer_forward.5} parent=5 // pred_check_branch
      %2093 = sbr.rel (%p2091) target = $region80
    $region79: #{transformer_forward.5} parent=5 // pred_region
      %s2094 = ssub.s32 %s19, 2
      // Predicated region
      $region81: #{transformer_forward.5} parent=79 // pred_check
        %p2095 = pneg %p326
      $region82: #{transformer_forward.5} parent=79 // pred_check_branch
        %2097 = sbr.rel (%p2095) target = $region84
      $region83: #{transformer_forward.5} parent=79 // pred_region
        %p2098 = scmp.lt.s32.totalorder %s25, 1
        %s2099 = scalar_select %p2098, %s25, 1
        %s2100 = smul.addr %s2099, 4
        %s2101 = scalar_lea.vmem %s13, %s2100
      $region84: #{transformer_forward.5} parent=79 // pred_fallthru
        _
    $region80: #{transformer_forward.5} parent=5 // pred_fallthru
      _
  $region6: #{transformer_forward.5} parent=0 // loop_footer
    %s23 = sadd.s32 1, %s19
  $region7: #{transformer_forward.5} parent=0 // loop_footer_branch
    %18 = sbr.rel target = $region3
  $region8: #{transformer_forward.5} parent=0 // loop_exit
    _

</llo_original>
